<compile_context>
chip_gen: v6e
topology: v6e:2x2x1
jax: 0.10.0
libtpu: 0.0.40
codegen_flags: <defaults>
</compile_context>

<pallas_src>
import functools
import math

import jax
import jax.numpy as jnp
from jax.experimental import pallas as pl
from jax.experimental.pallas import tpu as pltpu

_SQRT2 = math.sqrt(2.0)
_GAMMA = 0.1


# -----------------------------------------------------------------------------
# Shared helpers (traced inside kernels)
# -----------------------------------------------------------------------------
def _im2col_3x3(xp, H, W):
    """xp: (H+2, W+2, C) f32 padded tile -> (H*W, 9*C) im2col matrix.

    Two 3-way lane-axis concatenations: only the three kx shifts slice the
    (unaligned) sublane axis; the ky shifts slice the untiled leading axis.
    Column order is (ky*3 + kx)*C + c, matching w.reshape(9*C, Cout).
    """
    C = xp.shape[-1]
    xk = jnp.concatenate(
        [xp[:, 0:W, :], xp[:, 1:W + 1, :], xp[:, 2:W + 2, :]], axis=-1)   # (H+2, W, 3C)
    patches = jnp.concatenate(
        [xk[0:H], xk[1:H + 1], xk[2:H + 2]], axis=-1)                     # (H, W, 9C)
    return patches.reshape(H * W, 9 * C)


def _activate(acc, act):
    if act == "gelu":
        # exact (erf-based) GELU, matching torch.nn.GELU() default
        return 0.5 * acc * (1.0 + jax.lax.erf(acc / _SQRT2))
    if act == "sigmoid":
        return jax.nn.sigmoid(acc)
    return acc


# -----------------------------------------------------------------------------
# Kernel 1: fused 3x3 conv (padding=1) + bias + activation, NHWC output
# -----------------------------------------------------------------------------
def _conv3x3_kernel(xp_ref, w_ref, b_ref, o_ref, *, H, W, act):
    cout = w_ref.shape[-1]
    patches = _im2col_3x3(xp_ref[0], H, W)                     # (H*W, 9*Cin) f32
    # single K=9*Cin MXU matmul, bf16 inputs, f32 accumulation
    acc = jnp.dot(patches.astype(jnp.bfloat16), w_ref[...],
                  preferred_element_type=jnp.float32)          # (H*W, Cout)
    acc = _activate(acc + b_ref[...], act)                     # bias + act in f32
    o_ref[0] = acc.reshape(H, W, cout).astype(o_ref.dtype)


def conv3x3(x, w, b, act):
    """x:(N,H,W,Cin) f32, w:(9,Cin,Cout) f32, b:(1,Cout) f32 -> (N,H,W,Cout) f32."""
    N, H, W, Cin = x.shape
    Cout = w.shape[-1]
    xp = jnp.pad(x, ((0, 0), (1, 1), (1, 1), (0, 0)))
    wf = w.reshape(9 * Cin, Cout).astype(jnp.bfloat16)         # (9*Cin, Cout) bf16
    kern = functools.partial(_conv3x3_kernel, H=H, W=W, act=act)
    return pl.pallas_call(
        kern,
        out_shape=jax.ShapeDtypeStruct((N, H, W, Cout), jnp.float32),
        grid=(N,),
        in_specs=[
            pl.BlockSpec((1, H + 2, W + 2, Cin), lambda n: (n, 0, 0, 0)),
            pl.BlockSpec((9 * Cin, Cout), lambda n: (0, 0)),
            pl.BlockSpec((1, Cout), lambda n: (0, 0)),
        ],
        out_specs=pl.BlockSpec((1, H, W, Cout), lambda n: (n, 0, 0, 0)),
        compiler_params=pltpu.CompilerParams(dimension_semantics=("parallel",)),
    )(xp, wf, b)


# -----------------------------------------------------------------------------
# Kernel 2: 3x3 conv with channels-first, lane-dense (N, Cout, H*W) output
# (used for the final Cout=1 conv so stores are unmasked full-lane vst)
# -----------------------------------------------------------------------------
def _conv3x3_chw_kernel(xp_ref, w_ref, b_ref, o_ref, *, H, W, act):
    patches = _im2col_3x3(xp_ref[0], H, W)                     # (H*W, 9*Cin) f32
    # (Cout, 9*Cin) @ (H*W, 9*Cin)^T -> (Cout, H*W): pixels land on lanes.
    acc = jax.lax.dot_general(w_ref[...], patches, (((1,), (1,)), ((), ())),
                              preferred_element_type=jnp.float32)
    acc = _activate(acc + b_ref[...], act)                     # bias (Cout,1) broadcasts
    o_ref[0] = acc.astype(o_ref.dtype)


def conv3x3_chw(x, w, b, act):
    """3x3 conv returning NCHW (N, Cout, H, W) with lane-dense kernel stores."""
    N, H, W, Cin = x.shape
    Cout = w.shape[-1]
    xp = jnp.pad(x, ((0, 0), (1, 1), (1, 1), (0, 0)))
    wf = jnp.transpose(w.reshape(9 * Cin, Cout))               # (Cout, 9*Cin) f32
    bf = b.reshape(Cout, 1)
    kern = functools.partial(_conv3x3_chw_kernel, H=H, W=W, act=act)
    out = pl.pallas_call(
        kern,
        out_shape=jax.ShapeDtypeStruct((N, Cout, H * W), jnp.float32),
        grid=(N,),
        in_specs=[
            pl.BlockSpec((1, H + 2, W + 2, Cin), lambda n: (n, 0, 0, 0)),
            pl.BlockSpec((Cout, 9 * Cin), lambda n: (0, 0)),
            pl.BlockSpec((Cout, 1), lambda n: (0, 0)),
        ],
        out_specs=pl.BlockSpec((1, Cout, H * W), lambda n: (n, 0, 0)),
        compiler_params=pltpu.CompilerParams(dimension_semantics=("parallel",)),
    )(xp, wf, bf)
    return out.reshape(N, Cout, H, W)


# -----------------------------------------------------------------------------
# Kernel 3: FCALayer channel attention (from pre-pooled spectrum) + FCAB residual
#   y = sigmoid(W_u relu(W_d pooled)) ; out = x2 * y + x_in
# -----------------------------------------------------------------------------
def _fca_kernel(p_ref, x2_ref, xin_ref, wd_ref, bd_ref, wu_ref, bu_ref, o_ref):
    y = p_ref[0]                                               # (1, C) pooled spectrum
    y1 = jnp.maximum(
        jnp.dot(y, wd_ref[...], preferred_element_type=jnp.float32) + bd_ref[...],
        0.0)                                                   # (1, R)
    y2 = jax.nn.sigmoid(
        jnp.dot(y1, wu_ref[...], preferred_element_type=jnp.float32) + bu_ref[...])
    scale = y2[0][None, None, :]                               # (1, 1, C)
    o_ref[0] = (x2_ref[0] * scale + xin_ref[0]).astype(o_ref.dtype)


def fca_scale_add(pooled, x2, xin, wd, bd, wu, bu):
    """pooled:(N,1,C), x2/xin:(N,H,W,C) -> x2 * attention(pooled) + xin."""
    N, H, W, C = x2.shape
    R = wd.shape[-1]
    return pl.pallas_call(
        _fca_kernel,
        out_shape=jax.ShapeDtypeStruct((N, H, W, C), jnp.float32),
        grid=(N,),
        in_specs=[
            pl.BlockSpec((1, 1, C), lambda n: (n, 0, 0)),
            pl.BlockSpec((1, H, W, C), lambda n: (n, 0, 0, 0)),
            pl.BlockSpec((1, H, W, C), lambda n: (n, 0, 0, 0)),
            pl.BlockSpec((C, R), lambda n: (0, 0)),
            pl.BlockSpec((1, R), lambda n: (0, 0)),
            pl.BlockSpec((R, C), lambda n: (0, 0)),
            pl.BlockSpec((1, C), lambda n: (0, 0)),
        ],
        out_specs=pl.BlockSpec((1, H, W, C), lambda n: (n, 0, 0, 0)),
        compiler_params=pltpu.CompilerParams(dimension_semantics=("parallel",)),
    )(pooled, x2, xin, wd, bd, wu, bu)


# -----------------------------------------------------------------------------
# Parameters (deterministic synthetic init; shapes follow DFCAN.__init__)
# -----------------------------------------------------------------------------
def init_params(key, channel=64, in_ch=15, out_ch=1, red_ch=4, n_groups=4):
    def conv_w(k, cin, cout):
        return jax.random.normal(k, (9, cin, cout), jnp.float32) / math.sqrt(9.0 * cin)

    def vec(k, c):
        return jax.random.normal(k, (1, c), jnp.float32) * 0.01

    keys = iter(jax.random.split(key, 8 + 8 * n_groups))
    params = {
        "conv1_w": conv_w(next(keys), in_ch, channel),
        "conv1_b": vec(next(keys), channel),
        "out_w": conv_w(next(keys), channel, out_ch),
        "out_b": vec(next(keys), out_ch),
        "groups": [],
    }
    for _ in range(n_groups):
        g = {
            "c1_w": conv_w(next(keys), channel, channel),
            "c1_b": vec(next(keys), channel),
            "c2_w": conv_w(next(keys), channel, channel),
            "c2_b": vec(next(keys), channel),
            "cd_w": jax.random.normal(next(keys), (channel, red_ch), jnp.float32)
                    / math.sqrt(channel),
            "cd_b": vec(next(keys), red_ch),
            "cu_w": jax.random.normal(next(keys), (red_ch, channel), jnp.float32)
                    / math.sqrt(red_ch),
            "cu_b": vec(next(keys), channel),
        }
        params["groups"].append(g)
    return params


# -----------------------------------------------------------------------------
# Full DFCAN forward (scale=1 -> the upsample_block branch is skipped, exactly
# as in the PyTorch forward).
# -----------------------------------------------------------------------------
def dfcan_forward(x_nchw, params):
    channel = params["conv1_b"].shape[-1]
    x = jnp.transpose(x_nchw, (0, 2, 3, 1)).astype(jnp.float32)   # NCHW -> NHWC
    N, H, W, Cin = x.shape

    # Pad input channels up to `channel` so every conv shares the Cin=64 fused
    # K=9*Cin matmul path (zero channels / zero weight rows contribute nothing).
    w1 = params["conv1_w"]
    if Cin < channel:
        x = jnp.pad(x, ((0, 0), (0, 0), (0, 0), (0, channel - Cin)))
        w1 = jnp.pad(w1, ((0, 0), (0, channel - Cin), (0, 0)))

    h = conv3x3(x, w1, params["conv1_b"], act="gelu")

    for p in params["groups"]:                                    # 4 ResidualGroups (1 FCAB each)
        x1 = conv3x3(h, p["c1_w"], p["c1_b"], act="gelu")
        x2 = conv3x3(x1, p["c2_w"], p["c2_b"], act="gelu")
        # FCALayer spectral pooling. fftshift2d is a pure spatial permutation and
        # AdaptiveAvgPool2d(1) is permutation-invariant, so the shift is a no-op.
        # TODO(synk): no Pallas FFT primitive; |FFT|^gamma + global mean stay in
        # XLA (they fuse with the FFT) so only (N,1,C) reaches the Pallas kernel.
        mag = jnp.abs(jnp.fft.fft2(x2, axes=(1, 2)))
        pooled = jnp.mean((mag + 1e-8) ** _GAMMA, axis=(1, 2))[:, None, :]  # (N,1,C)
        h = fca_scale_add(pooled, x2, h,
                          p["cd_w"], p["cd_b"], p["cu_w"], p["cu_b"])

    # Final Cout=1 conv + sigmoid, written channels-first (already NCHW).
    return conv3x3_chw(h, params["out_w"], params["out_b"], act="sigmoid")


if __name__ == "__main__":
    key = jax.random.PRNGKey(0)
    kx, kp = jax.random.split(key)
    x = jax.random.uniform(kx, (2, 15, 16, 16), jnp.float32)      # NCHW, 15 in-channels
    params = init_params(kp, channel=64, in_ch=15, out_ch=1)

    fwd = jax.jit(dfcan_forward)
    out = fwd(x, params)
    jax.block_until_ready(out)

    assert out.shape == (2, 1, 16, 16), out.shape
    assert bool(jnp.all(jnp.isfinite(out)))
    print("KERNEL_OK")
</pallas_src>

<mosaic_0001>
module attributes {stable_mosaic.version = 11 : i64} {
  func.func @_conv3x3_kernel(%arg0: i32, %arg1: memref<1x18x18x64xf32, #tpu.memory_space<vmem>>, %arg2: memref<576x64xbf16, #tpu.memory_space<vmem>>, %arg3: memref<1x64xf32, #tpu.memory_space<vmem>>, %arg4: memref<1x16x16x64xf32, #tpu.memory_space<vmem>>) attributes {dimension_semantics = [#tpu.dimension_semantics<parallel>], iteration_bounds = array<i64: 2>, scalar_prefetch = 0 : i64, scratch_operands = 0 : i64, tpu.core_type = #tpu.core_type<tc>, window_params = [{transform_indices = @transform_0, window_bounds = array<i64: 1, 18, 18, 64>}, {pipeline_mode = #tpu.pipeline_mode<synchronous>, transform_indices = @transform_1, window_bounds = array<i64: 576, 64>}, {pipeline_mode = #tpu.pipeline_mode<synchronous>, transform_indices = @transform_2, window_bounds = array<i64: 1, 64>}, {transform_indices = @transform_3, window_bounds = array<i64: 1, 16, 16, 64>}]} {
    %c0 = arith.constant 0 : index
    %c0_0 = arith.constant 0 : index
    %c0_1 = arith.constant 0 : index
    %c0_2 = arith.constant 0 : index
    %0 = vector.load %arg1[%c0, %c0_0, %c0_1, %c0_2] : memref<1x18x18x64xf32, #tpu.memory_space<vmem>>, vector<1x18x18x64xf32>
    %1 = vector.shape_cast %0 : vector<1x18x18x64xf32> to vector<18x18x64xf32>
    %2 = vector.extract_strided_slice %1 {offsets = [0, 0, 0], sizes = [18, 16, 64], strides = [1, 1, 1]} : vector<18x18x64xf32> to vector<18x16x64xf32>
    %3 = vector.extract_strided_slice %1 {offsets = [0, 1, 0], sizes = [18, 16, 64], strides = [1, 1, 1]} : vector<18x18x64xf32> to vector<18x16x64xf32>
    %4 = vector.extract_strided_slice %1 {offsets = [0, 2, 0], sizes = [18, 16, 64], strides = [1, 1, 1]} : vector<18x18x64xf32> to vector<18x16x64xf32>
    %5 = tpu.concatenate %2, %3, %4 in 2 : vector<18x16x64xf32>, vector<18x16x64xf32>, vector<18x16x64xf32> -> vector<18x16x192xf32>
    %6 = vector.extract_strided_slice %5 {offsets = [0, 0, 0], sizes = [16, 16, 192], strides = [1, 1, 1]} : vector<18x16x192xf32> to vector<16x16x192xf32>
    %7 = vector.extract_strided_slice %5 {offsets = [1, 0, 0], sizes = [16, 16, 192], strides = [1, 1, 1]} : vector<18x16x192xf32> to vector<16x16x192xf32>
    %8 = vector.extract_strided_slice %5 {offsets = [2, 0, 0], sizes = [16, 16, 192], strides = [1, 1, 1]} : vector<18x16x192xf32> to vector<16x16x192xf32>
    %9 = tpu.concatenate %6, %7, %8 in 2 : vector<16x16x192xf32>, vector<16x16x192xf32>, vector<16x16x192xf32> -> vector<16x16x576xf32>
    %10 = vector.shape_cast %9 : vector<16x16x576xf32> to vector<256x576xf32>
    %11 = arith.truncf %10 : vector<256x576xf32> to vector<256x576xbf16>
    %c0_3 = arith.constant 0 : index
    %c0_4 = arith.constant 0 : index
    %12 = vector.load %arg2[%c0_3, %c0_4] : memref<576x64xbf16, #tpu.memory_space<vmem>>, vector<576x64xbf16>
    %cst = arith.constant dense<0.000000e+00> : vector<256x64xf32>
    %13 = tpu.matmul %11, %12, %cst {dimension_numbers = #tpu.dot_dimension_numbers<[1], [0], [0], [1], [0, 0, 1, 1], [], []>} : vector<256x576xbf16>, vector<576x64xbf16>, vector<256x64xf32> -> vector<256x64xf32>
    %c0_5 = arith.constant 0 : index
    %c0_6 = arith.constant 0 : index
    %14 = vector.load %arg3[%c0_5, %c0_6] : memref<1x64xf32, #tpu.memory_space<vmem>>, vector<1x64xf32>
    %15 = vector.broadcast %14 : vector<1x64xf32> to vector<256x64xf32>
    %16 = arith.addf %13, %15 : vector<256x64xf32>
    %cst_7 = arith.constant 5.000000e-01 : f32
    %17 = vector.broadcast %cst_7 : f32 to vector<256x64xf32>
    %18 = arith.mulf %17, %16 : vector<256x64xf32>
    %cst_8 = arith.constant 1.41421354 : f32
    %19 = vector.broadcast %cst_8 : f32 to vector<256x64xf32>
    %20 = arith.divf %16, %19 : vector<256x64xf32>
    %21 = math.erf %20 : vector<256x64xf32>
    %cst_9 = arith.constant 1.000000e+00 : f32
    %22 = vector.broadcast %cst_9 : f32 to vector<256x64xf32>
    %23 = arith.addf %22, %21 : vector<256x64xf32>
    %24 = arith.mulf %18, %23 : vector<256x64xf32>
    %25 = vector.shape_cast %24 : vector<256x64xf32> to vector<16x16x64xf32>
    %c0_10 = arith.constant 0 : index
    %c0_11 = arith.constant 0 : index
    %c0_12 = arith.constant 0 : index
    %c0_13 = arith.constant 0 : index
    %26 = vector.load %arg4[%c0_10, %c0_11, %c0_12, %c0_13] : memref<1x16x16x64xf32, #tpu.memory_space<vmem>>, vector<1x16x16x64xf32>
    %27 = vector.shape_cast %26 : vector<1x16x16x64xf32> to vector<16x16x64xf32>
    %28 = vector.shape_cast %25 : vector<16x16x64xf32> to vector<1x16x16x64xf32>
    tpu.vector_store %arg4[%c0_10, %c0_11, %c0_12, %c0_13], %28 {strides = array<i32>} : memref<1x16x16x64xf32, #tpu.memory_space<vmem>>, vector<1x16x16x64xf32>,
    return
  }
  func.func @transform_0(%arg0: i32) -> (i32, i32, i32, i32) {
    %c0_i32 = arith.constant 0 : i32
    %c0_i32_0 = arith.constant 0 : i32
    %c0_i32_1 = arith.constant 0 : i32
    %c0_i32_2 = arith.constant 0 : i32
    return %arg0, %c0_i32, %c0_i32_0, %c0_i32_1 : i32, i32, i32, i32
  }
  func.func @transform_1(%arg0: i32) -> (i32, i32) {
    %c0_i32 = arith.constant 0 : i32
    %c0_i32_0 = arith.constant 0 : i32
    %c0_i32_1 = arith.constant 0 : i32
    return %c0_i32, %c0_i32_0 : i32, i32
  }
  func.func @transform_2(%arg0: i32) -> (i32, i32) {
    %c0_i32 = arith.constant 0 : i32
    %c0_i32_0 = arith.constant 0 : i32
    %c0_i32_1 = arith.constant 0 : i32
    return %c0_i32, %c0_i32_0 : i32, i32
  }
  func.func @transform_3(%arg0: i32) -> (i32, i32, i32, i32) {
    %c0_i32 = arith.constant 0 : i32
    %c0_i32_0 = arith.constant 0 : i32
    %c0_i32_1 = arith.constant 0 : i32
    %c0_i32_2 = arith.constant 0 : i32
    return %arg0, %c0_i32, %c0_i32_0, %c0_i32_1 : i32, i32, i32, i32
  }
}

module attributes {stable_mosaic.version = 11 : i64} {
  func.func @_fca_kernel(%arg0: i32, %arg1: memref<1x1x64xf32, #tpu.memory_space<vmem>>, %arg2: memref<1x16x16x64xf32, #tpu.memory_space<vmem>>, %arg3: memref<1x16x16x64xf32, #tpu.memory_space<vmem>>, %arg4: memref<64x4xf32, #tpu.memory_space<vmem>>, %arg5: memref<1x4xf32, #tpu.memory_space<vmem>>, %arg6: memref<4x64xf32, #tpu.memory_space<vmem>>, %arg7: memref<1x64xf32, #tpu.memory_space<vmem>>, %arg8: memref<1x16x16x64xf32, #tpu.memory_space<vmem>>) attributes {dimension_semantics = [#tpu.dimension_semantics<parallel>], iteration_bounds = array<i64: 2>, scalar_prefetch = 0 : i64, scratch_operands = 0 : i64, tpu.core_type = #tpu.core_type<tc>, window_params = [{transform_indices = @transform_0, window_bounds = array<i64: 1, 1, 64>}, {transform_indices = @transform_1, window_bounds = array<i64: 1, 16, 16, 64>}, {transform_indices = @transform_2, window_bounds = array<i64: 1, 16, 16, 64>}, {pipeline_mode = #tpu.pipeline_mode<synchronous>, transform_indices = @transform_3, window_bounds = array<i64: 64, 4>}, {pipeline_mode = #tpu.pipeline_mode<synchronous>, transform_indices = @transform_4, window_bounds = array<i64: 1, 4>}, {pipeline_mode = #tpu.pipeline_mode<synchronous>, transform_indices = @transform_5, window_bounds = array<i64: 4, 64>}, {pipeline_mode = #tpu.pipeline_mode<synchronous>, transform_indices = @transform_6, window_bounds = array<i64: 1, 64>}, {transform_indices = @transform_7, window_bounds = array<i64: 1, 16, 16, 64>}]} {
    %c0 = arith.constant 0 : index
    %c0_0 = arith.constant 0 : index
    %c0_1 = arith.constant 0 : index
    %0 = vector.load %arg1[%c0, %c0_0, %c0_1] : memref<1x1x64xf32, #tpu.memory_space<vmem>>, vector<1x1x64xf32>
    %1 = vector.shape_cast %0 : vector<1x1x64xf32> to vector<1x64xf32>
    %c0_2 = arith.constant 0 : index
    %c0_3 = arith.constant 0 : index
    %2 = vector.load %arg4[%c0_2, %c0_3] : memref<64x4xf32, #tpu.memory_space<vmem>>, vector<64x4xf32>
    %cst = arith.constant dense<0.000000e+00> : vector<1x4xf32>
    %3 = tpu.matmul %1, %2, %cst {dimension_numbers = #tpu.dot_dimension_numbers<[1], [0], [0], [1], [0, 0, 1, 1], [], []>} : vector<1x64xf32>, vector<64x4xf32>, vector<1x4xf32> -> vector<1x4xf32>
    %c0_4 = arith.constant 0 : index
    %c0_5 = arith.constant 0 : index
    %4 = vector.load %arg5[%c0_4, %c0_5] : memref<1x4xf32, #tpu.memory_space<vmem>>, vector<1x4xf32>
    %5 = arith.addf %3, %4 : vector<1x4xf32>
    %cst_6 = arith.constant 0.000000e+00 : f32
    %6 = vector.broadcast %cst_6 : f32 to vector<1x4xf32>
    %7 = arith.maximumf %5, %6 : vector<1x4xf32>
    %c0_7 = arith.constant 0 : index
    %c0_8 = arith.constant 0 : index
    %8 = vector.load %arg6[%c0_7, %c0_8] : memref<4x64xf32, #tpu.memory_space<vmem>>, vector<4x64xf32>
    %cst_9 = arith.constant dense<0.000000e+00> : vector<1x64xf32>
    %9 = tpu.matmul %7, %8, %cst_9 {dimension_numbers = #tpu.dot_dimension_numbers<[1], [0], [0], [1], [0, 0, 1, 1], [], []>} : vector<1x4xf32>, vector<4x64xf32>, vector<1x64xf32> -> vector<1x64xf32>
    %c0_10 = arith.constant 0 : index
    %c0_11 = arith.constant 0 : index
    %10 = vector.load %arg7[%c0_10, %c0_11] : memref<1x64xf32, #tpu.memory_space<vmem>>, vector<1x64xf32>
    %11 = arith.addf %9, %10 : vector<1x64xf32>
    %12 = arith.negf %11 : vector<1x64xf32>
    %13 = math.exp %12 : vector<1x64xf32>
    %cst_12 = arith.constant 1.000000e+00 : f32
    %14 = vector.broadcast %cst_12 : f32 to vector<1x64xf32>
    %15 = arith.addf %14, %13 : vector<1x64xf32>
    %16 = arith.divf %14, %15 : vector<1x64xf32>
    %17 = vector.shape_cast %16 : vector<1x64xf32> to vector<64xf32>
    %18 = vector.shape_cast %17 : vector<64xf32> to vector<1x1x64xf32>
    %c0_13 = arith.constant 0 : index
    %c0_14 = arith.constant 0 : index
    %c0_15 = arith.constant 0 : index
    %c0_16 = arith.constant 0 : index
    %19 = vector.load %arg2[%c0_13, %c0_14, %c0_15, %c0_16] : memref<1x16x16x64xf32, #tpu.memory_space<vmem>>, vector<1x16x16x64xf32>
    %20 = vector.shape_cast %19 : vector<1x16x16x64xf32> to vector<16x16x64xf32>
    %21 = vector.broadcast %18 : vector<1x1x64xf32> to vector<16x16x64xf32>
    %22 = arith.mulf %20, %21 : vector<16x16x64xf32>
    %c0_17 = arith.constant 0 : index
    %c0_18 = arith.constant 0 : index
    %c0_19 = arith.constant 0 : index
    %c0_20 = arith.constant 0 : index
    %23 = vector.load %arg3[%c0_17, %c0_18, %c0_19, %c0_20] : memref<1x16x16x64xf32, #tpu.memory_space<vmem>>, vector<1x16x16x64xf32>
    %24 = vector.shape_cast %23 : vector<1x16x16x64xf32> to vector<16x16x64xf32>
    %25 = arith.addf %22, %24 : vector<16x16x64xf32>
    %c0_21 = arith.constant 0 : index
    %c0_22 = arith.constant 0 : index
    %c0_23 = arith.constant 0 : index
    %c0_24 = arith.constant 0 : index
    %26 = vector.load %arg8[%c0_21, %c0_22, %c0_23, %c0_24] : memref<1x16x16x64xf32, #tpu.memory_space<vmem>>, vector<1x16x16x64xf32>
    %27 = vector.shape_cast %26 : vector<1x16x16x64xf32> to vector<16x16x64xf32>
    %28 = vector.shape_cast %25 : vector<16x16x64xf32> to vector<1x16x16x64xf32>
    tpu.vector_store %arg8[%c0_21, %c0_22, %c0_23, %c0_24], %28 {strides = array<i32>} : memref<1x16x16x64xf32, #tpu.memory_space<vmem>>, vector<1x16x16x64xf32>,
    return
  }
  func.func @transform_0(%arg0: i32) -> (i32, i32, i32) {
    %c0_i32 = arith.constant 0 : i32
    %c0_i32_0 = arith.constant 0 : i32
    %c0_i32_1 = arith.constant 0 : i32
    return %arg0, %c0_i32, %c0_i32_0 : i32, i32, i32
  }
  func.func @transform_1(%arg0: i32) -> (i32, i32, i32, i32) {
    %c0_i32 = arith.constant 0 : i32
    %c0_i32_0 = arith.constant 0 : i32
    %c0_i32_1 = arith.constant 0 : i32
    %c0_i32_2 = arith.constant 0 : i32
    return %arg0, %c0_i32, %c0_i32_0, %c0_i32_1 : i32, i32, i32, i32
  }
  func.func @transform_2(%arg0: i32) -> (i32, i32, i32, i32) {
    %c0_i32 = arith.constant 0 : i32
    %c0_i32_0 = arith.constant 0 : i32
    %c0_i32_1 = arith.constant 0 : i32
    %c0_i32_2 = arith.constant 0 : i32
    return %arg0, %c0_i32, %c0_i32_0, %c0_i32_1 : i32, i32, i32, i32
  }
  func.func @transform_3(%arg0: i32) -> (i32, i32) {
    %c0_i32 = arith.constant 0 : i32
    %c0_i32_0 = arith.constant 0 : i32
    %c0_i32_1 = arith.constant 0 : i32
    return %c0_i32, %c0_i32_0 : i32, i32
  }
  func.func @transform_4(%arg0: i32) -> (i32, i32) {
    %c0_i32 = arith.constant 0 : i32
    %c0_i32_0 = arith.constant 0 : i32
    %c0_i32_1 = arith.constant 0 : i32
    return %c0_i32, %c0_i32_0 : i32, i32
  }
  func.func @transform_5(%arg0: i32) -> (i32, i32) {
    %c0_i32 = arith.constant 0 : i32
    %c0_i32_0 = arith.constant 0 : i32
    %c0_i32_1 = arith.constant 0 : i32
    return %c0_i32, %c0_i32_0 : i32, i32
  }
  func.func @transform_6(%arg0: i32) -> (i32, i32) {
    %c0_i32 = arith.constant 0 : i32
    %c0_i32_0 = arith.constant 0 : i32
    %c0_i32_1 = arith.constant 0 : i32
    return %c0_i32, %c0_i32_0 : i32, i32
  }
  func.func @transform_7(%arg0: i32) -> (i32, i32, i32, i32) {
    %c0_i32 = arith.constant 0 : i32
    %c0_i32_0 = arith.constant 0 : i32
    %c0_i32_1 = arith.constant 0 : i32
    %c0_i32_2 = arith.constant 0 : i32
    return %arg0, %c0_i32, %c0_i32_0, %c0_i32_1 : i32, i32, i32, i32
  }
}

module attributes {stable_mosaic.version = 11 : i64} {
  func.func @_conv3x3_chw_kernel(%arg0: i32, %arg1: memref<1x18x18x64xf32, #tpu.memory_space<vmem>>, %arg2: memref<1x576xf32, #tpu.memory_space<vmem>>, %arg3: memref<1x1xf32, #tpu.memory_space<vmem>>, %arg4: memref<1x1x256xf32, #tpu.memory_space<vmem>>) attributes {dimension_semantics = [#tpu.dimension_semantics<parallel>], iteration_bounds = array<i64: 2>, scalar_prefetch = 0 : i64, scratch_operands = 0 : i64, tpu.core_type = #tpu.core_type<tc>, window_params = [{transform_indices = @transform_0, window_bounds = array<i64: 1, 18, 18, 64>}, {pipeline_mode = #tpu.pipeline_mode<synchronous>, transform_indices = @transform_1, window_bounds = array<i64: 1, 576>}, {pipeline_mode = #tpu.pipeline_mode<synchronous>, transform_indices = @transform_2, window_bounds = array<i64: 1, 1>}, {transform_indices = @transform_3, window_bounds = array<i64: 1, 1, 256>}]} {
    %c0 = arith.constant 0 : index
    %c0_0 = arith.constant 0 : index
    %c0_1 = arith.constant 0 : index
    %c0_2 = arith.constant 0 : index
    %0 = vector.load %arg1[%c0, %c0_0, %c0_1, %c0_2] : memref<1x18x18x64xf32, #tpu.memory_space<vmem>>, vector<1x18x18x64xf32>
    %1 = vector.shape_cast %0 : vector<1x18x18x64xf32> to vector<18x18x64xf32>
    %2 = vector.extract_strided_slice %1 {offsets = [0, 0, 0], sizes = [18, 16, 64], strides = [1, 1, 1]} : vector<18x18x64xf32> to vector<18x16x64xf32>
    %3 = vector.extract_strided_slice %1 {offsets = [0, 1, 0], sizes = [18, 16, 64], strides = [1, 1, 1]} : vector<18x18x64xf32> to vector<18x16x64xf32>
    %4 = vector.extract_strided_slice %1 {offsets = [0, 2, 0], sizes = [18, 16, 64], strides = [1, 1, 1]} : vector<18x18x64xf32> to vector<18x16x64xf32>
    %5 = tpu.concatenate %2, %3, %4 in 2 : vector<18x16x64xf32>, vector<18x16x64xf32>, vector<18x16x64xf32> -> vector<18x16x192xf32>
    %6 = vector.extract_strided_slice %5 {offsets = [0, 0, 0], sizes = [16, 16, 192], strides = [1, 1, 1]} : vector<18x16x192xf32> to vector<16x16x192xf32>
    %7 = vector.extract_strided_slice %5 {offsets = [1, 0, 0], sizes = [16, 16, 192], strides = [1, 1, 1]} : vector<18x16x192xf32> to vector<16x16x192xf32>
    %8 = vector.extract_strided_slice %5 {offsets = [2, 0, 0], sizes = [16, 16, 192], strides = [1, 1, 1]} : vector<18x16x192xf32> to vector<16x16x192xf32>
    %9 = tpu.concatenate %6, %7, %8 in 2 : vector<16x16x192xf32>, vector<16x16x192xf32>, vector<16x16x192xf32> -> vector<16x16x576xf32>
    %10 = vector.shape_cast %9 : vector<16x16x576xf32> to vector<256x576xf32>
    %c0_3 = arith.constant 0 : index
    %c0_4 = arith.constant 0 : index
    %11 = vector.load %arg2[%c0_3, %c0_4] : memref<1x576xf32, #tpu.memory_space<vmem>>, vector<1x576xf32>
    %cst = arith.constant dense<0.000000e+00> : vector<1x256xf32>
    %12 = tpu.matmul %11, %10, %cst {dimension_numbers = #tpu.dot_dimension_numbers<[1], [1], [0], [0], [0, 0, 1, 0], [], []>} : vector<1x576xf32>, vector<256x576xf32>, vector<1x256xf32> -> vector<1x256xf32>
    %c0_5 = arith.constant 0 : index
    %c0_6 = arith.constant 0 : index
    %13 = vector.load %arg3[%c0_5, %c0_6] : memref<1x1xf32, #tpu.memory_space<vmem>>, vector<1x1xf32>
    %14 = vector.broadcast %13 : vector<1x1xf32> to vector<1x256xf32>
    %15 = arith.addf %12, %14 : vector<1x256xf32>
    %16 = arith.negf %15 : vector<1x256xf32>
    %17 = math.exp %16 : vector<1x256xf32>
    %cst_7 = arith.constant 1.000000e+00 : f32
    %18 = vector.broadcast %cst_7 : f32 to vector<1x256xf32>
    %19 = arith.addf %18, %17 : vector<1x256xf32>
    %20 = arith.divf %18, %19 : vector<1x256xf32>
    %c0_8 = arith.constant 0 : index
    %c0_9 = arith.constant 0 : index
    %c0_10 = arith.constant 0 : index
    %21 = vector.load %arg4[%c0_8, %c0_9, %c0_10] : memref<1x1x256xf32, #tpu.memory_space<vmem>>, vector<1x1x256xf32>
    %22 = vector.shape_cast %21 : vector<1x1x256xf32> to vector<1x256xf32>
    %23 = vector.shape_cast %20 : vector<1x256xf32> to vector<1x1x256xf32>
    tpu.vector_store %arg4[%c0_8, %c0_9, %c0_10], %23 {strides = array<i32>} : memref<1x1x256xf32, #tpu.memory_space<vmem>>, vector<1x1x256xf32>,
    return
  }
  func.func @transform_0(%arg0: i32) -> (i32, i32, i32, i32) {
    %c0_i32 = arith.constant 0 : i32
    %c0_i32_0 = arith.constant 0 : i32
    %c0_i32_1 = arith.constant 0 : i32
    %c0_i32_2 = arith.constant 0 : i32
    return %arg0, %c0_i32, %c0_i32_0, %c0_i32_1 : i32, i32, i32, i32
  }
  func.func @transform_1(%arg0: i32) -> (i32, i32) {
    %c0_i32 = arith.constant 0 : i32
    %c0_i32_0 = arith.constant 0 : i32
    %c0_i32_1 = arith.constant 0 : i32
    return %c0_i32, %c0_i32_0 : i32, i32
  }
  func.func @transform_2(%arg0: i32) -> (i32, i32) {
    %c0_i32 = arith.constant 0 : i32
    %c0_i32_0 = arith.constant 0 : i32
    %c0_i32_1 = arith.constant 0 : i32
    return %c0_i32, %c0_i32_0 : i32, i32
  }
  func.func @transform_3(%arg0: i32) -> (i32, i32, i32) {
    %c0_i32 = arith.constant 0 : i32
    %c0_i32_0 = arith.constant 0 : i32
    %c0_i32_1 = arith.constant 0 : i32
    return %arg0, %c0_i32, %c0_i32_0 : i32, i32, i32
  }
}

</mosaic_0001>

<llo_original>
// kernel: dfcan_forward.14
$region0: #{dfcan_forward.14}
  #allocation0 [shape = 'u32[]', space=smem, size = 0x4, offset = 0x4, fixed_abs, tag = 'smem constant byte address 0x4 - core index']
  #allocation1 [shape = 'u32[144,128]{1,0:T(1,128)}', space=vmem, size = 0x12000, scoped, tag = 'internal scratch']
  %s0 = inlined_call_operand.vmem [shape: f32[2,18,18,64], index: 0, kind: input, shape index: {}]
  %s1 = inlined_call_operand.vmem [shape: bf16[576,64], index: 1, kind: input, shape index: {}]
  %s2 = inlined_call_operand.vmem [shape: f32[1,64], index: 2, kind: input, shape index: {}]
  %s3 = inlined_call_operand.vmem [shape: f32[2,16,16,64], index: 3, kind: output, shape index: {}]
  %s4 = sld [smem:[#allocation0]]
  $region45: #{dfcan_forward.14} parent=0
    _
  %s6 = ssub.s32 1, %s4
  %s7 = scalar_select 0, %s6, %s4
  loop: start=0, step=1, limit=4
  $region2: #{dfcan_forward.14} parent=0 // loop_pre_header
    _
  $region3: #{dfcan_forward.14} parent=0 // loop_header
    %s9 = sphi 0, %s13
    %p10 = scmp.ge.s32.totalorder %s9, 4
    %s19 = sphi 0, %s21
    %s22 = sphi 0, %s19
    %s23 = sphi 0, %s22
    %s39 = sphi 0, %s23
    %s43 = sphi 0, %s43
    %s45 = sphi 0, %s43
    %s46 = sphi 0, %s45
    %s60 = sphi 0, %s46
    %s64 = sphi 0, %s64
    %s66 = sphi 0, %s64
    %s67 = sphi 0, %s66
    %s81 = sphi 0, %s67
    %s87 = sphi 0, %s89
    %s90 = sphi 0, %s87
    %s91 = sphi 0, %s90
    %s107 = sphi 0, %s91
  $region4: #{dfcan_forward.14} parent=0 // loop_header_branch
    %12 = sbr.rel (%p10) target = $region8
  $region5: #{dfcan_forward.14} parent=0 // loop_body
    %s14 = ssub.s32 %s9, 1
    %s15 = ssub.s32 %s9, 2
    %s16 = sadd.s32 %s9, 1
    %s17 = ssub.s32 %s9, %s16
    %p18 = scmp.eq.s32.totalorder %s17, 0
    %s20 = sadd.s32 %s19, 1
    %s21 = scalar_select %p18, %s19, %s20
    %p24 = pneg %p18
    %p25 = scmp.eq.s32.totalorder %s9, 1
    %p26 = por %p24, %p25
    %p27 = scmp.ne.s32.totalorder %s19, %s22
    %p28 = scmp.eq.s32.totalorder %s9, 0
    %p29 = por %p27, %p28
    %p30 = scmp.ne.s32.totalorder %s19, %s22
    %p31 = scmp.eq.s32.totalorder %s14, 1
    %p32 = por %p30, %p31
    %p33 = scmp.ne.s32.totalorder %s22, %s23
    %p34 = scmp.eq.s32.totalorder %s14, 0
    %p35 = por %p33, %p34
    %p36 = scmp.ne.s32.totalorder %s22, %s23
    %p37 = scmp.eq.s32.totalorder %s15, 1
    %p38 = por %p36, %p37
    %p40 = scmp.ne.s32.totalorder %s23, %s39
    %p41 = scmp.eq.s32.totalorder %s15, 0
    %p42 = por %p40, %p41
    %s44 = sadd.s32 %s43, 1
    %p47 = scmp.eq.s32.totalorder %s9, 1
    %p48 = scmp.ne.s32.totalorder %s43, %s45
    %p49 = scmp.eq.s32.totalorder %s9, 0
    %p50 = por %p48, %p49
    %p51 = scmp.ne.s32.totalorder %s43, %s45
    %p52 = scmp.eq.s32.totalorder %s14, 1
    %p53 = por %p51, %p52
    %p54 = scmp.ne.s32.totalorder %s45, %s46
    %p55 = scmp.eq.s32.totalorder %s14, 0
    %p56 = por %p54, %p55
    %p57 = scmp.ne.s32.totalorder %s45, %s46
    %p58 = scmp.eq.s32.totalorder %s15, 1
    %p59 = por %p57, %p58
    %p61 = scmp.ne.s32.totalorder %s46, %s60
    %p62 = scmp.eq.s32.totalorder %s15, 0
    %p63 = por %p61, %p62
    %s65 = sadd.s32 %s64, 1
    %p68 = scmp.eq.s32.totalorder %s9, 1
    %p69 = scmp.ne.s32.totalorder %s64, %s66
    %p70 = scmp.eq.s32.totalorder %s9, 0
    %p71 = por %p69, %p70
    %p72 = scmp.ne.s32.totalorder %s64, %s66
    %p73 = scmp.eq.s32.totalorder %s14, 1
    %p74 = por %p72, %p73
    %p75 = scmp.ne.s32.totalorder %s66, %s67
    %p76 = scmp.eq.s32.totalorder %s14, 0
    %p77 = por %p75, %p76
    %p78 = scmp.ne.s32.totalorder %s66, %s67
    %p79 = scmp.eq.s32.totalorder %s15, 1
    %p80 = por %p78, %p79
    %p82 = scmp.ne.s32.totalorder %s67, %s81
    %p83 = scmp.eq.s32.totalorder %s15, 0
    %p84 = por %p82, %p83
    %s85 = ssub.s32 %s9, %s16
    %p86 = scmp.eq.s32.totalorder %s85, 0
    %s88 = sadd.s32 %s87, 1
    %s89 = scalar_select %p86, %s87, %s88
    %p92 = pneg %p86
    %p93 = scmp.eq.s32.totalorder %s9, 1
    %p94 = por %p92, %p93
    %p95 = scmp.ne.s32.totalorder %s87, %s90
    %p96 = scmp.eq.s32.totalorder %s9, 0
    %p97 = por %p95, %p96
    %p98 = scmp.ne.s32.totalorder %s87, %s90
    %p99 = scmp.eq.s32.totalorder %s14, 1
    %p100 = por %p98, %p99
    %p101 = scmp.ne.s32.totalorder %s90, %s91
    %p102 = scmp.eq.s32.totalorder %s14, 0
    %p103 = por %p101, %p102
    %p104 = scmp.ne.s32.totalorder %s90, %s91
    %p105 = scmp.eq.s32.totalorder %s15, 1
    %p106 = por %p104, %p105
    %p108 = scmp.ne.s32.totalorder %s91, %s107
    %p109 = scmp.eq.s32.totalorder %s15, 0
    %p110 = por %p108, %p109
    %p111 = scmp.le.s32.totalorder 1, %s9
    %p112 = scmp.lt.s32.totalorder %s9, 3
    %p113 = pnand %p111, %p112
    %p114 = pneg %p113
    // Predicated region
    $region9: #{dfcan_forward.14} parent=5 // pred_check
      _
    $region10: #{dfcan_forward.14} parent=5 // pred_check_branch
      %116 = sbr.rel (%p113) target = $region12
    $region11: #{dfcan_forward.14} parent=5 // pred_region
      %s117 = ssub.s32 %s9, 1
      // Predicated region
      $region13: #{dfcan_forward.14} parent=11 // pred_check
        %p118 = pneg %p56
      $region14: #{dfcan_forward.14} parent=11 // pred_check_branch
        %120 = sbr.rel (%p118) target = $region16
      $region15: #{dfcan_forward.14} parent=11 // pred_region
        _
      $region16: #{dfcan_forward.14} parent=11 // pred_fallthru
        _
      // Predicated region
      $region17: #{dfcan_forward.14} parent=11 // pred_check
        %p121 = pneg %p77
      $region18: #{dfcan_forward.14} parent=11 // pred_check_branch
        %123 = sbr.rel (%p121) target = $region20
      $region19: #{dfcan_forward.14} parent=11 // pred_region
        _
      $region20: #{dfcan_forward.14} parent=11 // pred_fallthru
        _
    $region12: #{dfcan_forward.14} parent=5 // pred_fallthru
      _
    %p124 = scmp.lt.s32.totalorder %s9, 2
    // Predicated region
    $region21: #{dfcan_forward.14} parent=5 // pred_check
      %p125 = pneg %p124
    $region22: #{dfcan_forward.14} parent=5 // pred_check_branch
      %127 = sbr.rel (%p125) target = $region24
    $region23: #{dfcan_forward.14} parent=5 // pred_region
      // Predicated region
      $region25: #{dfcan_forward.14} parent=23 // pred_check
        %p128 = pneg %p29
      $region26: #{dfcan_forward.14} parent=23 // pred_check_branch
        %130 = sbr.rel (%p128) target = $region28
      $region27: #{dfcan_forward.14} parent=23 // pred_region
        %p131 = scmp.lt.s32.totalorder %s9, 1
        %s132 = scalar_select %p131, %s9, 1
        %s133 = smul.addr %s132, 54
        %s134 = smul.addr %s133, 8
        %s135 = scalar_lea.vmem %s0, %s134
      $region28: #{dfcan_forward.14} parent=23 // pred_fallthru
        _
    $region24: #{dfcan_forward.14} parent=5 // pred_fallthru
      _
    %p136 = scmp.le.s32.totalorder 1, %s9
    %p137 = scmp.lt.s32.totalorder %s9, 3
    %p138 = pnand %p136, %p137
    %p139 = pneg %p138
    // Predicated region
    $region29: #{dfcan_forward.14} parent=5 // pred_check
      _
    $region30: #{dfcan_forward.14} parent=5 // pred_check_branch
      %141 = sbr.rel (%p138) target = $region32
    $region31: #{dfcan_forward.14} parent=5 // pred_region
      %s142 = ssub.s32 %s9, 1
      %p143 = scmp.lt.s32.totalorder %s14, 1
      %s144 = scalar_select %p143, %s14, 1
      %s145 = smul.addr %s144, 54
      %s146 = smul.addr %s145, 8
      %s147 = scalar_lea.vmem %s0, %s146
      %p148 = pneg %p35
      %p149 = pneg %p32
      %p150 = pneg %p56
      %p151 = pneg %p53
      %p152 = pneg %p77
      %p153 = pneg %p74
      %p154 = pneg %p103
      %p155 = pneg %p100
      %p156 = scmp.lt.s32.totalorder %s14, 1
      %s157 = scalar_select %p156, %s14, 1
      %s158 = smul.addr %s157, 32
      %s159 = smul.addr %s158, 8
      %s160 = scalar_lea.vmem %s3, %s159
      %p161 = scmp.lt.s32.totalorder %s14, 1
      %s162 = scalar_select %p161, %s14, 1
      %s163 = smul.addr %s162, 54
      %s164 = smul.addr %s163, 8
      %s165 = scalar_lea.vmem %s0, %s164
      %p166 = scmp.lt.s32.totalorder %s14, 1
      %s167 = scalar_select %p166, %s14, 1
      %s168 = smul.addr %s167, 32
      %s169 = smul.addr %s168, 8
      %s170 = scalar_lea.vmem %s3, %s169
      %v172 = vld [vmem:[%s165] sm:$0xff]
      %v173 = vld [vmem:[%s165 + $0x8] sm:$0xff]
      %v174 = vld [vmem:[%s165 + $0x10] sm:$0x3]
      %v175 = vld [vmem:[%s165 + $0x18] sm:$0xff]
      %v176 = vld [vmem:[%s165 + $0x20] sm:$0xff]
      %v177 = vld [vmem:[%s165 + $0x28] sm:$0x3]
      %v178 = vld [vmem:[%s165 + $0x30] sm:$0xff]
      %v179 = vld [vmem:[%s165 + $0x38] sm:$0xff]
      %v180 = vld [vmem:[%s165 + $0x40] sm:$0x3]
      %v181 = vld [vmem:[%s165 + $0x48] sm:$0xff]
      %v182 = vld [vmem:[%s165 + $0x50] sm:$0xff]
      %v183 = vld [vmem:[%s165 + $0x58] sm:$0x3]
      %v184 = vld [vmem:[%s165 + $0x60] sm:$0xff]
      %v185 = vld [vmem:[%s165 + $0x68] sm:$0xff]
      %v186 = vld [vmem:[%s165 + $0x70] sm:$0x3]
      %v187 = vld [vmem:[%s165 + $0x78] sm:$0xff]
      %v188 = vld [vmem:[%s165 + $0x80] sm:$0xff]
      %v189 = vld [vmem:[%s165 + $0x88] sm:$0x3]
      %v190 = vld [vmem:[%s165 + $0x90] sm:$0xff]
      %v191 = vld [vmem:[%s165 + $0x98] sm:$0xff]
      %v192 = vld [vmem:[%s165 + $0xa0] sm:$0x3]
      %v193 = vld [vmem:[%s165 + $0xa8] sm:$0xff]
      %v194 = vld [vmem:[%s165 + $0xb0] sm:$0xff]
      %v195 = vld [vmem:[%s165 + $0xb8] sm:$0x3]
      %v196 = vld [vmem:[%s165 + $0xc0] sm:$0xff]
      %v197 = vld [vmem:[%s165 + $0xc8] sm:$0xff]
      %v198 = vld [vmem:[%s165 + $0xd0] sm:$0x3]
      %v199 = vld [vmem:[%s165 + $0xd8] sm:$0xff]
      %v200 = vld [vmem:[%s165 + $0xe0] sm:$0xff]
      %v201 = vld [vmem:[%s165 + $0xe8] sm:$0x3]
      %v202 = vld [vmem:[%s165 + $0xf0] sm:$0xff]
      %v203 = vld [vmem:[%s165 + $0xf8] sm:$0xff]
      %v204 = vld [vmem:[%s165 + $0x100] sm:$0x3]
      %v205 = vld [vmem:[%s165 + $0x108] sm:$0xff]
      %v206 = vld [vmem:[%s165 + $0x110] sm:$0xff]
      %v207 = vld [vmem:[%s165 + $0x118] sm:$0x3]
      %v208 = vld [vmem:[%s165 + $0x120] sm:$0xff]
      %v209 = vld [vmem:[%s165 + $0x128] sm:$0xff]
      %v210 = vld [vmem:[%s165 + $0x130] sm:$0x3]
      %v211 = vld [vmem:[%s165 + $0x138] sm:$0xff]
      %v212 = vld [vmem:[%s165 + $0x140] sm:$0xff]
      %v213 = vld [vmem:[%s165 + $0x148] sm:$0x3]
      %v214 = vld [vmem:[%s165 + $0x150] sm:$0xff]
      %v215 = vld [vmem:[%s165 + $0x158] sm:$0xff]
      %v216 = vld [vmem:[%s165 + $0x160] sm:$0x3]
      %v217 = vld [vmem:[%s165 + $0x168] sm:$0xff]
      %v218 = vld [vmem:[%s165 + $0x170] sm:$0xff]
      %v219 = vld [vmem:[%s165 + $0x178] sm:$0x3]
      %v220 = vld [vmem:[%s165 + $0x180] sm:$0xff]
      %v221 = vld [vmem:[%s165 + $0x188] sm:$0xff]
      %v222 = vld [vmem:[%s165 + $0x190] sm:$0x3]
      %v223 = vld [vmem:[%s165 + $0x198] sm:$0xff]
      %v224 = vld [vmem:[%s165 + $0x1a0] sm:$0xff]
      %v225 = vld [vmem:[%s165 + $0x1a8] sm:$0x3]
      %vm280 = vcmask 1046528
      %v281 = vrot.slane %v172, 1
      %v282 = vrot.slane %v173, 1
      %v283 = vsel %vm280, %v281, %v282
      %v284 = vrot.slane %v174, 1
      %v285 = vsel %vm280, %v282, %v284
      %v286 = vrot.slane %v175, 1
      %v287 = vrot.slane %v176, 1
      %v288 = vsel %vm280, %v286, %v287
      %v289 = vrot.slane %v177, 1
      %v290 = vsel %vm280, %v287, %v289
      %v291 = vrot.slane %v178, 1
      %v292 = vrot.slane %v179, 1
      %v293 = vsel %vm280, %v291, %v292
      %v294 = vrot.slane %v180, 1
      %v295 = vsel %vm280, %v292, %v294
      %v296 = vrot.slane %v181, 1
      %v297 = vrot.slane %v182, 1
      %v298 = vsel %vm280, %v296, %v297
      %v299 = vrot.slane %v183, 1
      %v300 = vsel %vm280, %v297, %v299
      %v301 = vrot.slane %v184, 1
      %v302 = vrot.slane %v185, 1
      %v303 = vsel %vm280, %v301, %v302
      %v304 = vrot.slane %v186, 1
      %v305 = vsel %vm280, %v302, %v304
      %v306 = vrot.slane %v187, 1
      %v307 = vrot.slane %v188, 1
      %v308 = vsel %vm280, %v306, %v307
      %v309 = vrot.slane %v189, 1
      %v310 = vsel %vm280, %v307, %v309
      %v311 = vrot.slane %v190, 1
      %v312 = vrot.slane %v191, 1
      %v313 = vsel %vm280, %v311, %v312
      %v314 = vrot.slane %v192, 1
      %v315 = vsel %vm280, %v312, %v314
      %v316 = vrot.slane %v193, 1
      %v317 = vrot.slane %v194, 1
      %v318 = vsel %vm280, %v316, %v317
      %v319 = vrot.slane %v195, 1
      %v320 = vsel %vm280, %v317, %v319
      %v321 = vrot.slane %v196, 1
      %v322 = vrot.slane %v197, 1
      %v323 = vsel %vm280, %v321, %v322
      %v324 = vrot.slane %v198, 1
      %v325 = vsel %vm280, %v322, %v324
      %v326 = vrot.slane %v199, 1
      %v327 = vrot.slane %v200, 1
      %v328 = vsel %vm280, %v326, %v327
      %v329 = vrot.slane %v201, 1
      %v330 = vsel %vm280, %v327, %v329
      %v331 = vrot.slane %v202, 1
      %v332 = vrot.slane %v203, 1
      %v333 = vsel %vm280, %v331, %v332
      %v334 = vrot.slane %v204, 1
      %v335 = vsel %vm280, %v332, %v334
      %v336 = vrot.slane %v205, 1
      %v337 = vrot.slane %v206, 1
      %v338 = vsel %vm280, %v336, %v337
      %v339 = vrot.slane %v207, 1
      %v340 = vsel %vm280, %v337, %v339
      %v341 = vrot.slane %v208, 1
      %v342 = vrot.slane %v209, 1
      %v343 = vsel %vm280, %v341, %v342
      %v344 = vrot.slane %v210, 1
      %v345 = vsel %vm280, %v342, %v344
      %v346 = vrot.slane %v211, 1
      %v347 = vrot.slane %v212, 1
      %v348 = vsel %vm280, %v346, %v347
      %v349 = vrot.slane %v213, 1
      %v350 = vsel %vm280, %v347, %v349
      %v351 = vrot.slane %v214, 1
      %v352 = vrot.slane %v215, 1
      %v353 = vsel %vm280, %v351, %v352
      %v354 = vrot.slane %v216, 1
      %v355 = vsel %vm280, %v352, %v354
      %v356 = vrot.slane %v217, 1
      %v357 = vrot.slane %v218, 1
      %v358 = vsel %vm280, %v356, %v357
      %v359 = vrot.slane %v219, 1
      %v360 = vsel %vm280, %v357, %v359
      %v361 = vrot.slane %v220, 1
      %v362 = vrot.slane %v221, 1
      %v363 = vsel %vm280, %v361, %v362
      %v364 = vrot.slane %v222, 1
      %v365 = vsel %vm280, %v362, %v364
      %v366 = vrot.slane %v223, 1
      %v367 = vrot.slane %v224, 1
      %v368 = vsel %vm280, %v366, %v367
      %v369 = vrot.slane %v225, 1
      %v370 = vsel %vm280, %v367, %v369
      %371 = vrot.lane.b32.xlu0 %v283, 64
      %v372 = vpop.permute.xlu0 %371
      %373 = vrot.lane.b32.xlu0 %v285, 64
      %v374 = vpop.permute.xlu0 %373
      %375 = vrot.lane.b32.xlu0 %v288, 64
      %v376 = vpop.permute.xlu0 %375
      %377 = vrot.lane.b32.xlu0 %v290, 64
      %v378 = vpop.permute.xlu0 %377
      %379 = vrot.lane.b32.xlu0 %v293, 64
      %v380 = vpop.permute.xlu0 %379
      %381 = vrot.lane.b32.xlu0 %v295, 64
      %v382 = vpop.permute.xlu0 %381
      %383 = vrot.lane.b32.xlu0 %v298, 64
      %v384 = vpop.permute.xlu0 %383
      %385 = vrot.lane.b32.xlu0 %v300, 64
      %v386 = vpop.permute.xlu0 %385
      %387 = vrot.lane.b32.xlu0 %v303, 64
      %v388 = vpop.permute.xlu0 %387
      %389 = vrot.lane.b32.xlu0 %v305, 64
      %v390 = vpop.permute.xlu0 %389
      %391 = vrot.lane.b32.xlu0 %v308, 64
      %v392 = vpop.permute.xlu0 %391
      %393 = vrot.lane.b32.xlu0 %v310, 64
      %v394 = vpop.permute.xlu0 %393
      %395 = vrot.lane.b32.xlu0 %v313, 64
      %v396 = vpop.permute.xlu0 %395
      %397 = vrot.lane.b32.xlu0 %v315, 64
      %v398 = vpop.permute.xlu0 %397
      %399 = vrot.lane.b32.xlu0 %v318, 64
      %v400 = vpop.permute.xlu0 %399
      %401 = vrot.lane.b32.xlu0 %v320, 64
      %v402 = vpop.permute.xlu0 %401
      %403 = vrot.lane.b32.xlu0 %v323, 64
      %v404 = vpop.permute.xlu0 %403
      %405 = vrot.lane.b32.xlu0 %v325, 64
      %v406 = vpop.permute.xlu0 %405
      %407 = vrot.lane.b32.xlu0 %v328, 64
      %v408 = vpop.permute.xlu0 %407
      %409 = vrot.lane.b32.xlu0 %v330, 64
      %v410 = vpop.permute.xlu0 %409
      %411 = vrot.lane.b32.xlu0 %v333, 64
      %v412 = vpop.permute.xlu0 %411
      %413 = vrot.lane.b32.xlu0 %v335, 64
      %v414 = vpop.permute.xlu0 %413
      %415 = vrot.lane.b32.xlu0 %v338, 64
      %v416 = vpop.permute.xlu0 %415
      %417 = vrot.lane.b32.xlu0 %v340, 64
      %v418 = vpop.permute.xlu0 %417
      %419 = vrot.lane.b32.xlu0 %v343, 64
      %v420 = vpop.permute.xlu0 %419
      %421 = vrot.lane.b32.xlu0 %v345, 64
      %v422 = vpop.permute.xlu0 %421
      %423 = vrot.lane.b32.xlu0 %v348, 64
      %v424 = vpop.permute.xlu0 %423
      %425 = vrot.lane.b32.xlu0 %v350, 64
      %v426 = vpop.permute.xlu0 %425
      %427 = vrot.lane.b32.xlu0 %v353, 64
      %v428 = vpop.permute.xlu0 %427
      %429 = vrot.lane.b32.xlu0 %v355, 64
      %v430 = vpop.permute.xlu0 %429
      %431 = vrot.lane.b32.xlu0 %v358, 64
      %v432 = vpop.permute.xlu0 %431
      %433 = vrot.lane.b32.xlu0 %v360, 64
      %v434 = vpop.permute.xlu0 %433
      %435 = vrot.lane.b32.xlu0 %v363, 64
      %v436 = vpop.permute.xlu0 %435
      %437 = vrot.lane.b32.xlu0 %v365, 64
      %v438 = vpop.permute.xlu0 %437
      %439 = vrot.lane.b32.xlu0 %v368, 64
      %v440 = vpop.permute.xlu0 %439
      %441 = vrot.lane.b32.xlu0 %v370, 64
      %v442 = vpop.permute.xlu0 %441
      %vm479 = vcmask 1045504
      %v480 = vrot.slane %v172, 2
      %v481 = vrot.slane %v173, 2
      %v482 = vsel %vm479, %v480, %v481
      %v483 = vrot.slane %v174, 2
      %v484 = vsel %vm479, %v481, %v483
      %v485 = vrot.slane %v175, 2
      %v486 = vrot.slane %v176, 2
      %v487 = vsel %vm479, %v485, %v486
      %v488 = vrot.slane %v177, 2
      %v489 = vsel %vm479, %v486, %v488
      %v490 = vrot.slane %v178, 2
      %v491 = vrot.slane %v179, 2
      %v492 = vsel %vm479, %v490, %v491
      %v493 = vrot.slane %v180, 2
      %v494 = vsel %vm479, %v491, %v493
      %v495 = vrot.slane %v181, 2
      %v496 = vrot.slane %v182, 2
      %v497 = vsel %vm479, %v495, %v496
      %v498 = vrot.slane %v183, 2
      %v499 = vsel %vm479, %v496, %v498
      %v500 = vrot.slane %v184, 2
      %v501 = vrot.slane %v185, 2
      %v502 = vsel %vm479, %v500, %v501
      %v503 = vrot.slane %v186, 2
      %v504 = vsel %vm479, %v501, %v503
      %v505 = vrot.slane %v187, 2
      %v506 = vrot.slane %v188, 2
      %v507 = vsel %vm479, %v505, %v506
      %v508 = vrot.slane %v189, 2
      %v509 = vsel %vm479, %v506, %v508
      %v510 = vrot.slane %v190, 2
      %v511 = vrot.slane %v191, 2
      %v512 = vsel %vm479, %v510, %v511
      %v513 = vrot.slane %v192, 2
      %v514 = vsel %vm479, %v511, %v513
      %v515 = vrot.slane %v193, 2
      %v516 = vrot.slane %v194, 2
      %v517 = vsel %vm479, %v515, %v516
      %v518 = vrot.slane %v195, 2
      %v519 = vsel %vm479, %v516, %v518
      %v520 = vrot.slane %v196, 2
      %v521 = vrot.slane %v197, 2
      %v522 = vsel %vm479, %v520, %v521
      %v523 = vrot.slane %v198, 2
      %v524 = vsel %vm479, %v521, %v523
      %v525 = vrot.slane %v199, 2
      %v526 = vrot.slane %v200, 2
      %v527 = vsel %vm479, %v525, %v526
      %v528 = vrot.slane %v201, 2
      %v529 = vsel %vm479, %v526, %v528
      %v530 = vrot.slane %v202, 2
      %v531 = vrot.slane %v203, 2
      %v532 = vsel %vm479, %v530, %v531
      %v533 = vrot.slane %v204, 2
      %v534 = vsel %vm479, %v531, %v533
      %v535 = vrot.slane %v205, 2
      %v536 = vrot.slane %v206, 2
      %v537 = vsel %vm479, %v535, %v536
      %v538 = vrot.slane %v207, 2
      %v539 = vsel %vm479, %v536, %v538
      %v540 = vrot.slane %v208, 2
      %v541 = vrot.slane %v209, 2
      %v542 = vsel %vm479, %v540, %v541
      %v543 = vrot.slane %v210, 2
      %v544 = vsel %vm479, %v541, %v543
      %v545 = vrot.slane %v211, 2
      %v546 = vrot.slane %v212, 2
      %v547 = vsel %vm479, %v545, %v546
      %v548 = vrot.slane %v213, 2
      %v549 = vsel %vm479, %v546, %v548
      %v550 = vrot.slane %v214, 2
      %v551 = vrot.slane %v215, 2
      %v552 = vsel %vm479, %v550, %v551
      %v553 = vrot.slane %v216, 2
      %v554 = vsel %vm479, %v551, %v553
      %v555 = vrot.slane %v217, 2
      %v556 = vrot.slane %v218, 2
      %v557 = vsel %vm479, %v555, %v556
      %v558 = vrot.slane %v219, 2
      %v559 = vsel %vm479, %v556, %v558
      %v560 = vrot.slane %v220, 2
      %v561 = vrot.slane %v221, 2
      %v562 = vsel %vm479, %v560, %v561
      %v563 = vrot.slane %v222, 2
      %v564 = vsel %vm479, %v561, %v563
      %v565 = vrot.slane %v223, 2
      %v566 = vrot.slane %v224, 2
      %v567 = vsel %vm479, %v565, %v566
      %v568 = vrot.slane %v225, 2
      %v569 = vsel %vm479, %v566, %v568
      %vm606 = vcmask 523264
      %v607 = vsel %vm606, %v172, %v372
      %v608 = vsel %vm606, %v173, %v374
      %v609 = vsel %vm606, %v175, %v376
      %v610 = vsel %vm606, %v176, %v378
      %v611 = vsel %vm606, %v178, %v380
      %v612 = vsel %vm606, %v179, %v382
      %v613 = vsel %vm606, %v181, %v384
      %v614 = vsel %vm606, %v182, %v386
      %v615 = vsel %vm606, %v184, %v388
      %v616 = vsel %vm606, %v185, %v390
      %v617 = vsel %vm606, %v187, %v392
      %v618 = vsel %vm606, %v188, %v394
      %v619 = vsel %vm606, %v190, %v396
      %v620 = vsel %vm606, %v191, %v398
      %v621 = vsel %vm606, %v193, %v400
      %v622 = vsel %vm606, %v194, %v402
      %v623 = vsel %vm606, %v196, %v404
      %v624 = vsel %vm606, %v197, %v406
      %v625 = vsel %vm606, %v199, %v408
      %v626 = vsel %vm606, %v200, %v410
      %v627 = vsel %vm606, %v202, %v412
      %v628 = vsel %vm606, %v203, %v414
      %v629 = vsel %vm606, %v205, %v416
      %v630 = vsel %vm606, %v206, %v418
      %v631 = vsel %vm606, %v208, %v420
      %v632 = vsel %vm606, %v209, %v422
      %v633 = vsel %vm606, %v211, %v424
      %v634 = vsel %vm606, %v212, %v426
      %v635 = vsel %vm606, %v214, %v428
      %v636 = vsel %vm606, %v215, %v430
      %v637 = vsel %vm606, %v217, %v432
      %v638 = vsel %vm606, %v218, %v434
      %v639 = vsel %vm606, %v220, %v436
      %v640 = vsel %vm606, %v221, %v438
      %v641 = vsel %vm606, %v223, %v440
      %v642 = vsel %vm606, %v224, %v442
      %675 = vrot.lane.b32.xlu0 %v609, 64
      %v676 = vpop.permute.xlu0 %675
      %677 = vrot.lane.b32.xlu0 %v487, 64
      %v678 = vpop.permute.xlu0 %677
      %679 = vrot.lane.b32.xlu0 %v610, 64
      %v680 = vpop.permute.xlu0 %679
      %681 = vrot.lane.b32.xlu0 %v489, 64
      %v682 = vpop.permute.xlu0 %681
      %683 = vrot.lane.b32.xlu0 %v611, 64
      %v684 = vpop.permute.xlu0 %683
      %685 = vrot.lane.b32.xlu0 %v492, 64
      %v686 = vpop.permute.xlu0 %685
      %687 = vrot.lane.b32.xlu0 %v612, 64
      %v688 = vpop.permute.xlu0 %687
      %689 = vrot.lane.b32.xlu0 %v494, 64
      %v690 = vpop.permute.xlu0 %689
      %691 = vrot.lane.b32.xlu0 %v613, 64
      %v692 = vpop.permute.xlu0 %691
      %693 = vrot.lane.b32.xlu0 %v497, 64
      %v694 = vpop.permute.xlu0 %693
      %695 = vrot.lane.b32.xlu0 %v614, 64
      %v696 = vpop.permute.xlu0 %695
      %697 = vrot.lane.b32.xlu0 %v499, 64
      %v698 = vpop.permute.xlu0 %697
      %699 = vrot.lane.b32.xlu0 %v615, 64
      %v700 = vpop.permute.xlu0 %699
      %701 = vrot.lane.b32.xlu0 %v502, 64
      %v702 = vpop.permute.xlu0 %701
      %703 = vrot.lane.b32.xlu0 %v616, 64
      %v704 = vpop.permute.xlu0 %703
      %705 = vrot.lane.b32.xlu0 %v504, 64
      %v706 = vpop.permute.xlu0 %705
      %707 = vrot.lane.b32.xlu0 %v617, 64
      %v708 = vpop.permute.xlu0 %707
      %709 = vrot.lane.b32.xlu0 %v507, 64
      %v710 = vpop.permute.xlu0 %709
      %711 = vrot.lane.b32.xlu0 %v618, 64
      %v712 = vpop.permute.xlu0 %711
      %713 = vrot.lane.b32.xlu0 %v509, 64
      %v714 = vpop.permute.xlu0 %713
      %715 = vrot.lane.b32.xlu0 %v619, 64
      %v716 = vpop.permute.xlu0 %715
      %717 = vrot.lane.b32.xlu0 %v512, 64
      %v718 = vpop.permute.xlu0 %717
      %719 = vrot.lane.b32.xlu0 %v620, 64
      %v720 = vpop.permute.xlu0 %719
      %721 = vrot.lane.b32.xlu0 %v514, 64
      %v722 = vpop.permute.xlu0 %721
      %723 = vrot.lane.b32.xlu0 %v621, 64
      %v724 = vpop.permute.xlu0 %723
      %725 = vrot.lane.b32.xlu0 %v517, 64
      %v726 = vpop.permute.xlu0 %725
      %727 = vrot.lane.b32.xlu0 %v622, 64
      %v728 = vpop.permute.xlu0 %727
      %729 = vrot.lane.b32.xlu0 %v519, 64
      %v730 = vpop.permute.xlu0 %729
      %731 = vrot.lane.b32.xlu0 %v623, 64
      %v732 = vpop.permute.xlu0 %731
      %733 = vrot.lane.b32.xlu0 %v522, 64
      %v734 = vpop.permute.xlu0 %733
      %735 = vrot.lane.b32.xlu0 %v624, 64
      %v736 = vpop.permute.xlu0 %735
      %737 = vrot.lane.b32.xlu0 %v524, 64
      %v738 = vpop.permute.xlu0 %737
      %739 = vrot.lane.b32.xlu0 %v625, 64
      %v740 = vpop.permute.xlu0 %739
      %741 = vrot.lane.b32.xlu0 %v527, 64
      %v742 = vpop.permute.xlu0 %741
      %743 = vrot.lane.b32.xlu0 %v626, 64
      %v744 = vpop.permute.xlu0 %743
      %745 = vrot.lane.b32.xlu0 %v529, 64
      %v746 = vpop.permute.xlu0 %745
      %747 = vrot.lane.b32.xlu0 %v627, 64
      %v748 = vpop.permute.xlu0 %747
      %749 = vrot.lane.b32.xlu0 %v532, 64
      %v750 = vpop.permute.xlu0 %749
      %751 = vrot.lane.b32.xlu0 %v628, 64
      %v752 = vpop.permute.xlu0 %751
      %753 = vrot.lane.b32.xlu0 %v534, 64
      %v754 = vpop.permute.xlu0 %753
      %755 = vrot.lane.b32.xlu0 %v629, 64
      %v756 = vpop.permute.xlu0 %755
      %757 = vrot.lane.b32.xlu0 %v537, 64
      %v758 = vpop.permute.xlu0 %757
      %759 = vrot.lane.b32.xlu0 %v630, 64
      %v760 = vpop.permute.xlu0 %759
      %761 = vrot.lane.b32.xlu0 %v539, 64
      %v762 = vpop.permute.xlu0 %761
      %763 = vrot.lane.b32.xlu0 %v631, 64
      %v764 = vpop.permute.xlu0 %763
      %765 = vrot.lane.b32.xlu0 %v542, 64
      %v766 = vpop.permute.xlu0 %765
      %767 = vrot.lane.b32.xlu0 %v632, 64
      %v768 = vpop.permute.xlu0 %767
      %769 = vrot.lane.b32.xlu0 %v544, 64
      %v770 = vpop.permute.xlu0 %769
      %771 = vrot.lane.b32.xlu0 %v633, 64
      %v772 = vpop.permute.xlu0 %771
      %773 = vrot.lane.b32.xlu0 %v547, 64
      %v774 = vpop.permute.xlu0 %773
      %775 = vrot.lane.b32.xlu0 %v634, 64
      %v776 = vpop.permute.xlu0 %775
      %777 = vrot.lane.b32.xlu0 %v549, 64
      %v778 = vpop.permute.xlu0 %777
      %779 = vrot.lane.b32.xlu0 %v635, 64
      %v780 = vpop.permute.xlu0 %779
      %781 = vrot.lane.b32.xlu0 %v552, 64
      %v782 = vpop.permute.xlu0 %781
      %783 = vrot.lane.b32.xlu0 %v636, 64
      %v784 = vpop.permute.xlu0 %783
      %785 = vrot.lane.b32.xlu0 %v554, 64
      %v786 = vpop.permute.xlu0 %785
      %787 = vrot.lane.b32.xlu0 %v637, 64
      %v788 = vpop.permute.xlu0 %787
      %789 = vrot.lane.b32.xlu0 %v557, 64
      %v790 = vpop.permute.xlu0 %789
      %791 = vrot.lane.b32.xlu0 %v638, 64
      %v792 = vpop.permute.xlu0 %791
      %793 = vrot.lane.b32.xlu0 %v559, 64
      %v794 = vpop.permute.xlu0 %793
      %795 = vrot.lane.b32.xlu0 %v639, 64
      %v796 = vpop.permute.xlu0 %795
      %797 = vrot.lane.b32.xlu0 %v562, 64
      %v798 = vpop.permute.xlu0 %797
      %799 = vrot.lane.b32.xlu0 %v640, 64
      %v800 = vpop.permute.xlu0 %799
      %801 = vrot.lane.b32.xlu0 %v564, 64
      %v802 = vpop.permute.xlu0 %801
      %v803 = vsel %vm606, %v676, %v678
      %v804 = vsel %vm606, %v680, %v682
      %v805 = vsel %vm606, %v684, %v686
      %v806 = vsel %vm606, %v688, %v690
      %v807 = vsel %vm606, %v692, %v694
      %v808 = vsel %vm606, %v696, %v698
      %v809 = vsel %vm606, %v700, %v702
      %v810 = vsel %vm606, %v704, %v706
      %v811 = vsel %vm606, %v708, %v710
      %v812 = vsel %vm606, %v712, %v714
      %v813 = vsel %vm606, %v716, %v718
      %v814 = vsel %vm606, %v720, %v722
      %v815 = vsel %vm606, %v724, %v726
      %v816 = vsel %vm606, %v728, %v730
      %v817 = vsel %vm606, %v732, %v734
      %v818 = vsel %vm606, %v736, %v738
      %v819 = vsel %vm606, %v740, %v742
      %v820 = vsel %vm606, %v744, %v746
      %v821 = vsel %vm606, %v748, %v750
      %v822 = vsel %vm606, %v752, %v754
      %v823 = vsel %vm606, %v756, %v758
      %v824 = vsel %vm606, %v760, %v762
      %v825 = vsel %vm606, %v764, %v766
      %v826 = vsel %vm606, %v768, %v770
      %v827 = vsel %vm606, %v772, %v774
      %v828 = vsel %vm606, %v776, %v778
      %v829 = vsel %vm606, %v780, %v782
      %v830 = vsel %vm606, %v784, %v786
      %v831 = vsel %vm606, %v788, %v790
      %v832 = vsel %vm606, %v792, %v794
      %v833 = vsel %vm606, %v796, %v798
      %v834 = vsel %vm606, %v800, %v802
      %v899 = vsel %vm606, %v482, %v676
      %v900 = vsel %vm606, %v484, %v680
      %v901 = vsel %vm606, %v487, %v684
      %v902 = vsel %vm606, %v489, %v688
      %v903 = vsel %vm606, %v492, %v692
      %v904 = vsel %vm606, %v494, %v696
      %v905 = vsel %vm606, %v497, %v700
      %v906 = vsel %vm606, %v499, %v704
      %v907 = vsel %vm606, %v502, %v708
      %v908 = vsel %vm606, %v504, %v712
      %v909 = vsel %vm606, %v507, %v716
      %v910 = vsel %vm606, %v509, %v720
      %v911 = vsel %vm606, %v512, %v724
      %v912 = vsel %vm606, %v514, %v728
      %v913 = vsel %vm606, %v517, %v732
      %v914 = vsel %vm606, %v519, %v736
      %v915 = vsel %vm606, %v522, %v740
      %v916 = vsel %vm606, %v524, %v744
      %v917 = vsel %vm606, %v527, %v748
      %v918 = vsel %vm606, %v529, %v752
      %v919 = vsel %vm606, %v532, %v756
      %v920 = vsel %vm606, %v534, %v760
      %v921 = vsel %vm606, %v537, %v764
      %v922 = vsel %vm606, %v539, %v768
      %v923 = vsel %vm606, %v542, %v772
      %v924 = vsel %vm606, %v544, %v776
      %v925 = vsel %vm606, %v547, %v780
      %v926 = vsel %vm606, %v549, %v784
      %v927 = vsel %vm606, %v552, %v788
      %v928 = vsel %vm606, %v554, %v792
      %v929 = vsel %vm606, %v557, %v796
      %v930 = vsel %vm606, %v559, %v800
      %v931 = vpack.c.bf16 %v608, %v607
      %v932 = vpack.c.bf16 %v900, %v899
      %v933 = vpack.c.bf16 %v804, %v803
      %v934 = vpack.c.bf16 %v612, %v611
      %v935 = vpack.c.bf16 %v494, %v492
      %v936 = vpack.c.bf16 %v610, %v609
      %v937 = vpack.c.bf16 %v902, %v901
      %v938 = vpack.c.bf16 %v806, %v805
      %v939 = vpack.c.bf16 %v614, %v613
      %v940 = vpack.c.bf16 %v499, %v497
      %v941 = vpack.c.bf16 %v904, %v903
      %v942 = vpack.c.bf16 %v808, %v807
      %v943 = vpack.c.bf16 %v616, %v615
      %v944 = vpack.c.bf16 %v504, %v502
      %v945 = vpack.c.bf16 %v906, %v905
      %v946 = vpack.c.bf16 %v810, %v809
      %v947 = vpack.c.bf16 %v618, %v617
      %v948 = vpack.c.bf16 %v509, %v507
      %v949 = vpack.c.bf16 %v908, %v907
      %v950 = vpack.c.bf16 %v812, %v811
      %v951 = vpack.c.bf16 %v620, %v619
      %v952 = vpack.c.bf16 %v514, %v512
      %v953 = vpack.c.bf16 %v910, %v909
      %v954 = vpack.c.bf16 %v814, %v813
      %v955 = vpack.c.bf16 %v622, %v621
      %v956 = vpack.c.bf16 %v519, %v517
      %v957 = vpack.c.bf16 %v912, %v911
      %v958 = vpack.c.bf16 %v816, %v815
      %v959 = vpack.c.bf16 %v624, %v623
      %v960 = vpack.c.bf16 %v524, %v522
      %v961 = vpack.c.bf16 %v914, %v913
      %v962 = vpack.c.bf16 %v818, %v817
      %v963 = vpack.c.bf16 %v626, %v625
      %v964 = vpack.c.bf16 %v529, %v527
      %v965 = vpack.c.bf16 %v916, %v915
      %v966 = vpack.c.bf16 %v820, %v819
      %v967 = vpack.c.bf16 %v628, %v627
      %v968 = vpack.c.bf16 %v534, %v532
      %v969 = vpack.c.bf16 %v918, %v917
      %v970 = vpack.c.bf16 %v822, %v821
      %v971 = vpack.c.bf16 %v630, %v629
      %v972 = vpack.c.bf16 %v539, %v537
      %v973 = vpack.c.bf16 %v920, %v919
      %v974 = vpack.c.bf16 %v824, %v823
      %v975 = vpack.c.bf16 %v632, %v631
      %v976 = vpack.c.bf16 %v544, %v542
      %v977 = vpack.c.bf16 %v922, %v921
      %v978 = vpack.c.bf16 %v826, %v825
      %v979 = vpack.c.bf16 %v634, %v633
      %v980 = vpack.c.bf16 %v549, %v547
      %v981 = vpack.c.bf16 %v924, %v923
      %v982 = vpack.c.bf16 %v828, %v827
      %v983 = vpack.c.bf16 %v636, %v635
      %v984 = vpack.c.bf16 %v554, %v552
      %v985 = vpack.c.bf16 %v926, %v925
      %v986 = vpack.c.bf16 %v830, %v829
      %v987 = vpack.c.bf16 %v638, %v637
      %v988 = vpack.c.bf16 %v559, %v557
      %v989 = vpack.c.bf16 %v928, %v927
      %v990 = vpack.c.bf16 %v832, %v831
      %v991 = vpack.c.bf16 %v640, %v639
      %v992 = vpack.c.bf16 %v564, %v562
      %v993 = vpack.c.bf16 %v930, %v929
      %v994 = vpack.c.bf16 %v834, %v833
      %v995 = vpack.c.bf16 %v642, %v641
      %v996 = vpack.c.bf16 %v569, %v567
      %v997 = vld [vmem:[%s1] sm:$0xf]
      %v998 = vld [vmem:[%s1 + $0x4] sm:$0xf]
      %v999 = vld [vmem:[%s1 + $0x8] sm:$0xf]
      %v1000 = vld [vmem:[%s1 + $0xc] sm:$0xf]
      %v1001 = vld [vmem:[%s1 + $0x10] sm:$0xf]
      %v1002 = vld [vmem:[%s1 + $0x14] sm:$0xf]
      %v1003 = vld [vmem:[%s1 + $0x18] sm:$0xf]
      %v1004 = vld [vmem:[%s1 + $0x1c] sm:$0xf]
      %v1005 = vld [vmem:[%s1 + $0x20] sm:$0xf]
      %v1006 = vld [vmem:[%s1 + $0x24] sm:$0xf]
      %v1007 = vld [vmem:[%s1 + $0x28] sm:$0xf]
      %v1008 = vld [vmem:[%s1 + $0x2c] sm:$0xf]
      %v1009 = vld [vmem:[%s1 + $0x30] sm:$0xf]
      %v1010 = vld [vmem:[%s1 + $0x34] sm:$0xf]
      %v1011 = vld [vmem:[%s1 + $0x38] sm:$0xf]
      %v1012 = vld [vmem:[%s1 + $0x3c] sm:$0xf]
      %v1013 = vld [vmem:[%s1 + $0x40] sm:$0xf]
      %v1014 = vld [vmem:[%s1 + $0x44] sm:$0xf]
      %v1015 = vld [vmem:[%s1 + $0x48] sm:$0xf]
      %v1016 = vld [vmem:[%s1 + $0x4c] sm:$0xf]
      %v1017 = vld [vmem:[%s1 + $0x50] sm:$0xf]
      %v1018 = vld [vmem:[%s1 + $0x54] sm:$0xf]
      %v1019 = vld [vmem:[%s1 + $0x58] sm:$0xf]
      %v1020 = vld [vmem:[%s1 + $0x5c] sm:$0xf]
      %v1021 = vld [vmem:[%s1 + $0x60] sm:$0xf]
      %v1022 = vld [vmem:[%s1 + $0x64] sm:$0xf]
      %v1023 = vld [vmem:[%s1 + $0x68] sm:$0xf]
      %v1024 = vld [vmem:[%s1 + $0x6c] sm:$0xf]
      %v1025 = vld [vmem:[%s1 + $0x70] sm:$0xf]
      %v1026 = vld [vmem:[%s1 + $0x74] sm:$0xf]
      %v1027 = vld [vmem:[%s1 + $0x78] sm:$0xf]
      %v1028 = vld [vmem:[%s1 + $0x7c] sm:$0xf]
      %v1029 = vld [vmem:[%s1 + $0x80] sm:$0xf]
      %v1030 = vld [vmem:[%s1 + $0x84] sm:$0xf]
      %v1031 = vld [vmem:[%s1 + $0x88] sm:$0xf]
      %v1032 = vld [vmem:[%s1 + $0x8c] sm:$0xf]
      %v1033 = vld [vmem:[%s1 + $0x90] sm:$0xf]
      %v1034 = vld [vmem:[%s1 + $0x94] sm:$0xf]
      %v1035 = vld [vmem:[%s1 + $0x98] sm:$0xf]
      %v1036 = vld [vmem:[%s1 + $0x9c] sm:$0xf]
      %v1037 = vld [vmem:[%s1 + $0xa0] sm:$0xf]
      %v1038 = vld [vmem:[%s1 + $0xa4] sm:$0xf]
      %v1039 = vld [vmem:[%s1 + $0xa8] sm:$0xf]
      %v1040 = vld [vmem:[%s1 + $0xac] sm:$0xf]
      %v1041 = vld [vmem:[%s1 + $0xb0] sm:$0xf]
      %v1042 = vld [vmem:[%s1 + $0xb4] sm:$0xf]
      %v1043 = vld [vmem:[%s1 + $0xb8] sm:$0xf]
      %v1044 = vld [vmem:[%s1 + $0xbc] sm:$0xf]
      %v1045 = vld [vmem:[%s1 + $0xc0] sm:$0xf]
      %v1046 = vld [vmem:[%s1 + $0xc4] sm:$0xf]
      %v1047 = vld [vmem:[%s1 + $0xc8] sm:$0xf]
      %v1048 = vld [vmem:[%s1 + $0xcc] sm:$0xf]
      %v1049 = vld [vmem:[%s1 + $0xd0] sm:$0xf]
      %v1050 = vld [vmem:[%s1 + $0xd4] sm:$0xf]
      %v1051 = vld [vmem:[%s1 + $0xd8] sm:$0xf]
      %v1052 = vld [vmem:[%s1 + $0xdc] sm:$0xf]
      %v1053 = vld [vmem:[%s1 + $0xe0] sm:$0xf]
      %v1054 = vld [vmem:[%s1 + $0xe4] sm:$0xf]
      %v1055 = vld [vmem:[%s1 + $0xe8] sm:$0xf]
      %v1056 = vld [vmem:[%s1 + $0xec] sm:$0xf]
      %v1057 = vld [vmem:[%s1 + $0xf0] sm:$0xf]
      %v1058 = vld [vmem:[%s1 + $0xf4] sm:$0xf]
      %v1059 = vld [vmem:[%s1 + $0xf8] sm:$0xf]
      %v1060 = vld [vmem:[%s1 + $0xfc] sm:$0xf]
      %v1061 = vld [vmem:[%s1 + $0x100] sm:$0xf]
      %v1062 = vld [vmem:[%s1 + $0x104] sm:$0xf]
      %v1063 = vld [vmem:[%s1 + $0x108] sm:$0xf]
      %v1064 = vld [vmem:[%s1 + $0x10c] sm:$0xf]
      %v1065 = vld [vmem:[%s1 + $0x110] sm:$0xf]
      %v1066 = vld [vmem:[%s1 + $0x114] sm:$0xf]
      %v1067 = vld [vmem:[%s1 + $0x118] sm:$0xf]
      %v1068 = vld [vmem:[%s1 + $0x11c] sm:$0xf]
      %v1069 = vld [vmem:[%s2] sm:$0x1]
      %v1071 = vlaneseq
      %v1072 = vshrl.u32 %v1071, 7
      %v1073 = vsub.s32 0, %v1072
      %v1074 = vrot.slane %v1069, %v1073
      %v1148 = vunpack.c.l.b16 %v997
      %v1149 = vunpack.c.l.b16 %v998
      %v1150 = vunpack.c.l.b16 %v999
      %v1151 = vunpack.c.l.b16 %v1000
      %v1152 = vunpack.c.l.b16 %v1001
      %v1153 = vunpack.c.l.b16 %v1002
      %v1154 = vunpack.c.l.b16 %v1003
      %v1155 = vunpack.c.l.b16 %v1004
      %v1156 = vunpack.c.l.b16 %v1005
      %v1157 = vunpack.c.l.b16 %v1006
      %v1158 = vunpack.c.l.b16 %v1007
      %v1159 = vunpack.c.l.b16 %v1008
      %v1160 = vunpack.c.l.b16 %v1009
      %v1161 = vunpack.c.l.b16 %v1010
      %v1162 = vunpack.c.l.b16 %v1011
      %v1163 = vunpack.c.l.b16 %v1012
      %v1164 = vunpack.c.l.b16 %v1013
      %v1165 = vunpack.c.l.b16 %v1014
      %v1166 = vunpack.c.l.b16 %v1015
      %v1167 = vunpack.c.l.b16 %v1016
      %v1168 = vunpack.c.l.b16 %v1017
      %v1169 = vunpack.c.l.b16 %v1018
      %v1170 = vunpack.c.l.b16 %v1019
      %v1171 = vunpack.c.l.b16 %v1020
      %v1172 = vunpack.c.l.b16 %v1021
      %v1173 = vunpack.c.l.b16 %v1022
      %v1174 = vunpack.c.l.b16 %v1023
      %v1175 = vunpack.c.l.b16 %v1024
      %v1176 = vunpack.c.l.b16 %v1025
      %v1177 = vunpack.c.l.b16 %v1026
      %v1178 = vunpack.c.l.b16 %v1027
      %v1179 = vunpack.c.l.b16 %v1028
      %v1180 = vunpack.c.l.b16 %v1029
      %v1181 = vunpack.c.l.b16 %v1030
      %v1182 = vunpack.c.l.b16 %v1031
      %v1183 = vunpack.c.l.b16 %v1032
      %v1184 = vunpack.c.l.b16 %v1033
      %v1185 = vunpack.c.l.b16 %v1034
      %v1186 = vunpack.c.l.b16 %v1035
      %v1187 = vunpack.c.l.b16 %v1036
      %v1188 = vunpack.c.l.b16 %v1037
      %v1189 = vunpack.c.l.b16 %v1038
      %v1190 = vunpack.c.l.b16 %v1039
      %v1191 = vunpack.c.l.b16 %v1040
      %v1192 = vunpack.c.l.b16 %v1041
      %v1193 = vunpack.c.l.b16 %v1042
      %v1194 = vunpack.c.l.b16 %v1043
      %v1195 = vunpack.c.l.b16 %v1044
      %v1196 = vunpack.c.l.b16 %v1045
      %v1197 = vunpack.c.l.b16 %v1046
      %v1198 = vunpack.c.l.b16 %v1047
      %v1199 = vunpack.c.l.b16 %v1048
      %v1200 = vunpack.c.l.b16 %v1049
      %v1201 = vunpack.c.l.b16 %v1050
      %v1202 = vunpack.c.l.b16 %v1051
      %v1203 = vunpack.c.l.b16 %v1052
      %v1204 = vunpack.c.l.b16 %v1053
      %v1205 = vunpack.c.l.b16 %v1054
      %v1206 = vunpack.c.l.b16 %v1055
      %v1207 = vunpack.c.l.b16 %v1056
      %v1208 = vunpack.c.l.b16 %v1057
      %v1209 = vunpack.c.l.b16 %v1058
      %v1210 = vunpack.c.l.b16 %v1059
      %v1211 = vunpack.c.l.b16 %v1060
      %v1212 = vunpack.c.l.b16 %v1061
      %v1213 = vunpack.c.l.b16 %v1062
      %v1214 = vunpack.c.l.b16 %v1063
      %v1215 = vunpack.c.l.b16 %v1064
      %v1216 = vunpack.c.l.b16 %v1065
      %v1217 = vunpack.c.l.b16 %v1066
      %v1218 = vunpack.c.l.b16 %v1067
      %v1219 = vunpack.c.l.b16 %v1068
      %v1220 = vpack.c.b16 %v1149, %v1148
      %v1221 = vpack.c.b16 %v1151, %v1150
      %v1222 = vpack.c.b16 %v1153, %v1152
      %v1223 = vpack.c.b16 %v1155, %v1154
      %v1224 = vpack.c.b16 %v1157, %v1156
      %v1225 = vpack.c.b16 %v1159, %v1158
      %v1226 = vpack.c.b16 %v1161, %v1160
      %v1227 = vpack.c.b16 %v1163, %v1162
      %v1228 = vpack.c.b16 %v1165, %v1164
      %v1229 = vpack.c.b16 %v1167, %v1166
      %v1230 = vpack.c.b16 %v1169, %v1168
      %v1231 = vpack.c.b16 %v1171, %v1170
      %v1232 = vpack.c.b16 %v1173, %v1172
      %v1233 = vpack.c.b16 %v1175, %v1174
      %v1234 = vpack.c.b16 %v1177, %v1176
      %v1235 = vpack.c.b16 %v1179, %v1178
      %v1236 = vpack.c.b16 %v1181, %v1180
      %v1237 = vpack.c.b16 %v1183, %v1182
      %v1238 = vpack.c.b16 %v1185, %v1184
      %v1239 = vpack.c.b16 %v1187, %v1186
      %v1240 = vpack.c.b16 %v1189, %v1188
      %v1241 = vpack.c.b16 %v1191, %v1190
      %v1242 = vpack.c.b16 %v1193, %v1192
      %v1243 = vpack.c.b16 %v1195, %v1194
      %v1244 = vpack.c.b16 %v1197, %v1196
      %v1245 = vpack.c.b16 %v1199, %v1198
      %v1246 = vpack.c.b16 %v1201, %v1200
      %v1247 = vpack.c.b16 %v1203, %v1202
      %v1248 = vpack.c.b16 %v1205, %v1204
      %v1249 = vpack.c.b16 %v1207, %v1206
      %v1250 = vpack.c.b16 %v1209, %v1208
      %v1251 = vpack.c.b16 %v1211, %v1210
      %v1252 = vpack.c.b16 %v1213, %v1212
      %v1253 = vpack.c.b16 %v1215, %v1214
      %v1254 = vpack.c.b16 %v1217, %v1216
      %v1255 = vpack.c.b16 %v1219, %v1218
      %v1293 = vsel %vm606, %v935, 0
      %v1296 = vsel %vm606, %v940, 0
      %v1299 = vsel %vm606, %v944, 0
      %v1302 = vsel %vm606, %v948, 0
      %v1305 = vsel %vm606, %v952, 0
      %v1308 = vsel %vm606, %v956, 0
      %v1311 = vsel %vm606, %v960, 0
      %v1314 = vsel %vm606, %v964, 0
      %v1317 = vsel %vm606, %v968, 0
      %v1320 = vsel %vm606, %v972, 0
      %v1323 = vsel %vm606, %v976, 0
      %v1326 = vsel %vm606, %v980, 0
      %v1329 = vsel %vm606, %v984, 0
      %v1332 = vsel %vm606, %v988, 0
      %v1335 = vsel %vm606, %v992, 0
      %v1338 = vsel %vm606, %v996, 0
      %1340 = vmatprep.subr.bf16.mxu0 0
      %1341 = vmatpush1.bf16.msra.mxu0 %v1227
      %1342 = vmatprep.subr.bf16.mxu0 0
      %1343 = vmatpush1.bf16.msra.mxu0 %v1226
      %1344 = vmatprep.subr.bf16.mxu0 0
      %1345 = vmatpush1.bf16.msra.mxu0 %v1225
      %1346 = vmatprep.subr.bf16.mxu0 0
      %1347 = vmatpush1.bf16.msra.mxu0 %v1224
      %1348 = vmatprep.subr.bf16.mxu0 0
      %1349 = vmatpush1.bf16.msra.mxu0 %v1223
      %1350 = vmatprep.subr.bf16.mxu0 0
      %1351 = vmatpush1.bf16.msra.mxu0 %v1222
      %1352 = vmatprep.subr.bf16.mxu0 0
      %1353 = vmatpush1.bf16.msra.mxu0 %v1221
      %1354 = vmatprep.subr.bf16.mxu0 0
      %1355 = vmatpush1.bf16.msra.mxu0 %v1220
      %1356 = vmatprep.subr.bf16.mxu0 0
      %1357 = vmatpush2.bf16.msra.mxu0 %v1235
      %1358 = vmatprep.subr.bf16.mxu0 0
      %1359 = vmatpush2.bf16.msra.mxu0 %v1234
      %1360 = vmatprep.subr.bf16.mxu0 0
      %1361 = vmatpush2.bf16.msra.mxu0 %v1233
      %1362 = vmatprep.subr.bf16.mxu0 0
      %1363 = vmatpush2.bf16.msra.mxu0 %v1232
      %1364 = vmatprep.subr.bf16.mxu0 0
      %1365 = vmatpush2.bf16.msra.mxu0 %v1231
      %1366 = vmatprep.subr.bf16.mxu0 0
      %1367 = vmatpush2.bf16.msra.mxu0 %v1230
      %1368 = vmatprep.subr.bf16.mxu0 0
      %1369 = vmatpush2.bf16.msra.mxu0 %v1229
      %1370 = vmatprep.subr.bf16.mxu0 0
      %1371 = vmatpush2.bf16.msra.mxu0 %v1228
      %1372 = vmatprep.mubr.bf16.mxu0 %v932
      %1373 = vmatmul.mubr.bf16.gmra.mxu0 %v931
      %v1374 = vpop.f32.mrf.mxu0
      %v1375 = vadd.f32 %v1074, %v1374
      %v1376 = vpop.f32.mrf.mxu0
      %v1377 = vpop.f32.mrf.mxu0
      %v1378 = vadd.f32 %v1074, %v1377
      %v1379 = vpop.f32.mrf.mxu0
      %1380 = vmatprep.mubr.bf16.mxu0 %v937
      %1381 = vmatmul.mubr.bf16.gmra.mxu0 %v936
      %v1382 = vpop.f32.mrf.mxu0
      %v1383 = vadd.f32 %v1074, %v1382
      %v1384 = vpop.f32.mrf.mxu0
      %v1385 = vpop.f32.mrf.mxu0
      %v1386 = vadd.f32 %v1074, %v1385
      %v1387 = vpop.f32.mrf.mxu0
      %1388 = vmatprep.mubr.bf16.mxu0 %v941
      %1389 = vmatmul.mubr.bf16.gmra.mxu0 %v934
      %v1390 = vpop.f32.mrf.mxu0
      %v1391 = vadd.f32 %v1074, %v1390
      %v1392 = vpop.f32.mrf.mxu0
      %v1393 = vpop.f32.mrf.mxu0
      %v1394 = vadd.f32 %v1074, %v1393
      %v1395 = vpop.f32.mrf.mxu0
      %1396 = vmatprep.mubr.bf16.mxu0 %v945
      %1397 = vmatmul.mubr.bf16.gmra.mxu0 %v939
      %v1398 = vpop.f32.mrf.mxu0
      %v1399 = vadd.f32 %v1074, %v1398
      %v1400 = vpop.f32.mrf.mxu0
      %v1401 = vpop.f32.mrf.mxu0
      %v1402 = vadd.f32 %v1074, %v1401
      %v1403 = vpop.f32.mrf.mxu0
      %1404 = vmatprep.mubr.bf16.mxu0 %v949
      %1405 = vmatmul.mubr.bf16.gmra.mxu0 %v943
      %v1406 = vpop.f32.mrf.mxu0
      %v1407 = vadd.f32 %v1074, %v1406
      %v1408 = vpop.f32.mrf.mxu0
      %v1409 = vpop.f32.mrf.mxu0
      %v1410 = vadd.f32 %v1074, %v1409
      %v1411 = vpop.f32.mrf.mxu0
      %1412 = vmatprep.mubr.bf16.mxu0 %v953
      %1413 = vmatmul.mubr.bf16.gmra.mxu0 %v947
      %v1414 = vpop.f32.mrf.mxu0
      %v1415 = vadd.f32 %v1074, %v1414
      %v1416 = vpop.f32.mrf.mxu0
      %v1417 = vpop.f32.mrf.mxu0
      %v1418 = vadd.f32 %v1074, %v1417
      %v1419 = vpop.f32.mrf.mxu0
      %1420 = vmatprep.mubr.bf16.mxu0 %v957
      %1421 = vmatmul.mubr.bf16.gmra.mxu0 %v951
      %v1422 = vpop.f32.mrf.mxu0
      %v1423 = vadd.f32 %v1074, %v1422
      %v1424 = vpop.f32.mrf.mxu0
      %v1425 = vpop.f32.mrf.mxu0
      %v1426 = vadd.f32 %v1074, %v1425
      %v1427 = vpop.f32.mrf.mxu0
      %1428 = vmatprep.mubr.bf16.mxu0 %v961
      %1429 = vmatmul.mubr.bf16.gmra.mxu0 %v955
      %v1430 = vpop.f32.mrf.mxu0
      %v1431 = vadd.f32 %v1074, %v1430
      %v1432 = vpop.f32.mrf.mxu0
      %v1433 = vpop.f32.mrf.mxu0
      %v1434 = vadd.f32 %v1074, %v1433
      %v1435 = vpop.f32.mrf.mxu0
      %1436 = vmatprep.mubr.bf16.mxu0 %v965
      %1437 = vmatmul.mubr.bf16.gmra.mxu0 %v959
      %v1438 = vpop.f32.mrf.mxu0
      %v1439 = vadd.f32 %v1074, %v1438
      %v1440 = vpop.f32.mrf.mxu0
      %v1441 = vpop.f32.mrf.mxu0
      %v1442 = vadd.f32 %v1074, %v1441
      %v1443 = vpop.f32.mrf.mxu0
      %1444 = vmatprep.mubr.bf16.mxu0 %v969
      %1445 = vmatmul.mubr.bf16.gmra.mxu0 %v963
      %v1446 = vpop.f32.mrf.mxu0
      %v1447 = vadd.f32 %v1074, %v1446
      %v1448 = vpop.f32.mrf.mxu0
      %v1449 = vpop.f32.mrf.mxu0
      %v1450 = vadd.f32 %v1074, %v1449
      %v1451 = vpop.f32.mrf.mxu0
      %1452 = vmatprep.mubr.bf16.mxu0 %v973
      %1453 = vmatmul.mubr.bf16.gmra.mxu0 %v967
      %v1454 = vpop.f32.mrf.mxu0
      %v1455 = vadd.f32 %v1074, %v1454
      %v1456 = vpop.f32.mrf.mxu0
      %v1457 = vpop.f32.mrf.mxu0
      %v1458 = vadd.f32 %v1074, %v1457
      %v1459 = vpop.f32.mrf.mxu0
      %1460 = vmatprep.mubr.bf16.mxu0 %v977
      %1461 = vmatmul.mubr.bf16.gmra.mxu0 %v971
      %v1462 = vpop.f32.mrf.mxu0
      %v1463 = vadd.f32 %v1074, %v1462
      %v1464 = vpop.f32.mrf.mxu0
      %v1465 = vpop.f32.mrf.mxu0
      %v1466 = vadd.f32 %v1074, %v1465
      %v1467 = vpop.f32.mrf.mxu0
      %1468 = vmatprep.mubr.bf16.mxu0 %v981
      %1469 = vmatmul.mubr.bf16.gmra.mxu0 %v975
      %v1470 = vpop.f32.mrf.mxu0
      %v1471 = vadd.f32 %v1074, %v1470
      %v1472 = vpop.f32.mrf.mxu0
      %v1473 = vpop.f32.mrf.mxu0
      %v1474 = vadd.f32 %v1074, %v1473
      %v1475 = vpop.f32.mrf.mxu0
      %1476 = vmatprep.mubr.bf16.mxu0 %v985
      %1477 = vmatmul.mubr.bf16.gmra.mxu0 %v979
      %v1478 = vpop.f32.mrf.mxu0
      %v1479 = vadd.f32 %v1074, %v1478
      %v1480 = vpop.f32.mrf.mxu0
      %v1481 = vpop.f32.mrf.mxu0
      %v1482 = vadd.f32 %v1074, %v1481
      %v1483 = vpop.f32.mrf.mxu0
      %1484 = vmatprep.mubr.bf16.mxu0 %v989
      %1485 = vmatmul.mubr.bf16.gmra.mxu0 %v983
      %v1486 = vpop.f32.mrf.mxu0
      %v1487 = vadd.f32 %v1074, %v1486
      %v1488 = vpop.f32.mrf.mxu0
      %v1489 = vpop.f32.mrf.mxu0
      %v1490 = vadd.f32 %v1074, %v1489
      %v1491 = vpop.f32.mrf.mxu0
      %1492 = vmatprep.mubr.bf16.mxu0 %v993
      %1493 = vmatmul.mubr.bf16.gmra.mxu0 %v987
      %v1494 = vpop.f32.mrf.mxu0
      %v1495 = vadd.f32 %v1074, %v1494
      %v1496 = vpop.f32.mrf.mxu0
      %v1497 = vpop.f32.mrf.mxu0
      %v1498 = vadd.f32 %v1074, %v1497
      %v1499 = vpop.f32.mrf.mxu0
      %1500 = vdwg.mxu0
      %1501 = vmatprep.subr.bf16.mxu0 0
      %1502 = vmatpush1.bf16.msra.mxu0 %v1243
      %1503 = vmatprep.subr.bf16.mxu0 0
      %1504 = vmatpush1.bf16.msra.mxu0 %v1242
      %1505 = vmatprep.subr.bf16.mxu0 0
      %1506 = vmatpush1.bf16.msra.mxu0 %v1241
      %1507 = vmatprep.subr.bf16.mxu0 0
      %1508 = vmatpush1.bf16.msra.mxu0 %v1240
      %1509 = vmatprep.subr.bf16.mxu0 0
      %1510 = vmatpush1.bf16.msra.mxu0 %v1239
      %1511 = vmatprep.subr.bf16.mxu0 0
      %1512 = vmatpush1.bf16.msra.mxu0 %v1238
      %1513 = vmatprep.subr.bf16.mxu0 0
      %1514 = vmatpush1.bf16.msra.mxu0 %v1237
      %1515 = vmatprep.subr.bf16.mxu0 0
      %1516 = vmatpush1.bf16.msra.mxu0 %v1236
      %1517 = vmatprep.subr.bf16.mxu0 0
      %1518 = vmatpush2.bf16.msra.mxu0 %v1251
      %1519 = vmatprep.subr.bf16.mxu0 0
      %1520 = vmatpush2.bf16.msra.mxu0 %v1250
      %1521 = vmatprep.subr.bf16.mxu0 0
      %1522 = vmatpush2.bf16.msra.mxu0 %v1249
      %1523 = vmatprep.subr.bf16.mxu0 0
      %1524 = vmatpush2.bf16.msra.mxu0 %v1248
      %1525 = vmatprep.subr.bf16.mxu0 0
      %1526 = vmatpush2.bf16.msra.mxu0 %v1247
      %1527 = vmatprep.subr.bf16.mxu0 0
      %1528 = vmatpush2.bf16.msra.mxu0 %v1246
      %1529 = vmatprep.subr.bf16.mxu0 0
      %1530 = vmatpush2.bf16.msra.mxu0 %v1245
      %1531 = vmatprep.subr.bf16.mxu0 0
      %1532 = vmatpush2.bf16.msra.mxu0 %v1244
      %1533 = vmatprep.mubr.bf16.mxu0 %v934
      %1534 = vmatmul.mubr.bf16.gmra.mxu0 %v933
      %v1535 = vpop.f32.mrf.mxu0
      %v1536 = vadd.f32 %v1375, %v1535
      %v1537 = vpop.f32.mrf.mxu0
      %v1538 = vpop.f32.mrf.mxu0
      %v1539 = vadd.f32 %v1378, %v1538
      %v1540 = vpop.f32.mrf.mxu0
      %1541 = vmatprep.mubr.bf16.mxu0 %v939
      %1542 = vmatmul.mubr.bf16.gmra.mxu0 %v938
      %v1543 = vpop.f32.mrf.mxu0
      %v1544 = vadd.f32 %v1383, %v1543
      %v1545 = vpop.f32.mrf.mxu0
      %v1546 = vpop.f32.mrf.mxu0
      %v1547 = vadd.f32 %v1386, %v1546
      %v1548 = vpop.f32.mrf.mxu0
      %1549 = vmatprep.mubr.bf16.mxu0 %v943
      %1550 = vmatmul.mubr.bf16.gmra.mxu0 %v942
      %v1551 = vpop.f32.mrf.mxu0
      %v1552 = vadd.f32 %v1391, %v1551
      %v1553 = vpop.f32.mrf.mxu0
      %v1554 = vpop.f32.mrf.mxu0
      %v1555 = vadd.f32 %v1394, %v1554
      %v1556 = vpop.f32.mrf.mxu0
      %1557 = vmatprep.mubr.bf16.mxu0 %v947
      %1558 = vmatmul.mubr.bf16.gmra.mxu0 %v946
      %v1559 = vpop.f32.mrf.mxu0
      %v1560 = vadd.f32 %v1399, %v1559
      %v1561 = vpop.f32.mrf.mxu0
      %v1562 = vpop.f32.mrf.mxu0
      %v1563 = vadd.f32 %v1402, %v1562
      %v1564 = vpop.f32.mrf.mxu0
      %1565 = vmatprep.mubr.bf16.mxu0 %v951
      %1566 = vmatmul.mubr.bf16.gmra.mxu0 %v950
      %v1567 = vpop.f32.mrf.mxu0
      %v1568 = vadd.f32 %v1407, %v1567
      %v1569 = vpop.f32.mrf.mxu0
      %v1570 = vpop.f32.mrf.mxu0
      %v1571 = vadd.f32 %v1410, %v1570
      %v1572 = vpop.f32.mrf.mxu0
      %1573 = vmatprep.mubr.bf16.mxu0 %v955
      %1574 = vmatmul.mubr.bf16.gmra.mxu0 %v954
      %v1575 = vpop.f32.mrf.mxu0
      %v1576 = vadd.f32 %v1415, %v1575
      %v1577 = vpop.f32.mrf.mxu0
      %v1578 = vpop.f32.mrf.mxu0
      %v1579 = vadd.f32 %v1418, %v1578
      %v1580 = vpop.f32.mrf.mxu0
      %1581 = vmatprep.mubr.bf16.mxu0 %v959
      %1582 = vmatmul.mubr.bf16.gmra.mxu0 %v958
      %v1583 = vpop.f32.mrf.mxu0
      %v1584 = vadd.f32 %v1423, %v1583
      %v1585 = vpop.f32.mrf.mxu0
      %v1586 = vpop.f32.mrf.mxu0
      %v1587 = vadd.f32 %v1426, %v1586
      %v1588 = vpop.f32.mrf.mxu0
      %1589 = vmatprep.mubr.bf16.mxu0 %v963
      %1590 = vmatmul.mubr.bf16.gmra.mxu0 %v962
      %v1591 = vpop.f32.mrf.mxu0
      %v1592 = vadd.f32 %v1431, %v1591
      %v1593 = vpop.f32.mrf.mxu0
      %v1594 = vpop.f32.mrf.mxu0
      %v1595 = vadd.f32 %v1434, %v1594
      %v1596 = vpop.f32.mrf.mxu0
      %1597 = vmatprep.mubr.bf16.mxu0 %v967
      %1598 = vmatmul.mubr.bf16.gmra.mxu0 %v966
      %v1599 = vpop.f32.mrf.mxu0
      %v1600 = vadd.f32 %v1439, %v1599
      %v1601 = vpop.f32.mrf.mxu0
      %v1602 = vpop.f32.mrf.mxu0
      %v1603 = vadd.f32 %v1442, %v1602
      %v1604 = vpop.f32.mrf.mxu0
      %1605 = vmatprep.mubr.bf16.mxu0 %v971
      %1606 = vmatmul.mubr.bf16.gmra.mxu0 %v970
      %v1607 = vpop.f32.mrf.mxu0
      %v1608 = vadd.f32 %v1447, %v1607
      %v1609 = vpop.f32.mrf.mxu0
      %v1610 = vpop.f32.mrf.mxu0
      %v1611 = vadd.f32 %v1450, %v1610
      %v1612 = vpop.f32.mrf.mxu0
      %1613 = vmatprep.mubr.bf16.mxu0 %v975
      %1614 = vmatmul.mubr.bf16.gmra.mxu0 %v974
      %v1615 = vpop.f32.mrf.mxu0
      %v1616 = vadd.f32 %v1455, %v1615
      %v1617 = vpop.f32.mrf.mxu0
      %v1618 = vpop.f32.mrf.mxu0
      %v1619 = vadd.f32 %v1458, %v1618
      %v1620 = vpop.f32.mrf.mxu0
      %1621 = vmatprep.mubr.bf16.mxu0 %v979
      %1622 = vmatmul.mubr.bf16.gmra.mxu0 %v978
      %v1623 = vpop.f32.mrf.mxu0
      %v1624 = vadd.f32 %v1463, %v1623
      %v1625 = vpop.f32.mrf.mxu0
      %v1626 = vpop.f32.mrf.mxu0
      %v1627 = vadd.f32 %v1466, %v1626
      %v1628 = vpop.f32.mrf.mxu0
      %1629 = vmatprep.mubr.bf16.mxu0 %v983
      %1630 = vmatmul.mubr.bf16.gmra.mxu0 %v982
      %v1631 = vpop.f32.mrf.mxu0
      %v1632 = vadd.f32 %v1471, %v1631
      %v1633 = vpop.f32.mrf.mxu0
      %v1634 = vpop.f32.mrf.mxu0
      %v1635 = vadd.f32 %v1474, %v1634
      %v1636 = vpop.f32.mrf.mxu0
      %1637 = vmatprep.mubr.bf16.mxu0 %v987
      %1638 = vmatmul.mubr.bf16.gmra.mxu0 %v986
      %v1639 = vpop.f32.mrf.mxu0
      %v1640 = vadd.f32 %v1479, %v1639
      %v1641 = vpop.f32.mrf.mxu0
      %v1642 = vpop.f32.mrf.mxu0
      %v1643 = vadd.f32 %v1482, %v1642
      %v1644 = vpop.f32.mrf.mxu0
      %1645 = vmatprep.mubr.bf16.mxu0 %v991
      %1646 = vmatmul.mubr.bf16.gmra.mxu0 %v990
      %v1647 = vpop.f32.mrf.mxu0
      %v1648 = vadd.f32 %v1487, %v1647
      %v1649 = vpop.f32.mrf.mxu0
      %v1650 = vpop.f32.mrf.mxu0
      %v1651 = vadd.f32 %v1490, %v1650
      %v1652 = vpop.f32.mrf.mxu0
      %1653 = vmatprep.mubr.bf16.mxu0 %v995
      %1654 = vmatmul.mubr.bf16.gmra.mxu0 %v994
      %v1655 = vpop.f32.mrf.mxu0
      %v1656 = vadd.f32 %v1495, %v1655
      %v1657 = vpop.f32.mrf.mxu0
      %v1658 = vpop.f32.mrf.mxu0
      %v1659 = vadd.f32 %v1498, %v1658
      %v1660 = vpop.f32.mrf.mxu0
      %1661 = vdwg.mxu0
      %1662 = vmatprep.subr.bf16.mxu0 0
      %1663 = vmatpush1.bf16.msra.mxu0 0
      %1664 = vmatprep.subr.bf16.mxu0 0
      %1665 = vmatpush1.bf16.msra.mxu0 0
      %1666 = vmatprep.subr.bf16.mxu0 0
      %1667 = vmatpush1.bf16.msra.mxu0 0
      %1668 = vmatprep.subr.bf16.mxu0 0
      %1669 = vmatpush1.bf16.msra.mxu0 0
      %1670 = vmatprep.subr.bf16.mxu0 0
      %1671 = vmatpush1.bf16.msra.mxu0 %v1255
      %1672 = vmatprep.subr.bf16.mxu0 0
      %1673 = vmatpush1.bf16.msra.mxu0 %v1254
      %1674 = vmatprep.subr.bf16.mxu0 0
      %1675 = vmatpush1.bf16.msra.mxu0 %v1253
      %1676 = vmatprep.subr.bf16.mxu0 0
      %1677 = vmatpush1.bf16.msra.mxu0 %v1252
      %1678 = vmatprep.subr.bf16.mxu0 0
      %1679 = vmatpush2.bf16.msra.mxu0 0
      %1680 = vmatprep.subr.bf16.mxu0 0
      %1681 = vmatpush2.bf16.msra.mxu0 0
      %1682 = vmatprep.subr.bf16.mxu0 0
      %1683 = vmatpush2.bf16.msra.mxu0 0
      %1684 = vmatprep.subr.bf16.mxu0 0
      %1685 = vmatpush2.bf16.msra.mxu0 0
      %1686 = vmatprep.subr.bf16.mxu0 0
      %1687 = vmatpush2.bf16.msra.mxu0 0
      %1688 = vmatprep.subr.bf16.mxu0 0
      %1689 = vmatpush2.bf16.msra.mxu0 0
      %1690 = vmatprep.subr.bf16.mxu0 0
      %1691 = vmatpush2.bf16.msra.mxu0 0
      %1692 = vmatprep.subr.bf16.mxu0 0
      %1693 = vmatpush2.bf16.msra.mxu0 0
      %1694 = vmatprep.mubr.bf16.mxu0 0
      %1695 = vmatmul.mubr.bf16.gmra.mxu0 %v1293
      %v1696 = vpop.f32.mrf.mxu0
      %v1697 = vadd.f32 %v1536, %v1696
      %v1698 = vpop.f32.mrf.mxu0
      %v1699 = vpop.f32.mrf.mxu0
      %v1700 = vadd.f32 %v1539, %v1699
      %v1701 = vpop.f32.mrf.mxu0
      %1702 = vmatprep.mubr.bf16.mxu0 0
      %1703 = vmatmul.mubr.bf16.gmra.mxu0 %v1296
      %v1704 = vpop.f32.mrf.mxu0
      %v1705 = vadd.f32 %v1544, %v1704
      %v1706 = vpop.f32.mrf.mxu0
      %v1707 = vpop.f32.mrf.mxu0
      %v1708 = vadd.f32 %v1547, %v1707
      %v1709 = vpop.f32.mrf.mxu0
      %1710 = vmatprep.mubr.bf16.mxu0 0
      %1711 = vmatmul.mubr.bf16.gmra.mxu0 %v1299
      %v1712 = vpop.f32.mrf.mxu0
      %v1713 = vadd.f32 %v1552, %v1712
      %v1714 = vpop.f32.mrf.mxu0
      %v1715 = vpop.f32.mrf.mxu0
      %v1716 = vadd.f32 %v1555, %v1715
      %v1717 = vpop.f32.mrf.mxu0
      %1718 = vmatprep.mubr.bf16.mxu0 0
      %1719 = vmatmul.mubr.bf16.gmra.mxu0 %v1302
      %v1720 = vpop.f32.mrf.mxu0
      %v1721 = vadd.f32 %v1560, %v1720
      %v1722 = vpop.f32.mrf.mxu0
      %v1723 = vpop.f32.mrf.mxu0
      %v1724 = vadd.f32 %v1563, %v1723
      %v1725 = vpop.f32.mrf.mxu0
      %1726 = vmatprep.mubr.bf16.mxu0 0
      %1727 = vmatmul.mubr.bf16.gmra.mxu0 %v1305
      %v1728 = vpop.f32.mrf.mxu0
      %v1729 = vadd.f32 %v1568, %v1728
      %v1730 = vpop.f32.mrf.mxu0
      %v1731 = vpop.f32.mrf.mxu0
      %v1732 = vadd.f32 %v1571, %v1731
      %v1733 = vpop.f32.mrf.mxu0
      %1734 = vmatprep.mubr.bf16.mxu0 0
      %1735 = vmatmul.mubr.bf16.gmra.mxu0 %v1308
      %v1736 = vpop.f32.mrf.mxu0
      %v1737 = vadd.f32 %v1576, %v1736
      %v1738 = vpop.f32.mrf.mxu0
      %v1739 = vpop.f32.mrf.mxu0
      %v1740 = vadd.f32 %v1579, %v1739
      %v1741 = vpop.f32.mrf.mxu0
      %1742 = vmatprep.mubr.bf16.mxu0 0
      %1743 = vmatmul.mubr.bf16.gmra.mxu0 %v1311
      %v1744 = vpop.f32.mrf.mxu0
      %v1745 = vadd.f32 %v1584, %v1744
      %v1746 = vpop.f32.mrf.mxu0
      %v1747 = vpop.f32.mrf.mxu0
      %v1748 = vadd.f32 %v1587, %v1747
      %v1749 = vpop.f32.mrf.mxu0
      %1750 = vmatprep.mubr.bf16.mxu0 0
      %1751 = vmatmul.mubr.bf16.gmra.mxu0 %v1314
      %v1752 = vpop.f32.mrf.mxu0
      %v1753 = vadd.f32 %v1592, %v1752
      %v1754 = vpop.f32.mrf.mxu0
      %v1755 = vpop.f32.mrf.mxu0
      %v1756 = vadd.f32 %v1595, %v1755
      %v1757 = vpop.f32.mrf.mxu0
      %1758 = vmatprep.mubr.bf16.mxu0 0
      %1759 = vmatmul.mubr.bf16.gmra.mxu0 %v1317
      %v1760 = vpop.f32.mrf.mxu0
      %v1761 = vadd.f32 %v1600, %v1760
      %v1762 = vpop.f32.mrf.mxu0
      %v1763 = vpop.f32.mrf.mxu0
      %v1764 = vadd.f32 %v1603, %v1763
      %v1765 = vpop.f32.mrf.mxu0
      %1766 = vmatprep.mubr.bf16.mxu0 0
      %1767 = vmatmul.mubr.bf16.gmra.mxu0 %v1320
      %v1768 = vpop.f32.mrf.mxu0
      %v1769 = vadd.f32 %v1608, %v1768
      %v1770 = vpop.f32.mrf.mxu0
      %v1771 = vpop.f32.mrf.mxu0
      %v1772 = vadd.f32 %v1611, %v1771
      %v1773 = vpop.f32.mrf.mxu0
      %1774 = vmatprep.mubr.bf16.mxu0 0
      %1775 = vmatmul.mubr.bf16.gmra.mxu0 %v1323
      %v1776 = vpop.f32.mrf.mxu0
      %v1777 = vadd.f32 %v1616, %v1776
      %v1778 = vpop.f32.mrf.mxu0
      %v1779 = vpop.f32.mrf.mxu0
      %v1780 = vadd.f32 %v1619, %v1779
      %v1781 = vpop.f32.mrf.mxu0
      %1782 = vmatprep.mubr.bf16.mxu0 0
      %1783 = vmatmul.mubr.bf16.gmra.mxu0 %v1326
      %v1784 = vpop.f32.mrf.mxu0
      %v1785 = vadd.f32 %v1624, %v1784
      %v1786 = vpop.f32.mrf.mxu0
      %v1787 = vpop.f32.mrf.mxu0
      %v1788 = vadd.f32 %v1627, %v1787
      %v1789 = vpop.f32.mrf.mxu0
      %1790 = vmatprep.mubr.bf16.mxu0 0
      %1791 = vmatmul.mubr.bf16.gmra.mxu0 %v1329
      %v1792 = vpop.f32.mrf.mxu0
      %v1793 = vadd.f32 %v1632, %v1792
      %v1794 = vpop.f32.mrf.mxu0
      %v1795 = vpop.f32.mrf.mxu0
      %v1796 = vadd.f32 %v1635, %v1795
      %v1797 = vpop.f32.mrf.mxu0
      %1798 = vmatprep.mubr.bf16.mxu0 0
      %1799 = vmatmul.mubr.bf16.gmra.mxu0 %v1332
      %v1800 = vpop.f32.mrf.mxu0
      %v1801 = vadd.f32 %v1640, %v1800
      %v1802 = vpop.f32.mrf.mxu0
      %v1803 = vpop.f32.mrf.mxu0
      %v1804 = vadd.f32 %v1643, %v1803
      %v1805 = vpop.f32.mrf.mxu0
      %1806 = vmatprep.mubr.bf16.mxu0 0
      %1807 = vmatmul.mubr.bf16.gmra.mxu0 %v1335
      %v1808 = vpop.f32.mrf.mxu0
      %v1809 = vadd.f32 %v1648, %v1808
      %v1810 = vpop.f32.mrf.mxu0
      %v1811 = vpop.f32.mrf.mxu0
      %v1812 = vadd.f32 %v1651, %v1811
      %v1813 = vpop.f32.mrf.mxu0
      %1814 = vmatprep.mubr.bf16.mxu0 0
      %1815 = vmatmul.mubr.bf16.gmra.mxu0 %v1338
      %v1816 = vpop.f32.mrf.mxu0
      %v1817 = vadd.f32 %v1656, %v1816
      %v1818 = vpop.f32.mrf.mxu0
      %v1819 = vpop.f32.mrf.mxu0
      %v1820 = vadd.f32 %v1659, %v1819
      %v1821 = vpop.f32.mrf.mxu0
      %1822 = vdwg.mxu0
      %v1823 = vmul.f32 %v1697, 0.5
      %v1824 = vmul.f32 %v1700, 0.5
      %v1825 = vmul.f32 %v1705, 0.5
      %v1826 = vmul.f32 %v1708, 0.5
      %v1827 = vmul.f32 %v1713, 0.5
      %v1828 = vmul.f32 %v1716, 0.5
      %v1829 = vmul.f32 %v1721, 0.5
      %v1830 = vmul.f32 %v1724, 0.5
      %v1831 = vmul.f32 %v1729, 0.5
      %v1832 = vmul.f32 %v1732, 0.5
      %v1833 = vmul.f32 %v1737, 0.5
      %v1834 = vmul.f32 %v1740, 0.5
      %v1835 = vmul.f32 %v1745, 0.5
      %v1836 = vmul.f32 %v1748, 0.5
      %v1837 = vmul.f32 %v1753, 0.5
      %v1838 = vmul.f32 %v1756, 0.5
      %v1839 = vmul.f32 %v1761, 0.5
      %v1840 = vmul.f32 %v1764, 0.5
      %v1841 = vmul.f32 %v1769, 0.5
      %v1842 = vmul.f32 %v1772, 0.5
      %v1843 = vmul.f32 %v1777, 0.5
      %v1844 = vmul.f32 %v1780, 0.5
      %v1845 = vmul.f32 %v1785, 0.5
      %v1846 = vmul.f32 %v1788, 0.5
      %v1847 = vmul.f32 %v1793, 0.5
      %v1848 = vmul.f32 %v1796, 0.5
      %v1849 = vmul.f32 %v1801, 0.5
      %v1850 = vmul.f32 %v1804, 0.5
      %v1851 = vmul.f32 %v1809, 0.5
      %v1852 = vmul.f32 %v1812, 0.5
      %v1853 = vmul.f32 %v1817, 0.5
      %v1854 = vmul.f32 %v1820, 0.5
      %v1855 = vrcp.pop 1.4142135
      %v1856 = vmul.f32 %v1697, %v1855
      %v1857 = vmul.f32 %v1700, %v1855
      %v1858 = vmul.f32 %v1705, %v1855
      %v1859 = vmul.f32 %v1708, %v1855
      %v1860 = vmul.f32 %v1713, %v1855
      %v1861 = vmul.f32 %v1716, %v1855
      %v1862 = vmul.f32 %v1721, %v1855
      %v1863 = vmul.f32 %v1724, %v1855
      %v1864 = vmul.f32 %v1729, %v1855
      %v1865 = vmul.f32 %v1732, %v1855
      %v1866 = vmul.f32 %v1737, %v1855
      %v1867 = vmul.f32 %v1740, %v1855
      %v1868 = vmul.f32 %v1745, %v1855
      %v1869 = vmul.f32 %v1748, %v1855
      %v1870 = vmul.f32 %v1753, %v1855
      %v1871 = vmul.f32 %v1756, %v1855
      %v1872 = vmul.f32 %v1761, %v1855
      %v1873 = vmul.f32 %v1764, %v1855
      %v1874 = vmul.f32 %v1769, %v1855
      %v1875 = vmul.f32 %v1772, %v1855
      %v1876 = vmul.f32 %v1777, %v1855
      %v1877 = vmul.f32 %v1780, %v1855
      %v1878 = vmul.f32 %v1785, %v1855
      %v1879 = vmul.f32 %v1788, %v1855
      %v1880 = vmul.f32 %v1793, %v1855
      %v1881 = vmul.f32 %v1796, %v1855
      %v1882 = vmul.f32 %v1801, %v1855
      %v1883 = vmul.f32 %v1804, %v1855
      %v1884 = vmul.f32 %v1809, %v1855
      %v1885 = vmul.f32 %v1812, %v1855
      %v1886 = vmul.f32 %v1817, %v1855
      %v1887 = vmul.f32 %v1820, %v1855
      %v1888 = verf.f32.pop %v1856
      %v1889 = verf.f32.pop %v1857
      %v1890 = verf.f32.pop %v1858
      %v1891 = verf.f32.pop %v1859
      %v1892 = verf.f32.pop %v1860
      %v1893 = verf.f32.pop %v1861
      %v1894 = verf.f32.pop %v1862
      %v1895 = verf.f32.pop %v1863
      %v1896 = verf.f32.pop %v1864
      %v1897 = verf.f32.pop %v1865
      %v1898 = verf.f32.pop %v1866
      %v1899 = verf.f32.pop %v1867
      %v1900 = verf.f32.pop %v1868
      %v1901 = verf.f32.pop %v1869
      %v1902 = verf.f32.pop %v1870
      %v1903 = verf.f32.pop %v1871
      %v1904 = verf.f32.pop %v1872
      %v1905 = verf.f32.pop %v1873
      %v1906 = verf.f32.pop %v1874
      %v1907 = verf.f32.pop %v1875
      %v1908 = verf.f32.pop %v1876
      %v1909 = verf.f32.pop %v1877
      %v1910 = verf.f32.pop %v1878
      %v1911 = verf.f32.pop %v1879
      %v1912 = verf.f32.pop %v1880
      %v1913 = verf.f32.pop %v1881
      %v1914 = verf.f32.pop %v1882
      %v1915 = verf.f32.pop %v1883
      %v1916 = verf.f32.pop %v1884
      %v1917 = verf.f32.pop %v1885
      %v1918 = verf.f32.pop %v1886
      %v1919 = verf.f32.pop %v1887
      %v1920 = vadd.f32 %v1888, 1.0
      %v1921 = vadd.f32 %v1889, 1.0
      %v1922 = vadd.f32 %v1890, 1.0
      %v1923 = vadd.f32 %v1891, 1.0
      %v1924 = vadd.f32 %v1892, 1.0
      %v1925 = vadd.f32 %v1893, 1.0
      %v1926 = vadd.f32 %v1894, 1.0
      %v1927 = vadd.f32 %v1895, 1.0
      %v1928 = vadd.f32 %v1896, 1.0
      %v1929 = vadd.f32 %v1897, 1.0
      %v1930 = vadd.f32 %v1898, 1.0
      %v1931 = vadd.f32 %v1899, 1.0
      %v1932 = vadd.f32 %v1900, 1.0
      %v1933 = vadd.f32 %v1901, 1.0
      %v1934 = vadd.f32 %v1902, 1.0
      %v1935 = vadd.f32 %v1903, 1.0
      %v1936 = vadd.f32 %v1904, 1.0
      %v1937 = vadd.f32 %v1905, 1.0
      %v1938 = vadd.f32 %v1906, 1.0
      %v1939 = vadd.f32 %v1907, 1.0
      %v1940 = vadd.f32 %v1908, 1.0
      %v1941 = vadd.f32 %v1909, 1.0
      %v1942 = vadd.f32 %v1910, 1.0
      %v1943 = vadd.f32 %v1911, 1.0
      %v1944 = vadd.f32 %v1912, 1.0
      %v1945 = vadd.f32 %v1913, 1.0
      %v1946 = vadd.f32 %v1914, 1.0
      %v1947 = vadd.f32 %v1915, 1.0
      %v1948 = vadd.f32 %v1916, 1.0
      %v1949 = vadd.f32 %v1917, 1.0
      %v1950 = vadd.f32 %v1918, 1.0
      %v1951 = vadd.f32 %v1919, 1.0
      %v1952 = vmul.f32 %v1823, %v1920
      %v1953 = vmul.f32 %v1824, %v1921
      %v1954 = vmul.f32 %v1825, %v1922
      %v1955 = vmul.f32 %v1826, %v1923
      %v1956 = vmul.f32 %v1827, %v1924
      %v1957 = vmul.f32 %v1828, %v1925
      %v1958 = vmul.f32 %v1829, %v1926
      %v1959 = vmul.f32 %v1830, %v1927
      %v1960 = vmul.f32 %v1831, %v1928
      %v1961 = vmul.f32 %v1832, %v1929
      %v1962 = vmul.f32 %v1833, %v1930
      %v1963 = vmul.f32 %v1834, %v1931
      %v1964 = vmul.f32 %v1835, %v1932
      %v1965 = vmul.f32 %v1836, %v1933
      %v1966 = vmul.f32 %v1837, %v1934
      %v1967 = vmul.f32 %v1838, %v1935
      %v1968 = vmul.f32 %v1839, %v1936
      %v1969 = vmul.f32 %v1840, %v1937
      %v1970 = vmul.f32 %v1841, %v1938
      %v1971 = vmul.f32 %v1842, %v1939
      %v1972 = vmul.f32 %v1843, %v1940
      %v1973 = vmul.f32 %v1844, %v1941
      %v1974 = vmul.f32 %v1845, %v1942
      %v1975 = vmul.f32 %v1846, %v1943
      %v1976 = vmul.f32 %v1847, %v1944
      %v1977 = vmul.f32 %v1848, %v1945
      %v1978 = vmul.f32 %v1849, %v1946
      %v1979 = vmul.f32 %v1850, %v1947
      %v1980 = vmul.f32 %v1851, %v1948
      %v1981 = vmul.f32 %v1852, %v1949
      %v1982 = vmul.f32 %v1853, %v1950
      %v1983 = vmul.f32 %v1854, %v1951
      %1984 = vst.msk [vmem:[%s170] sm:$0xff] %vm606, %v1952
      %1985 = vst.msk [vmem:[%s170 + $0x8] sm:$0xff] %vm606, %v1953
      %1986 = vst.msk [vmem:[%s170 + $0x10] sm:$0xff] %vm606, %v1954
      %1987 = vst.msk [vmem:[%s170 + $0x18] sm:$0xff] %vm606, %v1955
      %1988 = vst.msk [vmem:[%s170 + $0x20] sm:$0xff] %vm606, %v1956
      %1989 = vst.msk [vmem:[%s170 + $0x28] sm:$0xff] %vm606, %v1957
      %1990 = vst.msk [vmem:[%s170 + $0x30] sm:$0xff] %vm606, %v1958
      %1991 = vst.msk [vmem:[%s170 + $0x38] sm:$0xff] %vm606, %v1959
      %1992 = vst.msk [vmem:[%s170 + $0x40] sm:$0xff] %vm606, %v1960
      %1993 = vst.msk [vmem:[%s170 + $0x48] sm:$0xff] %vm606, %v1961
      %1994 = vst.msk [vmem:[%s170 + $0x50] sm:$0xff] %vm606, %v1962
      %1995 = vst.msk [vmem:[%s170 + $0x58] sm:$0xff] %vm606, %v1963
      %1996 = vst.msk [vmem:[%s170 + $0x60] sm:$0xff] %vm606, %v1964
      %1997 = vst.msk [vmem:[%s170 + $0x68] sm:$0xff] %vm606, %v1965
      %1998 = vst.msk [vmem:[%s170 + $0x70] sm:$0xff] %vm606, %v1966
      %1999 = vst.msk [vmem:[%s170 + $0x78] sm:$0xff] %vm606, %v1967
      %2000 = vst.msk [vmem:[%s170 + $0x80] sm:$0xff] %vm606, %v1968
      %2001 = vst.msk [vmem:[%s170 + $0x88] sm:$0xff] %vm606, %v1969
      %2002 = vst.msk [vmem:[%s170 + $0x90] sm:$0xff] %vm606, %v1970
      %2003 = vst.msk [vmem:[%s170 + $0x98] sm:$0xff] %vm606, %v1971
      %2004 = vst.msk [vmem:[%s170 + $0xa0] sm:$0xff] %vm606, %v1972
      %2005 = vst.msk [vmem:[%s170 + $0xa8] sm:$0xff] %vm606, %v1973
      %2006 = vst.msk [vmem:[%s170 + $0xb0] sm:$0xff] %vm606, %v1974
      %2007 = vst.msk [vmem:[%s170 + $0xb8] sm:$0xff] %vm606, %v1975
      %2008 = vst.msk [vmem:[%s170 + $0xc0] sm:$0xff] %vm606, %v1976
      %2009 = vst.msk [vmem:[%s170 + $0xc8] sm:$0xff] %vm606, %v1977
      %2010 = vst.msk [vmem:[%s170 + $0xd0] sm:$0xff] %vm606, %v1978
      %2011 = vst.msk [vmem:[%s170 + $0xd8] sm:$0xff] %vm606, %v1979
      %2012 = vst.msk [vmem:[%s170 + $0xe0] sm:$0xff] %vm606, %v1980
      %2013 = vst.msk [vmem:[%s170 + $0xe8] sm:$0xff] %vm606, %v1981
      %2014 = vst.msk [vmem:[%s170 + $0xf0] sm:$0xff] %vm606, %v1982
      %2015 = vst.msk [vmem:[%s170 + $0xf8] sm:$0xff] %vm606, %v1983
      %p2016 = scmp.lt.s32.totalorder %s14, 1
      %s2017 = scalar_select %p2016, %s14, 1
      %s2018 = smul.addr %s2017, 32
      %s2019 = smul.addr %s2018, 8
      %s2020 = scalar_lea.vmem %s3, %s2019
      // Predicated region
      $region33: #{dfcan_forward.14} parent=31 // pred_check
        %p2021 = pneg %p100
      $region34: #{dfcan_forward.14} parent=31 // pred_check_branch
        %2023 = sbr.rel (%p2021) target = $region36
      $region35: #{dfcan_forward.14} parent=31 // pred_region
        _
      $region36: #{dfcan_forward.14} parent=31 // pred_fallthru
        _
    $region32: #{dfcan_forward.14} parent=5 // pred_fallthru
      _
    %p2024 = scmp.le.s32.totalorder 2, %s9
    // Predicated region
    $region37: #{dfcan_forward.14} parent=5 // pred_check
      %p2025 = pneg %p2024
    $region38: #{dfcan_forward.14} parent=5 // pred_check_branch
      %2027 = sbr.rel (%p2025) target = $region40
    $region39: #{dfcan_forward.14} parent=5 // pred_region
      %s2028 = ssub.s32 %s9, 2
      // Predicated region
      $region41: #{dfcan_forward.14} parent=39 // pred_check
        %p2029 = pneg %p106
      $region42: #{dfcan_forward.14} parent=39 // pred_check_branch
        %2031 = sbr.rel (%p2029) target = $region44
      $region43: #{dfcan_forward.14} parent=39 // pred_region
        %p2032 = scmp.lt.s32.totalorder %s15, 1
        %s2033 = scalar_select %p2032, %s15, 1
        %s2034 = smul.addr %s2033, 32
        %s2035 = smul.addr %s2034, 8
        %s2036 = scalar_lea.vmem %s3, %s2035
      $region44: #{dfcan_forward.14} parent=39 // pred_fallthru
        _
    $region40: #{dfcan_forward.14} parent=5 // pred_fallthru
      _
  $region6: #{dfcan_forward.14} parent=0 // loop_footer
    %s13 = sadd.s32 1, %s9
  $region7: #{dfcan_forward.14} parent=0 // loop_footer_branch
    %8 = sbr.rel target = $region3
  $region8: #{dfcan_forward.14} parent=0 // loop_exit
    _

// kernel: dfcan_forward.17
$region0: #{dfcan_forward.17}
  #allocation0 [shape = 'u32[]', space=smem, size = 0x4, offset = 0x4, fixed_abs, tag = 'smem constant byte address 0x4 - core index']
  #allocation1 [shape = 'u32[144,128]{1,0:T(1,128)}', space=vmem, size = 0x12000, scoped, tag = 'internal scratch']
  %s0 = inlined_call_operand.vmem [shape: f32[2,1,64], index: 0, kind: input, shape index: {}]
  %s1 = inlined_call_operand.vmem [shape: f32[2,16,16,64], index: 1, kind: input, shape index: {}]
  %s2 = inlined_call_operand.vmem [shape: f32[2,16,16,64], index: 2, kind: input, shape index: {}]
  %s3 = inlined_call_operand.vmem [shape: f32[64,4], index: 3, kind: input, shape index: {}]
  %s4 = inlined_call_operand.vmem [shape: f32[1,4], index: 4, kind: input, shape index: {}]
  %s5 = inlined_call_operand.vmem [shape: f32[4,64], index: 5, kind: input, shape index: {}]
  %s6 = inlined_call_operand.vmem [shape: f32[1,64], index: 6, kind: input, shape index: {}]
  %s7 = inlined_call_operand.vmem [shape: f32[2,16,16,64], index: 7, kind: output, shape index: {}]
  %s8 = sld [smem:[#allocation0]]
  $region61: #{dfcan_forward.17} parent=0
    _
  %s10 = ssub.s32 1, %s8
  %s11 = scalar_select 0, %s10, %s8
  loop: start=0, step=1, limit=4
  $region2: #{dfcan_forward.17} parent=0 // loop_pre_header
    _
  $region3: #{dfcan_forward.17} parent=0 // loop_header
    %s13 = sphi 0, %s17
    %p14 = scmp.ge.s32.totalorder %s13, 4
    %s23 = sphi 0, %s25
    %s26 = sphi 0, %s23
    %s27 = sphi 0, %s26
    %s43 = sphi 0, %s27
    %s49 = sphi 0, %s51
    %s52 = sphi 0, %s49
    %s53 = sphi 0, %s52
    %s69 = sphi 0, %s53
    %s75 = sphi 0, %s77
    %s78 = sphi 0, %s75
    %s79 = sphi 0, %s78
    %s95 = sphi 0, %s79
    %s99 = sphi 0, %s99
    %s101 = sphi 0, %s99
    %s102 = sphi 0, %s101
    %s116 = sphi 0, %s102
    %s120 = sphi 0, %s120
    %s122 = sphi 0, %s120
    %s123 = sphi 0, %s122
    %s137 = sphi 0, %s123
    %s141 = sphi 0, %s141
    %s143 = sphi 0, %s141
    %s144 = sphi 0, %s143
    %s158 = sphi 0, %s144
    %s162 = sphi 0, %s162
    %s164 = sphi 0, %s162
    %s165 = sphi 0, %s164
    %s179 = sphi 0, %s165
    %s185 = sphi 0, %s187
    %s188 = sphi 0, %s185
    %s189 = sphi 0, %s188
    %s205 = sphi 0, %s189
  $region4: #{dfcan_forward.17} parent=0 // loop_header_branch
    %16 = sbr.rel (%p14) target = $region8
  $region5: #{dfcan_forward.17} parent=0 // loop_body
    %s18 = ssub.s32 %s13, 1
    %s19 = ssub.s32 %s13, 2
    %s20 = sadd.s32 %s13, 1
    %s21 = ssub.s32 %s13, %s20
    %p22 = scmp.eq.s32.totalorder %s21, 0
    %s24 = sadd.s32 %s23, 1
    %s25 = scalar_select %p22, %s23, %s24
    %p28 = pneg %p22
    %p29 = scmp.eq.s32.totalorder %s13, 1
    %p30 = por %p28, %p29
    %p31 = scmp.ne.s32.totalorder %s23, %s26
    %p32 = scmp.eq.s32.totalorder %s13, 0
    %p33 = por %p31, %p32
    %p34 = scmp.ne.s32.totalorder %s23, %s26
    %p35 = scmp.eq.s32.totalorder %s18, 1
    %p36 = por %p34, %p35
    %p37 = scmp.ne.s32.totalorder %s26, %s27
    %p38 = scmp.eq.s32.totalorder %s18, 0
    %p39 = por %p37, %p38
    %p40 = scmp.ne.s32.totalorder %s26, %s27
    %p41 = scmp.eq.s32.totalorder %s19, 1
    %p42 = por %p40, %p41
    %p44 = scmp.ne.s32.totalorder %s27, %s43
    %p45 = scmp.eq.s32.totalorder %s19, 0
    %p46 = por %p44, %p45
    %s47 = ssub.s32 %s13, %s20
    %p48 = scmp.eq.s32.totalorder %s47, 0
    %s50 = sadd.s32 %s49, 1
    %s51 = scalar_select %p48, %s49, %s50
    %p54 = pneg %p48
    %p55 = scmp.eq.s32.totalorder %s13, 1
    %p56 = por %p54, %p55
    %p57 = scmp.ne.s32.totalorder %s49, %s52
    %p58 = scmp.eq.s32.totalorder %s13, 0
    %p59 = por %p57, %p58
    %p60 = scmp.ne.s32.totalorder %s49, %s52
    %p61 = scmp.eq.s32.totalorder %s18, 1
    %p62 = por %p60, %p61
    %p63 = scmp.ne.s32.totalorder %s52, %s53
    %p64 = scmp.eq.s32.totalorder %s18, 0
    %p65 = por %p63, %p64
    %p66 = scmp.ne.s32.totalorder %s52, %s53
    %p67 = scmp.eq.s32.totalorder %s19, 1
    %p68 = por %p66, %p67
    %p70 = scmp.ne.s32.totalorder %s53, %s69
    %p71 = scmp.eq.s32.totalorder %s19, 0
    %p72 = por %p70, %p71
    %s73 = ssub.s32 %s13, %s20
    %p74 = scmp.eq.s32.totalorder %s73, 0
    %s76 = sadd.s32 %s75, 1
    %s77 = scalar_select %p74, %s75, %s76
    %p80 = pneg %p74
    %p81 = scmp.eq.s32.totalorder %s13, 1
    %p82 = por %p80, %p81
    %p83 = scmp.ne.s32.totalorder %s75, %s78
    %p84 = scmp.eq.s32.totalorder %s13, 0
    %p85 = por %p83, %p84
    %p86 = scmp.ne.s32.totalorder %s75, %s78
    %p87 = scmp.eq.s32.totalorder %s18, 1
    %p88 = por %p86, %p87
    %p89 = scmp.ne.s32.totalorder %s78, %s79
    %p90 = scmp.eq.s32.totalorder %s18, 0
    %p91 = por %p89, %p90
    %p92 = scmp.ne.s32.totalorder %s78, %s79
    %p93 = scmp.eq.s32.totalorder %s19, 1
    %p94 = por %p92, %p93
    %p96 = scmp.ne.s32.totalorder %s79, %s95
    %p97 = scmp.eq.s32.totalorder %s19, 0
    %p98 = por %p96, %p97
    %s100 = sadd.s32 %s99, 1
    %p103 = scmp.eq.s32.totalorder %s13, 1
    %p104 = scmp.ne.s32.totalorder %s99, %s101
    %p105 = scmp.eq.s32.totalorder %s13, 0
    %p106 = por %p104, %p105
    %p107 = scmp.ne.s32.totalorder %s99, %s101
    %p108 = scmp.eq.s32.totalorder %s18, 1
    %p109 = por %p107, %p108
    %p110 = scmp.ne.s32.totalorder %s101, %s102
    %p111 = scmp.eq.s32.totalorder %s18, 0
    %p112 = por %p110, %p111
    %p113 = scmp.ne.s32.totalorder %s101, %s102
    %p114 = scmp.eq.s32.totalorder %s19, 1
    %p115 = por %p113, %p114
    %p117 = scmp.ne.s32.totalorder %s102, %s116
    %p118 = scmp.eq.s32.totalorder %s19, 0
    %p119 = por %p117, %p118
    %s121 = sadd.s32 %s120, 1
    %p124 = scmp.eq.s32.totalorder %s13, 1
    %p125 = scmp.ne.s32.totalorder %s120, %s122
    %p126 = scmp.eq.s32.totalorder %s13, 0
    %p127 = por %p125, %p126
    %p128 = scmp.ne.s32.totalorder %s120, %s122
    %p129 = scmp.eq.s32.totalorder %s18, 1
    %p130 = por %p128, %p129
    %p131 = scmp.ne.s32.totalorder %s122, %s123
    %p132 = scmp.eq.s32.totalorder %s18, 0
    %p133 = por %p131, %p132
    %p134 = scmp.ne.s32.totalorder %s122, %s123
    %p135 = scmp.eq.s32.totalorder %s19, 1
    %p136 = por %p134, %p135
    %p138 = scmp.ne.s32.totalorder %s123, %s137
    %p139 = scmp.eq.s32.totalorder %s19, 0
    %p140 = por %p138, %p139
    %s142 = sadd.s32 %s141, 1
    %p145 = scmp.eq.s32.totalorder %s13, 1
    %p146 = scmp.ne.s32.totalorder %s141, %s143
    %p147 = scmp.eq.s32.totalorder %s13, 0
    %p148 = por %p146, %p147
    %p149 = scmp.ne.s32.totalorder %s141, %s143
    %p150 = scmp.eq.s32.totalorder %s18, 1
    %p151 = por %p149, %p150
    %p152 = scmp.ne.s32.totalorder %s143, %s144
    %p153 = scmp.eq.s32.totalorder %s18, 0
    %p154 = por %p152, %p153
    %p155 = scmp.ne.s32.totalorder %s143, %s144
    %p156 = scmp.eq.s32.totalorder %s19, 1
    %p157 = por %p155, %p156
    %p159 = scmp.ne.s32.totalorder %s144, %s158
    %p160 = scmp.eq.s32.totalorder %s19, 0
    %p161 = por %p159, %p160
    %s163 = sadd.s32 %s162, 1
    %p166 = scmp.eq.s32.totalorder %s13, 1
    %p167 = scmp.ne.s32.totalorder %s162, %s164
    %p168 = scmp.eq.s32.totalorder %s13, 0
    %p169 = por %p167, %p168
    %p170 = scmp.ne.s32.totalorder %s162, %s164
    %p171 = scmp.eq.s32.totalorder %s18, 1
    %p172 = por %p170, %p171
    %p173 = scmp.ne.s32.totalorder %s164, %s165
    %p174 = scmp.eq.s32.totalorder %s18, 0
    %p175 = por %p173, %p174
    %p176 = scmp.ne.s32.totalorder %s164, %s165
    %p177 = scmp.eq.s32.totalorder %s19, 1
    %p178 = por %p176, %p177
    %p180 = scmp.ne.s32.totalorder %s165, %s179
    %p181 = scmp.eq.s32.totalorder %s19, 0
    %p182 = por %p180, %p181
    %s183 = ssub.s32 %s13, %s20
    %p184 = scmp.eq.s32.totalorder %s183, 0
    %s186 = sadd.s32 %s185, 1
    %s187 = scalar_select %p184, %s185, %s186
    %p190 = pneg %p184
    %p191 = scmp.eq.s32.totalorder %s13, 1
    %p192 = por %p190, %p191
    %p193 = scmp.ne.s32.totalorder %s185, %s188
    %p194 = scmp.eq.s32.totalorder %s13, 0
    %p195 = por %p193, %p194
    %p196 = scmp.ne.s32.totalorder %s185, %s188
    %p197 = scmp.eq.s32.totalorder %s18, 1
    %p198 = por %p196, %p197
    %p199 = scmp.ne.s32.totalorder %s188, %s189
    %p200 = scmp.eq.s32.totalorder %s18, 0
    %p201 = por %p199, %p200
    %p202 = scmp.ne.s32.totalorder %s188, %s189
    %p203 = scmp.eq.s32.totalorder %s19, 1
    %p204 = por %p202, %p203
    %p206 = scmp.ne.s32.totalorder %s189, %s205
    %p207 = scmp.eq.s32.totalorder %s19, 0
    %p208 = por %p206, %p207
    %p209 = scmp.le.s32.totalorder 1, %s13
    %p210 = scmp.lt.s32.totalorder %s13, 3
    %p211 = pnand %p209, %p210
    %p212 = pneg %p211
    // Predicated region
    $region9: #{dfcan_forward.17} parent=5 // pred_check
      _
    $region10: #{dfcan_forward.17} parent=5 // pred_check_branch
      %214 = sbr.rel (%p211) target = $region12
    $region11: #{dfcan_forward.17} parent=5 // pred_region
      %s215 = ssub.s32 %s13, 1
      // Predicated region
      $region13: #{dfcan_forward.17} parent=11 // pred_check
        %p216 = pneg %p112
      $region14: #{dfcan_forward.17} parent=11 // pred_check_branch
        %218 = sbr.rel (%p216) target = $region16
      $region15: #{dfcan_forward.17} parent=11 // pred_region
        _
      $region16: #{dfcan_forward.17} parent=11 // pred_fallthru
        _
      // Predicated region
      $region17: #{dfcan_forward.17} parent=11 // pred_check
        %p219 = pneg %p133
      $region18: #{dfcan_forward.17} parent=11 // pred_check_branch
        %221 = sbr.rel (%p219) target = $region20
      $region19: #{dfcan_forward.17} parent=11 // pred_region
        _
      $region20: #{dfcan_forward.17} parent=11 // pred_fallthru
        _
      // Predicated region
      $region21: #{dfcan_forward.17} parent=11 // pred_check
        %p222 = pneg %p154
      $region22: #{dfcan_forward.17} parent=11 // pred_check_branch
        %224 = sbr.rel (%p222) target = $region24
      $region23: #{dfcan_forward.17} parent=11 // pred_region
        _
      $region24: #{dfcan_forward.17} parent=11 // pred_fallthru
        _
      // Predicated region
      $region25: #{dfcan_forward.17} parent=11 // pred_check
        %p225 = pneg %p175
      $region26: #{dfcan_forward.17} parent=11 // pred_check_branch
        %227 = sbr.rel (%p225) target = $region28
      $region27: #{dfcan_forward.17} parent=11 // pred_region
        _
      $region28: #{dfcan_forward.17} parent=11 // pred_fallthru
        _
    $region12: #{dfcan_forward.17} parent=5 // pred_fallthru
      _
    %p228 = scmp.lt.s32.totalorder %s13, 2
    // Predicated region
    $region29: #{dfcan_forward.17} parent=5 // pred_check
      %p229 = pneg %p228
    $region30: #{dfcan_forward.17} parent=5 // pred_check_branch
      %231 = sbr.rel (%p229) target = $region32
    $region31: #{dfcan_forward.17} parent=5 // pred_region
      // Predicated region
      $region33: #{dfcan_forward.17} parent=31 // pred_check
        %p232 = pneg %p33
      $region34: #{dfcan_forward.17} parent=31 // pred_check_branch
        %234 = sbr.rel (%p232) target = $region36
      $region35: #{dfcan_forward.17} parent=31 // pred_region
        %p235 = scmp.lt.s32.totalorder %s13, 1
        %s236 = scalar_select %p235, %s13, 1
        %s237 = scalar_lea.vmem %s0, %s236
      $region36: #{dfcan_forward.17} parent=31 // pred_fallthru
        _
      // Predicated region
      $region37: #{dfcan_forward.17} parent=31 // pred_check
        %p238 = pneg %p59
      $region38: #{dfcan_forward.17} parent=31 // pred_check_branch
        %240 = sbr.rel (%p238) target = $region40
      $region39: #{dfcan_forward.17} parent=31 // pred_region
        %p241 = scmp.lt.s32.totalorder %s13, 1
        %s242 = scalar_select %p241, %s13, 1
        %s243 = smul.addr %s242, 32
        %s244 = smul.addr %s243, 8
        %s245 = scalar_lea.vmem %s1, %s244
      $region40: #{dfcan_forward.17} parent=31 // pred_fallthru
        _
      // Predicated region
      $region41: #{dfcan_forward.17} parent=31 // pred_check
        %p246 = pneg %p85
      $region42: #{dfcan_forward.17} parent=31 // pred_check_branch
        %248 = sbr.rel (%p246) target = $region44
      $region43: #{dfcan_forward.17} parent=31 // pred_region
        %p249 = scmp.lt.s32.totalorder %s13, 1
        %s250 = scalar_select %p249, %s13, 1
        %s251 = smul.addr %s250, 32
        %s252 = smul.addr %s251, 8
        %s253 = scalar_lea.vmem %s2, %s252
      $region44: #{dfcan_forward.17} parent=31 // pred_fallthru
        _
    $region32: #{dfcan_forward.17} parent=5 // pred_fallthru
      _
    %p254 = scmp.le.s32.totalorder 1, %s13
    %p255 = scmp.lt.s32.totalorder %s13, 3
    %p256 = pnand %p254, %p255
    %p257 = pneg %p256
    // Predicated region
    $region45: #{dfcan_forward.17} parent=5 // pred_check
      _
    $region46: #{dfcan_forward.17} parent=5 // pred_check_branch
      %259 = sbr.rel (%p256) target = $region48
    $region47: #{dfcan_forward.17} parent=5 // pred_region
      %s260 = ssub.s32 %s13, 1
      %p261 = scmp.lt.s32.totalorder %s18, 1
      %s262 = scalar_select %p261, %s18, 1
      %s263 = scalar_lea.vmem %s0, %s262
      %p264 = pneg %p39
      %p265 = pneg %p36
      %p266 = scmp.lt.s32.totalorder %s18, 1
      %s267 = scalar_select %p266, %s18, 1
      %s268 = smul.addr %s267, 32
      %s269 = smul.addr %s268, 8
      %s270 = scalar_lea.vmem %s1, %s269
      %p271 = pneg %p65
      %p272 = pneg %p62
      %p273 = scmp.lt.s32.totalorder %s18, 1
      %s274 = scalar_select %p273, %s18, 1
      %s275 = smul.addr %s274, 32
      %s276 = smul.addr %s275, 8
      %s277 = scalar_lea.vmem %s2, %s276
      %p278 = pneg %p91
      %p279 = pneg %p88
      %p280 = pneg %p112
      %p281 = pneg %p109
      %p282 = pneg %p133
      %p283 = pneg %p130
      %p284 = pneg %p154
      %p285 = pneg %p151
      %p286 = pneg %p175
      %p287 = pneg %p172
      %p288 = pneg %p201
      %p289 = pneg %p198
      %p290 = scmp.lt.s32.totalorder %s18, 1
      %s291 = scalar_select %p290, %s18, 1
      %s292 = smul.addr %s291, 32
      %s293 = smul.addr %s292, 8
      %s294 = scalar_lea.vmem %s7, %s293
      %p295 = scmp.lt.s32.totalorder %s18, 1
      %s296 = scalar_select %p295, %s18, 1
      %s297 = scalar_lea.vmem %s0, %s296
      %p298 = scmp.lt.s32.totalorder %s18, 1
      %s299 = scalar_select %p298, %s18, 1
      %s300 = smul.addr %s299, 32
      %s301 = smul.addr %s300, 8
      %s302 = scalar_lea.vmem %s1, %s301
      %p303 = scmp.lt.s32.totalorder %s18, 1
      %s304 = scalar_select %p303, %s18, 1
      %s305 = smul.addr %s304, 32
      %s306 = smul.addr %s305, 8
      %s307 = scalar_lea.vmem %s2, %s306
      %p308 = scmp.lt.s32.totalorder %s18, 1
      %s309 = scalar_select %p308, %s18, 1
      %s310 = smul.addr %s309, 32
      %s311 = smul.addr %s310, 8
      %s312 = scalar_lea.vmem %s7, %s311
      %v313 = vld [vmem:[%s297] sm:$0x1]
      %v314 = vld [vmem:[%s3] sm:$0xff]
      %v315 = vld [vmem:[%s3 + $0x8] sm:$0xff]
      %v316 = vld [vmem:[%s3 + $0x10] sm:$0xff]
      %v317 = vld [vmem:[%s3 + $0x18] sm:$0xff]
      %v318 = vld [vmem:[%s3 + $0x20] sm:$0xff]
      %v319 = vld [vmem:[%s3 + $0x28] sm:$0xff]
      %v320 = vld [vmem:[%s3 + $0x30] sm:$0xff]
      %v321 = vld [vmem:[%s3 + $0x38] sm:$0xff]
      %v322 = vld [vmem:[%s4] sm:$0x1]
      %vm323 = vcmask 523264
      %v325 = vsel %vm323, %v313, 0
      %327 = vmatprep.subr.mxu0 0.0
      %328 = vmatpush1.msra.mxu0 0.0
      %329 = vmatprep.subr.mxu0 0.0
      %330 = vmatpush1.msra.mxu0 0.0
      %331 = vmatprep.subr.mxu0 0.0
      %332 = vmatpush1.msra.mxu0 0.0
      %333 = vmatprep.subr.mxu0 0.0
      %334 = vmatpush1.msra.mxu0 0.0
      %335 = vmatprep.subr.mxu0 0.0
      %336 = vmatpush1.msra.mxu0 0.0
      %337 = vmatprep.subr.mxu0 0.0
      %338 = vmatpush1.msra.mxu0 0.0
      %339 = vmatprep.subr.mxu0 0.0
      %340 = vmatpush1.msra.mxu0 0.0
      %341 = vmatprep.subr.mxu0 0.0
      %342 = vmatpush1.msra.mxu0 0.0
      %343 = vmatprep.subr.mxu0 0.0
      %344 = vmatpush1.msra.mxu0 %v321
      %345 = vmatprep.subr.mxu0 0.0
      %346 = vmatpush1.msra.mxu0 %v320
      %347 = vmatprep.subr.mxu0 0.0
      %348 = vmatpush1.msra.mxu0 %v319
      %349 = vmatprep.subr.mxu0 0.0
      %350 = vmatpush1.msra.mxu0 %v318
      %351 = vmatprep.subr.mxu0 0.0
      %352 = vmatpush1.msra.mxu0 %v317
      %353 = vmatprep.subr.mxu0 0.0
      %354 = vmatpush1.msra.mxu0 %v316
      %355 = vmatprep.subr.mxu0 0.0
      %356 = vmatpush1.msra.mxu0 %v315
      %357 = vmatprep.subr.mxu0 0.0
      %358 = vmatpush1.msra.mxu0 %v314
      %359 = vmatprep.subr.mxu0 0.0
      %360 = vmatpush2.msra.mxu0 0.0
      %361 = vmatprep.subr.mxu0 0.0
      %362 = vmatpush2.msra.mxu0 0.0
      %363 = vmatprep.subr.mxu0 0.0
      %364 = vmatpush2.msra.mxu0 0.0
      %365 = vmatprep.subr.mxu0 0.0
      %366 = vmatpush2.msra.mxu0 0.0
      %367 = vmatprep.subr.mxu0 0.0
      %368 = vmatpush2.msra.mxu0 0.0
      %369 = vmatprep.subr.mxu0 0.0
      %370 = vmatpush2.msra.mxu0 0.0
      %371 = vmatprep.subr.mxu0 0.0
      %372 = vmatpush2.msra.mxu0 0.0
      %373 = vmatprep.subr.mxu0 0.0
      %374 = vmatpush2.msra.mxu0 0.0
      %375 = vmatprep.subr.mxu0 0.0
      %376 = vmatpush2.msra.mxu0 0.0
      %377 = vmatprep.subr.mxu0 0.0
      %378 = vmatpush2.msra.mxu0 0.0
      %379 = vmatprep.subr.mxu0 0.0
      %380 = vmatpush2.msra.mxu0 0.0
      %381 = vmatprep.subr.mxu0 0.0
      %382 = vmatpush2.msra.mxu0 0.0
      %383 = vmatprep.subr.mxu0 0.0
      %384 = vmatpush2.msra.mxu0 0.0
      %385 = vmatprep.subr.mxu0 0.0
      %386 = vmatpush2.msra.mxu0 0.0
      %387 = vmatprep.subr.mxu0 0.0
      %388 = vmatpush2.msra.mxu0 0.0
      %389 = vmatprep.subr.mxu0 0.0
      %390 = vmatpush2.msra.mxu0 0.0
      %391 = vmatprep.mubr.f32.mxu0 0.0
      %392 = vmatmul.mubr.f32.gmra.mxu0 %v325
      %v393 = vpop.f32.mrf.mxu0
      %v394 = vadd.f32 %v322, %v393
      %v395 = vpop.f32.mrf.mxu0
      %396 = vdwg.mxu0
      %v397 = vmax.f32 %v394, 0.0
      %v398 = vld [vmem:[%s5] sm:$0xf]
      %v399 = vld [vmem:[%s6] sm:$0x1]
      %vm400 = vcmask 31744
      %v402 = vsel %vm400, %v397, 0
      %vm404 = vcmask 1043456
      %v406 = vsel %vm404, %v398, 0
      %408 = vmatprep.subr.mxu0 0.0
      %409 = vmatpush1.msra.mxu0 0.0
      %410 = vmatprep.subr.mxu0 0.0
      %411 = vmatpush1.msra.mxu0 0.0
      %412 = vmatprep.subr.mxu0 0.0
      %413 = vmatpush1.msra.mxu0 0.0
      %414 = vmatprep.subr.mxu0 0.0
      %415 = vmatpush1.msra.mxu0 0.0
      %416 = vmatprep.subr.mxu0 0.0
      %417 = vmatpush1.msra.mxu0 0.0
      %418 = vmatprep.subr.mxu0 0.0
      %419 = vmatpush1.msra.mxu0 0.0
      %420 = vmatprep.subr.mxu0 0.0
      %421 = vmatpush1.msra.mxu0 0.0
      %422 = vmatprep.subr.mxu0 0.0
      %423 = vmatpush1.msra.mxu0 0.0
      %424 = vmatprep.subr.mxu0 0.0
      %425 = vmatpush1.msra.mxu0 0.0
      %426 = vmatprep.subr.mxu0 0.0
      %427 = vmatpush1.msra.mxu0 0.0
      %428 = vmatprep.subr.mxu0 0.0
      %429 = vmatpush1.msra.mxu0 0.0
      %430 = vmatprep.subr.mxu0 0.0
      %431 = vmatpush1.msra.mxu0 0.0
      %432 = vmatprep.subr.mxu0 0.0
      %433 = vmatpush1.msra.mxu0 0.0
      %434 = vmatprep.subr.mxu0 0.0
      %435 = vmatpush1.msra.mxu0 0.0
      %436 = vmatprep.subr.mxu0 0.0
      %437 = vmatpush1.msra.mxu0 0.0
      %438 = vmatprep.subr.mxu0 0.0
      %439 = vmatpush1.msra.mxu0 %v406
      %440 = vmatprep.subr.mxu0 0.0
      %441 = vmatpush2.msra.mxu0 0.0
      %442 = vmatprep.subr.mxu0 0.0
      %443 = vmatpush2.msra.mxu0 0.0
      %444 = vmatprep.subr.mxu0 0.0
      %445 = vmatpush2.msra.mxu0 0.0
      %446 = vmatprep.subr.mxu0 0.0
      %447 = vmatpush2.msra.mxu0 0.0
      %448 = vmatprep.subr.mxu0 0.0
      %449 = vmatpush2.msra.mxu0 0.0
      %450 = vmatprep.subr.mxu0 0.0
      %451 = vmatpush2.msra.mxu0 0.0
      %452 = vmatprep.subr.mxu0 0.0
      %453 = vmatpush2.msra.mxu0 0.0
      %454 = vmatprep.subr.mxu0 0.0
      %455 = vmatpush2.msra.mxu0 0.0
      %456 = vmatprep.subr.mxu0 0.0
      %457 = vmatpush2.msra.mxu0 0.0
      %458 = vmatprep.subr.mxu0 0.0
      %459 = vmatpush2.msra.mxu0 0.0
      %460 = vmatprep.subr.mxu0 0.0
      %461 = vmatpush2.msra.mxu0 0.0
      %462 = vmatprep.subr.mxu0 0.0
      %463 = vmatpush2.msra.mxu0 0.0
      %464 = vmatprep.subr.mxu0 0.0
      %465 = vmatpush2.msra.mxu0 0.0
      %466 = vmatprep.subr.mxu0 0.0
      %467 = vmatpush2.msra.mxu0 0.0
      %468 = vmatprep.subr.mxu0 0.0
      %469 = vmatpush2.msra.mxu0 0.0
      %470 = vmatprep.subr.mxu0 0.0
      %471 = vmatpush2.msra.mxu0 0.0
      %472 = vmatprep.mubr.f32.mxu0 0.0
      %473 = vmatmul.mubr.f32.gmra.mxu0 %v402
      %v474 = vpop.f32.mrf.mxu0
      %v475 = vadd.f32 %v399, %v474
      %v476 = vpop.f32.mrf.mxu0
      %477 = vdwg.mxu0
      %v478 = vxor.u32 %v475, 2147483648
      %v479 = vmul.f32 %v478, 1.442695
      %v480 = vpow.pop %v479
      %v481 = vadd.f32 %v480, 1.0
      %v482 = vrcp.pop %v481
      %v483 = vmul.f32 1.0, %v482
      %v484 = vld [vmem:[%s302] sm:$0xff]
      %v485 = vld [vmem:[%s302 + $0x8] sm:$0xff]
      %v486 = vld [vmem:[%s302 + $0x10] sm:$0xff]
      %v487 = vld [vmem:[%s302 + $0x18] sm:$0xff]
      %v488 = vld [vmem:[%s302 + $0x20] sm:$0xff]
      %v489 = vld [vmem:[%s302 + $0x28] sm:$0xff]
      %v490 = vld [vmem:[%s302 + $0x30] sm:$0xff]
      %v491 = vld [vmem:[%s302 + $0x38] sm:$0xff]
      %v492 = vld [vmem:[%s302 + $0x40] sm:$0xff]
      %v493 = vld [vmem:[%s302 + $0x48] sm:$0xff]
      %v494 = vld [vmem:[%s302 + $0x50] sm:$0xff]
      %v495 = vld [vmem:[%s302 + $0x58] sm:$0xff]
      %v496 = vld [vmem:[%s302 + $0x60] sm:$0xff]
      %v497 = vld [vmem:[%s302 + $0x68] sm:$0xff]
      %v498 = vld [vmem:[%s302 + $0x70] sm:$0xff]
      %v499 = vld [vmem:[%s302 + $0x78] sm:$0xff]
      %v500 = vld [vmem:[%s302 + $0x80] sm:$0xff]
      %v501 = vld [vmem:[%s302 + $0x88] sm:$0xff]
      %v502 = vld [vmem:[%s302 + $0x90] sm:$0xff]
      %v503 = vld [vmem:[%s302 + $0x98] sm:$0xff]
      %v504 = vld [vmem:[%s302 + $0xa0] sm:$0xff]
      %v505 = vld [vmem:[%s302 + $0xa8] sm:$0xff]
      %v506 = vld [vmem:[%s302 + $0xb0] sm:$0xff]
      %v507 = vld [vmem:[%s302 + $0xb8] sm:$0xff]
      %v508 = vld [vmem:[%s302 + $0xc0] sm:$0xff]
      %v509 = vld [vmem:[%s302 + $0xc8] sm:$0xff]
      %v510 = vld [vmem:[%s302 + $0xd0] sm:$0xff]
      %v511 = vld [vmem:[%s302 + $0xd8] sm:$0xff]
      %v512 = vld [vmem:[%s302 + $0xe0] sm:$0xff]
      %v513 = vld [vmem:[%s302 + $0xe8] sm:$0xff]
      %v514 = vld [vmem:[%s302 + $0xf0] sm:$0xff]
      %v515 = vld [vmem:[%s302 + $0xf8] sm:$0xff]
      %v516 = vlaneseq
      %v517 = vshrl.u32 %v516, 7
      %v518 = vsub.s32 0, %v517
      %v519 = vrot.slane %v483, %v518
      %v520 = vmul.f32 %v484, %v519
      %v521 = vmul.f32 %v485, %v519
      %v522 = vmul.f32 %v486, %v519
      %v523 = vmul.f32 %v487, %v519
      %v524 = vmul.f32 %v488, %v519
      %v525 = vmul.f32 %v489, %v519
      %v526 = vmul.f32 %v490, %v519
      %v527 = vmul.f32 %v491, %v519
      %v528 = vmul.f32 %v492, %v519
      %v529 = vmul.f32 %v493, %v519
      %v530 = vmul.f32 %v494, %v519
      %v531 = vmul.f32 %v495, %v519
      %v532 = vmul.f32 %v496, %v519
      %v533 = vmul.f32 %v497, %v519
      %v534 = vmul.f32 %v498, %v519
      %v535 = vmul.f32 %v499, %v519
      %v536 = vmul.f32 %v500, %v519
      %v537 = vmul.f32 %v501, %v519
      %v538 = vmul.f32 %v502, %v519
      %v539 = vmul.f32 %v503, %v519
      %v540 = vmul.f32 %v504, %v519
      %v541 = vmul.f32 %v505, %v519
      %v542 = vmul.f32 %v506, %v519
      %v543 = vmul.f32 %v507, %v519
      %v544 = vmul.f32 %v508, %v519
      %v545 = vmul.f32 %v509, %v519
      %v546 = vmul.f32 %v510, %v519
      %v547 = vmul.f32 %v511, %v519
      %v548 = vmul.f32 %v512, %v519
      %v549 = vmul.f32 %v513, %v519
      %v550 = vmul.f32 %v514, %v519
      %v551 = vmul.f32 %v515, %v519
      %v552 = vld [vmem:[%s307] sm:$0xff]
      %v553 = vld [vmem:[%s307 + $0x8] sm:$0xff]
      %v554 = vld [vmem:[%s307 + $0x10] sm:$0xff]
      %v555 = vld [vmem:[%s307 + $0x18] sm:$0xff]
      %v556 = vld [vmem:[%s307 + $0x20] sm:$0xff]
      %v557 = vld [vmem:[%s307 + $0x28] sm:$0xff]
      %v558 = vld [vmem:[%s307 + $0x30] sm:$0xff]
      %v559 = vld [vmem:[%s307 + $0x38] sm:$0xff]
      %v560 = vld [vmem:[%s307 + $0x40] sm:$0xff]
      %v561 = vld [vmem:[%s307 + $0x48] sm:$0xff]
      %v562 = vld [vmem:[%s307 + $0x50] sm:$0xff]
      %v563 = vld [vmem:[%s307 + $0x58] sm:$0xff]
      %v564 = vld [vmem:[%s307 + $0x60] sm:$0xff]
      %v565 = vld [vmem:[%s307 + $0x68] sm:$0xff]
      %v566 = vld [vmem:[%s307 + $0x70] sm:$0xff]
      %v567 = vld [vmem:[%s307 + $0x78] sm:$0xff]
      %v568 = vld [vmem:[%s307 + $0x80] sm:$0xff]
      %v569 = vld [vmem:[%s307 + $0x88] sm:$0xff]
      %v570 = vld [vmem:[%s307 + $0x90] sm:$0xff]
      %v571 = vld [vmem:[%s307 + $0x98] sm:$0xff]
      %v572 = vld [vmem:[%s307 + $0xa0] sm:$0xff]
      %v573 = vld [vmem:[%s307 + $0xa8] sm:$0xff]
      %v574 = vld [vmem:[%s307 + $0xb0] sm:$0xff]
      %v575 = vld [vmem:[%s307 + $0xb8] sm:$0xff]
      %v576 = vld [vmem:[%s307 + $0xc0] sm:$0xff]
      %v577 = vld [vmem:[%s307 + $0xc8] sm:$0xff]
      %v578 = vld [vmem:[%s307 + $0xd0] sm:$0xff]
      %v579 = vld [vmem:[%s307 + $0xd8] sm:$0xff]
      %v580 = vld [vmem:[%s307 + $0xe0] sm:$0xff]
      %v581 = vld [vmem:[%s307 + $0xe8] sm:$0xff]
      %v582 = vld [vmem:[%s307 + $0xf0] sm:$0xff]
      %v583 = vld [vmem:[%s307 + $0xf8] sm:$0xff]
      %v584 = vadd.f32 %v520, %v552
      %v585 = vadd.f32 %v521, %v553
      %v586 = vadd.f32 %v522, %v554
      %v587 = vadd.f32 %v523, %v555
      %v588 = vadd.f32 %v524, %v556
      %v589 = vadd.f32 %v525, %v557
      %v590 = vadd.f32 %v526, %v558
      %v591 = vadd.f32 %v527, %v559
      %v592 = vadd.f32 %v528, %v560
      %v593 = vadd.f32 %v529, %v561
      %v594 = vadd.f32 %v530, %v562
      %v595 = vadd.f32 %v531, %v563
      %v596 = vadd.f32 %v532, %v564
      %v597 = vadd.f32 %v533, %v565
      %v598 = vadd.f32 %v534, %v566
      %v599 = vadd.f32 %v535, %v567
      %v600 = vadd.f32 %v536, %v568
      %v601 = vadd.f32 %v537, %v569
      %v602 = vadd.f32 %v538, %v570
      %v603 = vadd.f32 %v539, %v571
      %v604 = vadd.f32 %v540, %v572
      %v605 = vadd.f32 %v541, %v573
      %v606 = vadd.f32 %v542, %v574
      %v607 = vadd.f32 %v543, %v575
      %v608 = vadd.f32 %v544, %v576
      %v609 = vadd.f32 %v545, %v577
      %v610 = vadd.f32 %v546, %v578
      %v611 = vadd.f32 %v547, %v579
      %v612 = vadd.f32 %v548, %v580
      %v613 = vadd.f32 %v549, %v581
      %v614 = vadd.f32 %v550, %v582
      %v615 = vadd.f32 %v551, %v583
      %616 = vst.msk [vmem:[%s312] sm:$0xff] %vm323, %v584
      %617 = vst.msk [vmem:[%s312 + $0x8] sm:$0xff] %vm323, %v585
      %618 = vst.msk [vmem:[%s312 + $0x10] sm:$0xff] %vm323, %v586
      %619 = vst.msk [vmem:[%s312 + $0x18] sm:$0xff] %vm323, %v587
      %620 = vst.msk [vmem:[%s312 + $0x20] sm:$0xff] %vm323, %v588
      %621 = vst.msk [vmem:[%s312 + $0x28] sm:$0xff] %vm323, %v589
      %622 = vst.msk [vmem:[%s312 + $0x30] sm:$0xff] %vm323, %v590
      %623 = vst.msk [vmem:[%s312 + $0x38] sm:$0xff] %vm323, %v591
      %624 = vst.msk [vmem:[%s312 + $0x40] sm:$0xff] %vm323, %v592
      %625 = vst.msk [vmem:[%s312 + $0x48] sm:$0xff] %vm323, %v593
      %626 = vst.msk [vmem:[%s312 + $0x50] sm:$0xff] %vm323, %v594
      %627 = vst.msk [vmem:[%s312 + $0x58] sm:$0xff] %vm323, %v595
      %628 = vst.msk [vmem:[%s312 + $0x60] sm:$0xff] %vm323, %v596
      %629 = vst.msk [vmem:[%s312 + $0x68] sm:$0xff] %vm323, %v597
      %630 = vst.msk [vmem:[%s312 + $0x70] sm:$0xff] %vm323, %v598
      %631 = vst.msk [vmem:[%s312 + $0x78] sm:$0xff] %vm323, %v599
      %632 = vst.msk [vmem:[%s312 + $0x80] sm:$0xff] %vm323, %v600
      %633 = vst.msk [vmem:[%s312 + $0x88] sm:$0xff] %vm323, %v601
      %634 = vst.msk [vmem:[%s312 + $0x90] sm:$0xff] %vm323, %v602
      %635 = vst.msk [vmem:[%s312 + $0x98] sm:$0xff] %vm323, %v603
      %636 = vst.msk [vmem:[%s312 + $0xa0] sm:$0xff] %vm323, %v604
      %637 = vst.msk [vmem:[%s312 + $0xa8] sm:$0xff] %vm323, %v605
      %638 = vst.msk [vmem:[%s312 + $0xb0] sm:$0xff] %vm323, %v606
      %639 = vst.msk [vmem:[%s312 + $0xb8] sm:$0xff] %vm323, %v607
      %640 = vst.msk [vmem:[%s312 + $0xc0] sm:$0xff] %vm323, %v608
      %641 = vst.msk [vmem:[%s312 + $0xc8] sm:$0xff] %vm323, %v609
      %642 = vst.msk [vmem:[%s312 + $0xd0] sm:$0xff] %vm323, %v610
      %643 = vst.msk [vmem:[%s312 + $0xd8] sm:$0xff] %vm323, %v611
      %644 = vst.msk [vmem:[%s312 + $0xe0] sm:$0xff] %vm323, %v612
      %645 = vst.msk [vmem:[%s312 + $0xe8] sm:$0xff] %vm323, %v613
      %646 = vst.msk [vmem:[%s312 + $0xf0] sm:$0xff] %vm323, %v614
      %647 = vst.msk [vmem:[%s312 + $0xf8] sm:$0xff] %vm323, %v615
      %p648 = scmp.lt.s32.totalorder %s18, 1
      %s649 = scalar_select %p648, %s18, 1
      %s650 = smul.addr %s649, 32
      %s651 = smul.addr %s650, 8
      %s652 = scalar_lea.vmem %s7, %s651
      // Predicated region
      $region49: #{dfcan_forward.17} parent=47 // pred_check
        %p653 = pneg %p198
      $region50: #{dfcan_forward.17} parent=47 // pred_check_branch
        %655 = sbr.rel (%p653) target = $region52
      $region51: #{dfcan_forward.17} parent=47 // pred_region
        _
      $region52: #{dfcan_forward.17} parent=47 // pred_fallthru
        _
    $region48: #{dfcan_forward.17} parent=5 // pred_fallthru
      _
    %p656 = scmp.le.s32.totalorder 2, %s13
    // Predicated region
    $region53: #{dfcan_forward.17} parent=5 // pred_check
      %p657 = pneg %p656
    $region54: #{dfcan_forward.17} parent=5 // pred_check_branch
      %659 = sbr.rel (%p657) target = $region56
    $region55: #{dfcan_forward.17} parent=5 // pred_region
      %s660 = ssub.s32 %s13, 2
      // Predicated region
      $region57: #{dfcan_forward.17} parent=55 // pred_check
        %p661 = pneg %p204
      $region58: #{dfcan_forward.17} parent=55 // pred_check_branch
        %663 = sbr.rel (%p661) target = $region60
      $region59: #{dfcan_forward.17} parent=55 // pred_region
        %p664 = scmp.lt.s32.totalorder %s19, 1
        %s665 = scalar_select %p664, %s19, 1
        %s666 = smul.addr %s665, 32
        %s667 = smul.addr %s666, 8
        %s668 = scalar_lea.vmem %s7, %s667
      $region60: #{dfcan_forward.17} parent=55 // pred_fallthru
        _
    $region56: #{dfcan_forward.17} parent=5 // pred_fallthru
      _
  $region6: #{dfcan_forward.17} parent=0 // loop_footer
    %s17 = sadd.s32 1, %s13
  $region7: #{dfcan_forward.17} parent=0 // loop_footer_branch
    %12 = sbr.rel target = $region3
  $region8: #{dfcan_forward.17} parent=0 // loop_exit
    _

// kernel: dfcan_forward.27
$region0: #{dfcan_forward.27}
  #allocation0 [shape = 'u32[]', space=smem, size = 0x4, offset = 0x4, fixed_abs, tag = 'smem constant byte address 0x4 - core index']
  #allocation1 [shape = 'u32[144,128]{1,0:T(1,128)}', space=vmem, size = 0x12000, scoped, tag = 'internal scratch']
  #allocation2 [shape = 'f32[1,1]{1,0:T(1,128)S(1)}', space=vmem, size = 0x200, scoped, tag = 'scoped memory for dfcan_forward.27']
  %s0 = inlined_call_operand.vmem [shape: f32[2,18,18,64], index: 0, kind: input, shape index: {}]
  %s1 = inlined_call_operand.vmem [shape: f32[1,576], index: 1, kind: input, shape index: {}]
  %s2 = inlined_call_operand.<no memory space> [shape: f32[1,1], index: 2, kind: input, shape index: {}]
  %s3 = inlined_call_operand.vmem [shape: f32[2,1,256], index: 3, kind: output, shape index: {}]
  %s4 = sld [smem:[#allocation0]]
  $region45: #{dfcan_forward.27} parent=0
    _
  %s6 = ssub.s32 1, %s4
  %s7 = scalar_select 0, %s6, %s4
  %v8 = vstv %s2
  %9 = vst [vmem:[#allocation2] sm:$0x1] %v8
  loop: start=0, step=1, limit=4
  $region2: #{dfcan_forward.27} parent=0 // loop_pre_header
    _
  $region3: #{dfcan_forward.27} parent=0 // loop_header
    %s11 = sphi 0, %s15
    %p12 = scmp.ge.s32.totalorder %s11, 4
    %s21 = sphi 0, %s23
    %s24 = sphi 0, %s21
    %s25 = sphi 0, %s24
    %s41 = sphi 0, %s25
    %s45 = sphi 0, %s45
    %s47 = sphi 0, %s45
    %s48 = sphi 0, %s47
    %s62 = sphi 0, %s48
    %s66 = sphi 0, %s66
    %s68 = sphi 0, %s66
    %s69 = sphi 0, %s68
    %s83 = sphi 0, %s69
    %s89 = sphi 0, %s91
    %s92 = sphi 0, %s89
    %s93 = sphi 0, %s92
    %s109 = sphi 0, %s93
  $region4: #{dfcan_forward.27} parent=0 // loop_header_branch
    %14 = sbr.rel (%p12) target = $region8
  $region5: #{dfcan_forward.27} parent=0 // loop_body
    %s16 = ssub.s32 %s11, 1
    %s17 = ssub.s32 %s11, 2
    %s18 = sadd.s32 %s11, 1
    %s19 = ssub.s32 %s11, %s18
    %p20 = scmp.eq.s32.totalorder %s19, 0
    %s22 = sadd.s32 %s21, 1
    %s23 = scalar_select %p20, %s21, %s22
    %p26 = pneg %p20
    %p27 = scmp.eq.s32.totalorder %s11, 1
    %p28 = por %p26, %p27
    %p29 = scmp.ne.s32.totalorder %s21, %s24
    %p30 = scmp.eq.s32.totalorder %s11, 0
    %p31 = por %p29, %p30
    %p32 = scmp.ne.s32.totalorder %s21, %s24
    %p33 = scmp.eq.s32.totalorder %s16, 1
    %p34 = por %p32, %p33
    %p35 = scmp.ne.s32.totalorder %s24, %s25
    %p36 = scmp.eq.s32.totalorder %s16, 0
    %p37 = por %p35, %p36
    %p38 = scmp.ne.s32.totalorder %s24, %s25
    %p39 = scmp.eq.s32.totalorder %s17, 1
    %p40 = por %p38, %p39
    %p42 = scmp.ne.s32.totalorder %s25, %s41
    %p43 = scmp.eq.s32.totalorder %s17, 0
    %p44 = por %p42, %p43
    %s46 = sadd.s32 %s45, 1
    %p49 = scmp.eq.s32.totalorder %s11, 1
    %p50 = scmp.ne.s32.totalorder %s45, %s47
    %p51 = scmp.eq.s32.totalorder %s11, 0
    %p52 = por %p50, %p51
    %p53 = scmp.ne.s32.totalorder %s45, %s47
    %p54 = scmp.eq.s32.totalorder %s16, 1
    %p55 = por %p53, %p54
    %p56 = scmp.ne.s32.totalorder %s47, %s48
    %p57 = scmp.eq.s32.totalorder %s16, 0
    %p58 = por %p56, %p57
    %p59 = scmp.ne.s32.totalorder %s47, %s48
    %p60 = scmp.eq.s32.totalorder %s17, 1
    %p61 = por %p59, %p60
    %p63 = scmp.ne.s32.totalorder %s48, %s62
    %p64 = scmp.eq.s32.totalorder %s17, 0
    %p65 = por %p63, %p64
    %s67 = sadd.s32 %s66, 1
    %p70 = scmp.eq.s32.totalorder %s11, 1
    %p71 = scmp.ne.s32.totalorder %s66, %s68
    %p72 = scmp.eq.s32.totalorder %s11, 0
    %p73 = por %p71, %p72
    %p74 = scmp.ne.s32.totalorder %s66, %s68
    %p75 = scmp.eq.s32.totalorder %s16, 1
    %p76 = por %p74, %p75
    %p77 = scmp.ne.s32.totalorder %s68, %s69
    %p78 = scmp.eq.s32.totalorder %s16, 0
    %p79 = por %p77, %p78
    %p80 = scmp.ne.s32.totalorder %s68, %s69
    %p81 = scmp.eq.s32.totalorder %s17, 1
    %p82 = por %p80, %p81
    %p84 = scmp.ne.s32.totalorder %s69, %s83
    %p85 = scmp.eq.s32.totalorder %s17, 0
    %p86 = por %p84, %p85
    %s87 = ssub.s32 %s11, %s18
    %p88 = scmp.eq.s32.totalorder %s87, 0
    %s90 = sadd.s32 %s89, 1
    %s91 = scalar_select %p88, %s89, %s90
    %p94 = pneg %p88
    %p95 = scmp.eq.s32.totalorder %s11, 1
    %p96 = por %p94, %p95
    %p97 = scmp.ne.s32.totalorder %s89, %s92
    %p98 = scmp.eq.s32.totalorder %s11, 0
    %p99 = por %p97, %p98
    %p100 = scmp.ne.s32.totalorder %s89, %s92
    %p101 = scmp.eq.s32.totalorder %s16, 1
    %p102 = por %p100, %p101
    %p103 = scmp.ne.s32.totalorder %s92, %s93
    %p104 = scmp.eq.s32.totalorder %s16, 0
    %p105 = por %p103, %p104
    %p106 = scmp.ne.s32.totalorder %s92, %s93
    %p107 = scmp.eq.s32.totalorder %s17, 1
    %p108 = por %p106, %p107
    %p110 = scmp.ne.s32.totalorder %s93, %s109
    %p111 = scmp.eq.s32.totalorder %s17, 0
    %p112 = por %p110, %p111
    %p113 = scmp.le.s32.totalorder 1, %s11
    %p114 = scmp.lt.s32.totalorder %s11, 3
    %p115 = pnand %p113, %p114
    %p116 = pneg %p115
    // Predicated region
    $region9: #{dfcan_forward.27} parent=5 // pred_check
      _
    $region10: #{dfcan_forward.27} parent=5 // pred_check_branch
      %118 = sbr.rel (%p115) target = $region12
    $region11: #{dfcan_forward.27} parent=5 // pred_region
      %s119 = ssub.s32 %s11, 1
      // Predicated region
      $region13: #{dfcan_forward.27} parent=11 // pred_check
        %p120 = pneg %p58
      $region14: #{dfcan_forward.27} parent=11 // pred_check_branch
        %122 = sbr.rel (%p120) target = $region16
      $region15: #{dfcan_forward.27} parent=11 // pred_region
        _
      $region16: #{dfcan_forward.27} parent=11 // pred_fallthru
        _
      // Predicated region
      $region17: #{dfcan_forward.27} parent=11 // pred_check
        %p123 = pneg %p79
      $region18: #{dfcan_forward.27} parent=11 // pred_check_branch
        %125 = sbr.rel (%p123) target = $region20
      $region19: #{dfcan_forward.27} parent=11 // pred_region
        _
      $region20: #{dfcan_forward.27} parent=11 // pred_fallthru
        _
    $region12: #{dfcan_forward.27} parent=5 // pred_fallthru
      _
    %p126 = scmp.lt.s32.totalorder %s11, 2
    // Predicated region
    $region21: #{dfcan_forward.27} parent=5 // pred_check
      %p127 = pneg %p126
    $region22: #{dfcan_forward.27} parent=5 // pred_check_branch
      %129 = sbr.rel (%p127) target = $region24
    $region23: #{dfcan_forward.27} parent=5 // pred_region
      // Predicated region
      $region25: #{dfcan_forward.27} parent=23 // pred_check
        %p130 = pneg %p31
      $region26: #{dfcan_forward.27} parent=23 // pred_check_branch
        %132 = sbr.rel (%p130) target = $region28
      $region27: #{dfcan_forward.27} parent=23 // pred_region
        %p133 = scmp.lt.s32.totalorder %s11, 1
        %s134 = scalar_select %p133, %s11, 1
        %s135 = smul.addr %s134, 54
        %s136 = smul.addr %s135, 8
        %s137 = scalar_lea.vmem %s0, %s136
      $region28: #{dfcan_forward.27} parent=23 // pred_fallthru
        _
    $region24: #{dfcan_forward.27} parent=5 // pred_fallthru
      _
    %p138 = scmp.le.s32.totalorder 1, %s11
    %p139 = scmp.lt.s32.totalorder %s11, 3
    %p140 = pnand %p138, %p139
    %p141 = pneg %p140
    // Predicated region
    $region29: #{dfcan_forward.27} parent=5 // pred_check
      _
    $region30: #{dfcan_forward.27} parent=5 // pred_check_branch
      %143 = sbr.rel (%p140) target = $region32
    $region31: #{dfcan_forward.27} parent=5 // pred_region
      %s144 = ssub.s32 %s11, 1
      %p145 = scmp.lt.s32.totalorder %s16, 1
      %s146 = scalar_select %p145, %s16, 1
      %s147 = smul.addr %s146, 54
      %s148 = smul.addr %s147, 8
      %s149 = scalar_lea.vmem %s0, %s148
      %p150 = pneg %p37
      %p151 = pneg %p34
      %p152 = pneg %p58
      %p153 = pneg %p55
      %p154 = pneg %p79
      %p155 = pneg %p76
      %p156 = pneg %p105
      %p157 = pneg %p102
      %p158 = scmp.lt.s32.totalorder %s16, 1
      %s159 = scalar_select %p158, %s16, 1
      %s160 = smul.addr %s159, 2
      %s161 = scalar_lea.vmem %s3, %s160
      %p162 = scmp.lt.s32.totalorder %s16, 1
      %s163 = scalar_select %p162, %s16, 1
      %s164 = smul.addr %s163, 54
      %s165 = smul.addr %s164, 8
      %s166 = scalar_lea.vmem %s0, %s165
      %p167 = scmp.lt.s32.totalorder %s16, 1
      %s168 = scalar_select %p167, %s16, 1
      %s169 = smul.addr %s168, 2
      %s170 = scalar_lea.vmem %s3, %s169
      %v171 = vld [vmem:[%s166] sm:$0xff]
      %v172 = vld [vmem:[%s166 + $0x8] sm:$0xff]
      %v173 = vld [vmem:[%s166 + $0x10] sm:$0x3]
      %v174 = vld [vmem:[%s166 + $0x18] sm:$0xff]
      %v175 = vld [vmem:[%s166 + $0x20] sm:$0xff]
      %v176 = vld [vmem:[%s166 + $0x28] sm:$0x3]
      %v177 = vld [vmem:[%s166 + $0x30] sm:$0xff]
      %v178 = vld [vmem:[%s166 + $0x38] sm:$0xff]
      %v179 = vld [vmem:[%s166 + $0x40] sm:$0x3]
      %v180 = vld [vmem:[%s166 + $0x48] sm:$0xff]
      %v181 = vld [vmem:[%s166 + $0x50] sm:$0xff]
      %v182 = vld [vmem:[%s166 + $0x58] sm:$0x3]
      %v183 = vld [vmem:[%s166 + $0x60] sm:$0xff]
      %v184 = vld [vmem:[%s166 + $0x68] sm:$0xff]
      %v185 = vld [vmem:[%s166 + $0x70] sm:$0x3]
      %v186 = vld [vmem:[%s166 + $0x78] sm:$0xff]
      %v187 = vld [vmem:[%s166 + $0x80] sm:$0xff]
      %v188 = vld [vmem:[%s166 + $0x88] sm:$0x3]
      %v189 = vld [vmem:[%s166 + $0x90] sm:$0xff]
      %v190 = vld [vmem:[%s166 + $0x98] sm:$0xff]
      %v191 = vld [vmem:[%s166 + $0xa0] sm:$0x3]
      %v192 = vld [vmem:[%s166 + $0xa8] sm:$0xff]
      %v193 = vld [vmem:[%s166 + $0xb0] sm:$0xff]
      %v194 = vld [vmem:[%s166 + $0xb8] sm:$0x3]
      %v195 = vld [vmem:[%s166 + $0xc0] sm:$0xff]
      %v196 = vld [vmem:[%s166 + $0xc8] sm:$0xff]
      %v197 = vld [vmem:[%s166 + $0xd0] sm:$0x3]
      %v198 = vld [vmem:[%s166 + $0xd8] sm:$0xff]
      %v199 = vld [vmem:[%s166 + $0xe0] sm:$0xff]
      %v200 = vld [vmem:[%s166 + $0xe8] sm:$0x3]
      %v201 = vld [vmem:[%s166 + $0xf0] sm:$0xff]
      %v202 = vld [vmem:[%s166 + $0xf8] sm:$0xff]
      %v203 = vld [vmem:[%s166 + $0x100] sm:$0x3]
      %v204 = vld [vmem:[%s166 + $0x108] sm:$0xff]
      %v205 = vld [vmem:[%s166 + $0x110] sm:$0xff]
      %v206 = vld [vmem:[%s166 + $0x118] sm:$0x3]
      %v207 = vld [vmem:[%s166 + $0x120] sm:$0xff]
      %v208 = vld [vmem:[%s166 + $0x128] sm:$0xff]
      %v209 = vld [vmem:[%s166 + $0x130] sm:$0x3]
      %v210 = vld [vmem:[%s166 + $0x138] sm:$0xff]
      %v211 = vld [vmem:[%s166 + $0x140] sm:$0xff]
      %v212 = vld [vmem:[%s166 + $0x148] sm:$0x3]
      %v213 = vld [vmem:[%s166 + $0x150] sm:$0xff]
      %v214 = vld [vmem:[%s166 + $0x158] sm:$0xff]
      %v215 = vld [vmem:[%s166 + $0x160] sm:$0x3]
      %v216 = vld [vmem:[%s166 + $0x168] sm:$0xff]
      %v217 = vld [vmem:[%s166 + $0x170] sm:$0xff]
      %v218 = vld [vmem:[%s166 + $0x178] sm:$0x3]
      %v219 = vld [vmem:[%s166 + $0x180] sm:$0xff]
      %v220 = vld [vmem:[%s166 + $0x188] sm:$0xff]
      %v221 = vld [vmem:[%s166 + $0x190] sm:$0x3]
      %v222 = vld [vmem:[%s166 + $0x198] sm:$0xff]
      %v223 = vld [vmem:[%s166 + $0x1a0] sm:$0xff]
      %v224 = vld [vmem:[%s166 + $0x1a8] sm:$0x3]
      %vm279 = vcmask 1046528
      %v280 = vrot.slane %v171, 1
      %v281 = vrot.slane %v172, 1
      %v282 = vsel %vm279, %v280, %v281
      %v283 = vrot.slane %v173, 1
      %v284 = vsel %vm279, %v281, %v283
      %v285 = vrot.slane %v174, 1
      %v286 = vrot.slane %v175, 1
      %v287 = vsel %vm279, %v285, %v286
      %v288 = vrot.slane %v176, 1
      %v289 = vsel %vm279, %v286, %v288
      %v290 = vrot.slane %v177, 1
      %v291 = vrot.slane %v178, 1
      %v292 = vsel %vm279, %v290, %v291
      %v293 = vrot.slane %v179, 1
      %v294 = vsel %vm279, %v291, %v293
      %v295 = vrot.slane %v180, 1
      %v296 = vrot.slane %v181, 1
      %v297 = vsel %vm279, %v295, %v296
      %v298 = vrot.slane %v182, 1
      %v299 = vsel %vm279, %v296, %v298
      %v300 = vrot.slane %v183, 1
      %v301 = vrot.slane %v184, 1
      %v302 = vsel %vm279, %v300, %v301
      %v303 = vrot.slane %v185, 1
      %v304 = vsel %vm279, %v301, %v303
      %v305 = vrot.slane %v186, 1
      %v306 = vrot.slane %v187, 1
      %v307 = vsel %vm279, %v305, %v306
      %v308 = vrot.slane %v188, 1
      %v309 = vsel %vm279, %v306, %v308
      %v310 = vrot.slane %v189, 1
      %v311 = vrot.slane %v190, 1
      %v312 = vsel %vm279, %v310, %v311
      %v313 = vrot.slane %v191, 1
      %v314 = vsel %vm279, %v311, %v313
      %v315 = vrot.slane %v192, 1
      %v316 = vrot.slane %v193, 1
      %v317 = vsel %vm279, %v315, %v316
      %v318 = vrot.slane %v194, 1
      %v319 = vsel %vm279, %v316, %v318
      %v320 = vrot.slane %v195, 1
      %v321 = vrot.slane %v196, 1
      %v322 = vsel %vm279, %v320, %v321
      %v323 = vrot.slane %v197, 1
      %v324 = vsel %vm279, %v321, %v323
      %v325 = vrot.slane %v198, 1
      %v326 = vrot.slane %v199, 1
      %v327 = vsel %vm279, %v325, %v326
      %v328 = vrot.slane %v200, 1
      %v329 = vsel %vm279, %v326, %v328
      %v330 = vrot.slane %v201, 1
      %v331 = vrot.slane %v202, 1
      %v332 = vsel %vm279, %v330, %v331
      %v333 = vrot.slane %v203, 1
      %v334 = vsel %vm279, %v331, %v333
      %v335 = vrot.slane %v204, 1
      %v336 = vrot.slane %v205, 1
      %v337 = vsel %vm279, %v335, %v336
      %v338 = vrot.slane %v206, 1
      %v339 = vsel %vm279, %v336, %v338
      %v340 = vrot.slane %v207, 1
      %v341 = vrot.slane %v208, 1
      %v342 = vsel %vm279, %v340, %v341
      %v343 = vrot.slane %v209, 1
      %v344 = vsel %vm279, %v341, %v343
      %v345 = vrot.slane %v210, 1
      %v346 = vrot.slane %v211, 1
      %v347 = vsel %vm279, %v345, %v346
      %v348 = vrot.slane %v212, 1
      %v349 = vsel %vm279, %v346, %v348
      %v350 = vrot.slane %v213, 1
      %v351 = vrot.slane %v214, 1
      %v352 = vsel %vm279, %v350, %v351
      %v353 = vrot.slane %v215, 1
      %v354 = vsel %vm279, %v351, %v353
      %v355 = vrot.slane %v216, 1
      %v356 = vrot.slane %v217, 1
      %v357 = vsel %vm279, %v355, %v356
      %v358 = vrot.slane %v218, 1
      %v359 = vsel %vm279, %v356, %v358
      %v360 = vrot.slane %v219, 1
      %v361 = vrot.slane %v220, 1
      %v362 = vsel %vm279, %v360, %v361
      %v363 = vrot.slane %v221, 1
      %v364 = vsel %vm279, %v361, %v363
      %v365 = vrot.slane %v222, 1
      %v366 = vrot.slane %v223, 1
      %v367 = vsel %vm279, %v365, %v366
      %v368 = vrot.slane %v224, 1
      %v369 = vsel %vm279, %v366, %v368
      %370 = vrot.lane.b32.xlu0 %v282, 64
      %v371 = vpop.permute.xlu0 %370
      %372 = vrot.lane.b32.xlu0 %v284, 64
      %v373 = vpop.permute.xlu0 %372
      %374 = vrot.lane.b32.xlu0 %v287, 64
      %v375 = vpop.permute.xlu0 %374
      %376 = vrot.lane.b32.xlu0 %v289, 64
      %v377 = vpop.permute.xlu0 %376
      %378 = vrot.lane.b32.xlu0 %v292, 64
      %v379 = vpop.permute.xlu0 %378
      %380 = vrot.lane.b32.xlu0 %v294, 64
      %v381 = vpop.permute.xlu0 %380
      %382 = vrot.lane.b32.xlu0 %v297, 64
      %v383 = vpop.permute.xlu0 %382
      %384 = vrot.lane.b32.xlu0 %v299, 64
      %v385 = vpop.permute.xlu0 %384
      %386 = vrot.lane.b32.xlu0 %v302, 64
      %v387 = vpop.permute.xlu0 %386
      %388 = vrot.lane.b32.xlu0 %v304, 64
      %v389 = vpop.permute.xlu0 %388
      %390 = vrot.lane.b32.xlu0 %v307, 64
      %v391 = vpop.permute.xlu0 %390
      %392 = vrot.lane.b32.xlu0 %v309, 64
      %v393 = vpop.permute.xlu0 %392
      %394 = vrot.lane.b32.xlu0 %v312, 64
      %v395 = vpop.permute.xlu0 %394
      %396 = vrot.lane.b32.xlu0 %v314, 64
      %v397 = vpop.permute.xlu0 %396
      %398 = vrot.lane.b32.xlu0 %v317, 64
      %v399 = vpop.permute.xlu0 %398
      %400 = vrot.lane.b32.xlu0 %v319, 64
      %v401 = vpop.permute.xlu0 %400
      %402 = vrot.lane.b32.xlu0 %v322, 64
      %v403 = vpop.permute.xlu0 %402
      %404 = vrot.lane.b32.xlu0 %v324, 64
      %v405 = vpop.permute.xlu0 %404
      %406 = vrot.lane.b32.xlu0 %v327, 64
      %v407 = vpop.permute.xlu0 %406
      %408 = vrot.lane.b32.xlu0 %v329, 64
      %v409 = vpop.permute.xlu0 %408
      %410 = vrot.lane.b32.xlu0 %v332, 64
      %v411 = vpop.permute.xlu0 %410
      %412 = vrot.lane.b32.xlu0 %v334, 64
      %v413 = vpop.permute.xlu0 %412
      %414 = vrot.lane.b32.xlu0 %v337, 64
      %v415 = vpop.permute.xlu0 %414
      %416 = vrot.lane.b32.xlu0 %v339, 64
      %v417 = vpop.permute.xlu0 %416
      %418 = vrot.lane.b32.xlu0 %v342, 64
      %v419 = vpop.permute.xlu0 %418
      %420 = vrot.lane.b32.xlu0 %v344, 64
      %v421 = vpop.permute.xlu0 %420
      %422 = vrot.lane.b32.xlu0 %v347, 64
      %v423 = vpop.permute.xlu0 %422
      %424 = vrot.lane.b32.xlu0 %v349, 64
      %v425 = vpop.permute.xlu0 %424
      %426 = vrot.lane.b32.xlu0 %v352, 64
      %v427 = vpop.permute.xlu0 %426
      %428 = vrot.lane.b32.xlu0 %v354, 64
      %v429 = vpop.permute.xlu0 %428
      %430 = vrot.lane.b32.xlu0 %v357, 64
      %v431 = vpop.permute.xlu0 %430
      %432 = vrot.lane.b32.xlu0 %v359, 64
      %v433 = vpop.permute.xlu0 %432
      %434 = vrot.lane.b32.xlu0 %v362, 64
      %v435 = vpop.permute.xlu0 %434
      %436 = vrot.lane.b32.xlu0 %v364, 64
      %v437 = vpop.permute.xlu0 %436
      %438 = vrot.lane.b32.xlu0 %v367, 64
      %v439 = vpop.permute.xlu0 %438
      %440 = vrot.lane.b32.xlu0 %v369, 64
      %v441 = vpop.permute.xlu0 %440
      %vm478 = vcmask 1045504
      %v479 = vrot.slane %v171, 2
      %v480 = vrot.slane %v172, 2
      %v481 = vsel %vm478, %v479, %v480
      %v482 = vrot.slane %v173, 2
      %v483 = vsel %vm478, %v480, %v482
      %v484 = vrot.slane %v174, 2
      %v485 = vrot.slane %v175, 2
      %v486 = vsel %vm478, %v484, %v485
      %v487 = vrot.slane %v176, 2
      %v488 = vsel %vm478, %v485, %v487
      %v489 = vrot.slane %v177, 2
      %v490 = vrot.slane %v178, 2
      %v491 = vsel %vm478, %v489, %v490
      %v492 = vrot.slane %v179, 2
      %v493 = vsel %vm478, %v490, %v492
      %v494 = vrot.slane %v180, 2
      %v495 = vrot.slane %v181, 2
      %v496 = vsel %vm478, %v494, %v495
      %v497 = vrot.slane %v182, 2
      %v498 = vsel %vm478, %v495, %v497
      %v499 = vrot.slane %v183, 2
      %v500 = vrot.slane %v184, 2
      %v501 = vsel %vm478, %v499, %v500
      %v502 = vrot.slane %v185, 2
      %v503 = vsel %vm478, %v500, %v502
      %v504 = vrot.slane %v186, 2
      %v505 = vrot.slane %v187, 2
      %v506 = vsel %vm478, %v504, %v505
      %v507 = vrot.slane %v188, 2
      %v508 = vsel %vm478, %v505, %v507
      %v509 = vrot.slane %v189, 2
      %v510 = vrot.slane %v190, 2
      %v511 = vsel %vm478, %v509, %v510
      %v512 = vrot.slane %v191, 2
      %v513 = vsel %vm478, %v510, %v512
      %v514 = vrot.slane %v192, 2
      %v515 = vrot.slane %v193, 2
      %v516 = vsel %vm478, %v514, %v515
      %v517 = vrot.slane %v194, 2
      %v518 = vsel %vm478, %v515, %v517
      %v519 = vrot.slane %v195, 2
      %v520 = vrot.slane %v196, 2
      %v521 = vsel %vm478, %v519, %v520
      %v522 = vrot.slane %v197, 2
      %v523 = vsel %vm478, %v520, %v522
      %v524 = vrot.slane %v198, 2
      %v525 = vrot.slane %v199, 2
      %v526 = vsel %vm478, %v524, %v525
      %v527 = vrot.slane %v200, 2
      %v528 = vsel %vm478, %v525, %v527
      %v529 = vrot.slane %v201, 2
      %v530 = vrot.slane %v202, 2
      %v531 = vsel %vm478, %v529, %v530
      %v532 = vrot.slane %v203, 2
      %v533 = vsel %vm478, %v530, %v532
      %v534 = vrot.slane %v204, 2
      %v535 = vrot.slane %v205, 2
      %v536 = vsel %vm478, %v534, %v535
      %v537 = vrot.slane %v206, 2
      %v538 = vsel %vm478, %v535, %v537
      %v539 = vrot.slane %v207, 2
      %v540 = vrot.slane %v208, 2
      %v541 = vsel %vm478, %v539, %v540
      %v542 = vrot.slane %v209, 2
      %v543 = vsel %vm478, %v540, %v542
      %v544 = vrot.slane %v210, 2
      %v545 = vrot.slane %v211, 2
      %v546 = vsel %vm478, %v544, %v545
      %v547 = vrot.slane %v212, 2
      %v548 = vsel %vm478, %v545, %v547
      %v549 = vrot.slane %v213, 2
      %v550 = vrot.slane %v214, 2
      %v551 = vsel %vm478, %v549, %v550
      %v552 = vrot.slane %v215, 2
      %v553 = vsel %vm478, %v550, %v552
      %v554 = vrot.slane %v216, 2
      %v555 = vrot.slane %v217, 2
      %v556 = vsel %vm478, %v554, %v555
      %v557 = vrot.slane %v218, 2
      %v558 = vsel %vm478, %v555, %v557
      %v559 = vrot.slane %v219, 2
      %v560 = vrot.slane %v220, 2
      %v561 = vsel %vm478, %v559, %v560
      %v562 = vrot.slane %v221, 2
      %v563 = vsel %vm478, %v560, %v562
      %v564 = vrot.slane %v222, 2
      %v565 = vrot.slane %v223, 2
      %v566 = vsel %vm478, %v564, %v565
      %v567 = vrot.slane %v224, 2
      %v568 = vsel %vm478, %v565, %v567
      %vm601 = vcmask 523264
      %v602 = vsel %vm601, %v171, %v371
      %v603 = vsel %vm601, %v172, %v373
      %v604 = vsel %vm601, %v174, %v375
      %v605 = vsel %vm601, %v175, %v377
      %v606 = vsel %vm601, %v177, %v379
      %v607 = vsel %vm601, %v178, %v381
      %v608 = vsel %vm601, %v180, %v383
      %v609 = vsel %vm601, %v181, %v385
      %v610 = vsel %vm601, %v183, %v387
      %v611 = vsel %vm601, %v184, %v389
      %v612 = vsel %vm601, %v186, %v391
      %v613 = vsel %vm601, %v187, %v393
      %v614 = vsel %vm601, %v189, %v395
      %v615 = vsel %vm601, %v190, %v397
      %v616 = vsel %vm601, %v192, %v399
      %v617 = vsel %vm601, %v193, %v401
      %v618 = vsel %vm601, %v195, %v403
      %v619 = vsel %vm601, %v196, %v405
      %v620 = vsel %vm601, %v198, %v407
      %v621 = vsel %vm601, %v199, %v409
      %v622 = vsel %vm601, %v201, %v411
      %v623 = vsel %vm601, %v202, %v413
      %v624 = vsel %vm601, %v204, %v415
      %v625 = vsel %vm601, %v205, %v417
      %v626 = vsel %vm601, %v207, %v419
      %v627 = vsel %vm601, %v208, %v421
      %v628 = vsel %vm601, %v210, %v423
      %v629 = vsel %vm601, %v211, %v425
      %v630 = vsel %vm601, %v213, %v427
      %v631 = vsel %vm601, %v214, %v429
      %v632 = vsel %vm601, %v216, %v431
      %v633 = vsel %vm601, %v217, %v433
      %v634 = vsel %vm601, %v219, %v435
      %v635 = vsel %vm601, %v220, %v437
      %v636 = vsel %vm601, %v222, %v439
      %v637 = vsel %vm601, %v223, %v441
      %670 = vrot.lane.b32.xlu0 %v604, 64
      %v671 = vpop.permute.xlu0 %670
      %672 = vrot.lane.b32.xlu0 %v486, 64
      %v673 = vpop.permute.xlu0 %672
      %674 = vrot.lane.b32.xlu0 %v605, 64
      %v675 = vpop.permute.xlu0 %674
      %676 = vrot.lane.b32.xlu0 %v488, 64
      %v677 = vpop.permute.xlu0 %676
      %678 = vrot.lane.b32.xlu0 %v606, 64
      %v679 = vpop.permute.xlu0 %678
      %680 = vrot.lane.b32.xlu0 %v491, 64
      %v681 = vpop.permute.xlu0 %680
      %682 = vrot.lane.b32.xlu0 %v607, 64
      %v683 = vpop.permute.xlu0 %682
      %684 = vrot.lane.b32.xlu0 %v493, 64
      %v685 = vpop.permute.xlu0 %684
      %686 = vrot.lane.b32.xlu0 %v608, 64
      %v687 = vpop.permute.xlu0 %686
      %688 = vrot.lane.b32.xlu0 %v496, 64
      %v689 = vpop.permute.xlu0 %688
      %690 = vrot.lane.b32.xlu0 %v609, 64
      %v691 = vpop.permute.xlu0 %690
      %692 = vrot.lane.b32.xlu0 %v498, 64
      %v693 = vpop.permute.xlu0 %692
      %694 = vrot.lane.b32.xlu0 %v610, 64
      %v695 = vpop.permute.xlu0 %694
      %696 = vrot.lane.b32.xlu0 %v501, 64
      %v697 = vpop.permute.xlu0 %696
      %698 = vrot.lane.b32.xlu0 %v611, 64
      %v699 = vpop.permute.xlu0 %698
      %700 = vrot.lane.b32.xlu0 %v503, 64
      %v701 = vpop.permute.xlu0 %700
      %702 = vrot.lane.b32.xlu0 %v612, 64
      %v703 = vpop.permute.xlu0 %702
      %704 = vrot.lane.b32.xlu0 %v506, 64
      %v705 = vpop.permute.xlu0 %704
      %706 = vrot.lane.b32.xlu0 %v613, 64
      %v707 = vpop.permute.xlu0 %706
      %708 = vrot.lane.b32.xlu0 %v508, 64
      %v709 = vpop.permute.xlu0 %708
      %710 = vrot.lane.b32.xlu0 %v614, 64
      %v711 = vpop.permute.xlu0 %710
      %712 = vrot.lane.b32.xlu0 %v511, 64
      %v713 = vpop.permute.xlu0 %712
      %714 = vrot.lane.b32.xlu0 %v615, 64
      %v715 = vpop.permute.xlu0 %714
      %716 = vrot.lane.b32.xlu0 %v513, 64
      %v717 = vpop.permute.xlu0 %716
      %718 = vrot.lane.b32.xlu0 %v616, 64
      %v719 = vpop.permute.xlu0 %718
      %720 = vrot.lane.b32.xlu0 %v516, 64
      %v721 = vpop.permute.xlu0 %720
      %722 = vrot.lane.b32.xlu0 %v617, 64
      %v723 = vpop.permute.xlu0 %722
      %724 = vrot.lane.b32.xlu0 %v518, 64
      %v725 = vpop.permute.xlu0 %724
      %726 = vrot.lane.b32.xlu0 %v618, 64
      %v727 = vpop.permute.xlu0 %726
      %728 = vrot.lane.b32.xlu0 %v521, 64
      %v729 = vpop.permute.xlu0 %728
      %730 = vrot.lane.b32.xlu0 %v619, 64
      %v731 = vpop.permute.xlu0 %730
      %732 = vrot.lane.b32.xlu0 %v523, 64
      %v733 = vpop.permute.xlu0 %732
      %734 = vrot.lane.b32.xlu0 %v620, 64
      %v735 = vpop.permute.xlu0 %734
      %736 = vrot.lane.b32.xlu0 %v526, 64
      %v737 = vpop.permute.xlu0 %736
      %738 = vrot.lane.b32.xlu0 %v621, 64
      %v739 = vpop.permute.xlu0 %738
      %740 = vrot.lane.b32.xlu0 %v528, 64
      %v741 = vpop.permute.xlu0 %740
      %742 = vrot.lane.b32.xlu0 %v622, 64
      %v743 = vpop.permute.xlu0 %742
      %744 = vrot.lane.b32.xlu0 %v531, 64
      %v745 = vpop.permute.xlu0 %744
      %746 = vrot.lane.b32.xlu0 %v623, 64
      %v747 = vpop.permute.xlu0 %746
      %748 = vrot.lane.b32.xlu0 %v533, 64
      %v749 = vpop.permute.xlu0 %748
      %750 = vrot.lane.b32.xlu0 %v624, 64
      %v751 = vpop.permute.xlu0 %750
      %752 = vrot.lane.b32.xlu0 %v536, 64
      %v753 = vpop.permute.xlu0 %752
      %754 = vrot.lane.b32.xlu0 %v625, 64
      %v755 = vpop.permute.xlu0 %754
      %756 = vrot.lane.b32.xlu0 %v538, 64
      %v757 = vpop.permute.xlu0 %756
      %758 = vrot.lane.b32.xlu0 %v626, 64
      %v759 = vpop.permute.xlu0 %758
      %760 = vrot.lane.b32.xlu0 %v541, 64
      %v761 = vpop.permute.xlu0 %760
      %762 = vrot.lane.b32.xlu0 %v627, 64
      %v763 = vpop.permute.xlu0 %762
      %764 = vrot.lane.b32.xlu0 %v543, 64
      %v765 = vpop.permute.xlu0 %764
      %766 = vrot.lane.b32.xlu0 %v628, 64
      %v767 = vpop.permute.xlu0 %766
      %768 = vrot.lane.b32.xlu0 %v546, 64
      %v769 = vpop.permute.xlu0 %768
      %770 = vrot.lane.b32.xlu0 %v629, 64
      %v771 = vpop.permute.xlu0 %770
      %772 = vrot.lane.b32.xlu0 %v548, 64
      %v773 = vpop.permute.xlu0 %772
      %774 = vrot.lane.b32.xlu0 %v630, 64
      %v775 = vpop.permute.xlu0 %774
      %776 = vrot.lane.b32.xlu0 %v551, 64
      %v777 = vpop.permute.xlu0 %776
      %778 = vrot.lane.b32.xlu0 %v631, 64
      %v779 = vpop.permute.xlu0 %778
      %780 = vrot.lane.b32.xlu0 %v553, 64
      %v781 = vpop.permute.xlu0 %780
      %782 = vrot.lane.b32.xlu0 %v632, 64
      %v783 = vpop.permute.xlu0 %782
      %784 = vrot.lane.b32.xlu0 %v556, 64
      %v785 = vpop.permute.xlu0 %784
      %786 = vrot.lane.b32.xlu0 %v633, 64
      %v787 = vpop.permute.xlu0 %786
      %788 = vrot.lane.b32.xlu0 %v558, 64
      %v789 = vpop.permute.xlu0 %788
      %790 = vrot.lane.b32.xlu0 %v634, 64
      %v791 = vpop.permute.xlu0 %790
      %792 = vrot.lane.b32.xlu0 %v561, 64
      %v793 = vpop.permute.xlu0 %792
      %794 = vrot.lane.b32.xlu0 %v635, 64
      %v795 = vpop.permute.xlu0 %794
      %796 = vrot.lane.b32.xlu0 %v563, 64
      %v797 = vpop.permute.xlu0 %796
      %v798 = vsel %vm601, %v671, %v673
      %v799 = vsel %vm601, %v675, %v677
      %v800 = vsel %vm601, %v679, %v681
      %v801 = vsel %vm601, %v683, %v685
      %v802 = vsel %vm601, %v687, %v689
      %v803 = vsel %vm601, %v691, %v693
      %v804 = vsel %vm601, %v695, %v697
      %v805 = vsel %vm601, %v699, %v701
      %v806 = vsel %vm601, %v703, %v705
      %v807 = vsel %vm601, %v707, %v709
      %v808 = vsel %vm601, %v711, %v713
      %v809 = vsel %vm601, %v715, %v717
      %v810 = vsel %vm601, %v719, %v721
      %v811 = vsel %vm601, %v723, %v725
      %v812 = vsel %vm601, %v727, %v729
      %v813 = vsel %vm601, %v731, %v733
      %v814 = vsel %vm601, %v735, %v737
      %v815 = vsel %vm601, %v739, %v741
      %v816 = vsel %vm601, %v743, %v745
      %v817 = vsel %vm601, %v747, %v749
      %v818 = vsel %vm601, %v751, %v753
      %v819 = vsel %vm601, %v755, %v757
      %v820 = vsel %vm601, %v759, %v761
      %v821 = vsel %vm601, %v763, %v765
      %v822 = vsel %vm601, %v767, %v769
      %v823 = vsel %vm601, %v771, %v773
      %v824 = vsel %vm601, %v775, %v777
      %v825 = vsel %vm601, %v779, %v781
      %v826 = vsel %vm601, %v783, %v785
      %v827 = vsel %vm601, %v787, %v789
      %v828 = vsel %vm601, %v791, %v793
      %v829 = vsel %vm601, %v795, %v797
      %v894 = vsel %vm601, %v481, %v671
      %v895 = vsel %vm601, %v483, %v675
      %v896 = vsel %vm601, %v486, %v679
      %v897 = vsel %vm601, %v488, %v683
      %v898 = vsel %vm601, %v491, %v687
      %v899 = vsel %vm601, %v493, %v691
      %v900 = vsel %vm601, %v496, %v695
      %v901 = vsel %vm601, %v498, %v699
      %v902 = vsel %vm601, %v501, %v703
      %v903 = vsel %vm601, %v503, %v707
      %v904 = vsel %vm601, %v506, %v711
      %v905 = vsel %vm601, %v508, %v715
      %v906 = vsel %vm601, %v511, %v719
      %v907 = vsel %vm601, %v513, %v723
      %v908 = vsel %vm601, %v516, %v727
      %v909 = vsel %vm601, %v518, %v731
      %v910 = vsel %vm601, %v521, %v735
      %v911 = vsel %vm601, %v523, %v739
      %v912 = vsel %vm601, %v526, %v743
      %v913 = vsel %vm601, %v528, %v747
      %v914 = vsel %vm601, %v531, %v751
      %v915 = vsel %vm601, %v533, %v755
      %v916 = vsel %vm601, %v536, %v759
      %v917 = vsel %vm601, %v538, %v763
      %v918 = vsel %vm601, %v541, %v767
      %v919 = vsel %vm601, %v543, %v771
      %v920 = vsel %vm601, %v546, %v775
      %v921 = vsel %vm601, %v548, %v779
      %v922 = vsel %vm601, %v551, %v783
      %v923 = vsel %vm601, %v553, %v787
      %v924 = vsel %vm601, %v556, %v791
      %v925 = vsel %vm601, %v558, %v795
      %v926 = vld [vmem:[%s1] sm:$0x1f]
      %v927 = vld [vmem:[#allocation2] sm:$0x1]
      %929 = vset.pattern.permute.xlu0 0
      %930 = vperm.xlu0 %929, %v927
      %v931 = vpop.permute.xlu0 %930
      %v933 = vlaneseq
      %v934 = vshrl.u32 %v933, 7
      %v935 = vsub.s32 0, %v934
      %v936 = vrot.slane %v931, %v935
      %v938 = vlaneseq
      %v939 = vshrl.u32 %v938, 7
      %v940 = vsub.s32 0, %v939
      %v941 = vrot.slane %v926, %v940
      %v942 = vlaneseq
      %v943 = vshrl.u32 %v942, 7
      %v944 = vsub.s32 1, %v943
      %v945 = vrot.slane %v926, %v944
      %v946 = vlaneseq
      %v947 = vshrl.u32 %v946, 7
      %v948 = vsub.s32 2, %v947
      %v949 = vrot.slane %v926, %v948
      %v950 = vlaneseq
      %v951 = vshrl.u32 %v950, 7
      %v952 = vsub.s32 3, %v951
      %v953 = vrot.slane %v926, %v952
      %v954 = vlaneseq
      %v955 = vshrl.u32 %v954, 7
      %v956 = vsub.s32 4, %v955
      %v957 = vrot.slane %v926, %v956
      %v962 = vsel %vm601, %v957, 0
      %v964 = vsel %vm601, %v491, 0
      %v966 = vsel %vm601, %v493, 0
      %v968 = vsel %vm601, %v496, 0
      %v970 = vsel %vm601, %v498, 0
      %v972 = vsel %vm601, %v501, 0
      %v974 = vsel %vm601, %v503, 0
      %v976 = vsel %vm601, %v506, 0
      %v978 = vsel %vm601, %v508, 0
      %v980 = vsel %vm601, %v511, 0
      %v982 = vsel %vm601, %v513, 0
      %v984 = vsel %vm601, %v516, 0
      %v986 = vsel %vm601, %v518, 0
      %v988 = vsel %vm601, %v521, 0
      %v990 = vsel %vm601, %v523, 0
      %v992 = vsel %vm601, %v526, 0
      %v994 = vsel %vm601, %v528, 0
      %v996 = vsel %vm601, %v531, 0
      %v998 = vsel %vm601, %v533, 0
      %v1000 = vsel %vm601, %v536, 0
      %v1002 = vsel %vm601, %v538, 0
      %v1004 = vsel %vm601, %v541, 0
      %v1006 = vsel %vm601, %v543, 0
      %v1008 = vsel %vm601, %v546, 0
      %v1010 = vsel %vm601, %v548, 0
      %v1012 = vsel %vm601, %v551, 0
      %v1014 = vsel %vm601, %v553, 0
      %v1016 = vsel %vm601, %v556, 0
      %v1018 = vsel %vm601, %v558, 0
      %v1020 = vsel %vm601, %v561, 0
      %v1022 = vsel %vm601, %v563, 0
      %v1024 = vsel %vm601, %v566, 0
      %v1026 = vsel %vm601, %v568, 0
      %1028 = vmatprep.subr.mxu0 %v909
      %1029 = vmatpush1.xpose.msra.mxu0 %v617
      %1030 = vmatprep.subr.mxu0 %v908
      %1031 = vmatpush1.xpose.msra.mxu0 %v616
      %1032 = vmatprep.subr.mxu0 %v907
      %1033 = vmatpush1.xpose.msra.mxu0 %v615
      %1034 = vmatprep.subr.mxu0 %v906
      %1035 = vmatpush1.xpose.msra.mxu0 %v614
      %1036 = vmatprep.subr.mxu0 %v905
      %1037 = vmatpush1.xpose.msra.mxu0 %v613
      %1038 = vmatprep.subr.mxu0 %v904
      %1039 = vmatpush1.xpose.msra.mxu0 %v612
      %1040 = vmatprep.subr.mxu0 %v903
      %1041 = vmatpush1.xpose.msra.mxu0 %v611
      %1042 = vmatprep.subr.mxu0 %v902
      %1043 = vmatpush1.xpose.msra.mxu0 %v610
      %1044 = vmatprep.subr.mxu0 %v901
      %1045 = vmatpush1.xpose.msra.mxu0 %v609
      %1046 = vmatprep.subr.mxu0 %v900
      %1047 = vmatpush1.xpose.msra.mxu0 %v608
      %1048 = vmatprep.subr.mxu0 %v899
      %1049 = vmatpush1.xpose.msra.mxu0 %v607
      %1050 = vmatprep.subr.mxu0 %v898
      %1051 = vmatpush1.xpose.msra.mxu0 %v606
      %1052 = vmatprep.subr.mxu0 %v897
      %1053 = vmatpush1.xpose.msra.mxu0 %v605
      %1054 = vmatprep.subr.mxu0 %v896
      %1055 = vmatpush1.xpose.msra.mxu0 %v604
      %1056 = vmatprep.subr.mxu0 %v895
      %1057 = vmatpush1.xpose.msra.mxu0 %v603
      %1058 = vmatprep.subr.mxu0 %v894
      %1059 = vmatpush1.xpose.msra.mxu0 %v602
      %1060 = vmatprep.subr.mxu0 %v925
      %1061 = vmatpush2.xpose.msra.mxu0 %v633
      %1062 = vmatprep.subr.mxu0 %v924
      %1063 = vmatpush2.xpose.msra.mxu0 %v632
      %1064 = vmatprep.subr.mxu0 %v923
      %1065 = vmatpush2.xpose.msra.mxu0 %v631
      %1066 = vmatprep.subr.mxu0 %v922
      %1067 = vmatpush2.xpose.msra.mxu0 %v630
      %1068 = vmatprep.subr.mxu0 %v921
      %1069 = vmatpush2.xpose.msra.mxu0 %v629
      %1070 = vmatprep.subr.mxu0 %v920
      %1071 = vmatpush2.xpose.msra.mxu0 %v628
      %1072 = vmatprep.subr.mxu0 %v919
      %1073 = vmatpush2.xpose.msra.mxu0 %v627
      %1074 = vmatprep.subr.mxu0 %v918
      %1075 = vmatpush2.xpose.msra.mxu0 %v626
      %1076 = vmatprep.subr.mxu0 %v917
      %1077 = vmatpush2.xpose.msra.mxu0 %v625
      %1078 = vmatprep.subr.mxu0 %v916
      %1079 = vmatpush2.xpose.msra.mxu0 %v624
      %1080 = vmatprep.subr.mxu0 %v915
      %1081 = vmatpush2.xpose.msra.mxu0 %v623
      %1082 = vmatprep.subr.mxu0 %v914
      %1083 = vmatpush2.xpose.msra.mxu0 %v622
      %1084 = vmatprep.subr.mxu0 %v913
      %1085 = vmatpush2.xpose.msra.mxu0 %v621
      %1086 = vmatprep.subr.mxu0 %v912
      %1087 = vmatpush2.xpose.msra.mxu0 %v620
      %1088 = vmatprep.subr.mxu0 %v911
      %1089 = vmatpush2.xpose.msra.mxu0 %v619
      %1090 = vmatprep.subr.mxu0 %v910
      %1091 = vmatpush2.xpose.msra.mxu0 %v618
      %1092 = vmatprep.mubr.f32.mxu0 %v945
      %1093 = vmatmul.mubr.f32.gmra.mxu0 %v941
      %v1094 = vpop.f32.mrf.mxu0
      %v1095 = vadd.f32 %v936, %v1094
      %v1096 = vpop.f32.mrf.mxu0
      %v1097 = vadd.f32 %v936, %v1096
      %1098 = vdwg.mxu0
      %1099 = vmatprep.subr.mxu0 %v621
      %1100 = vmatpush1.xpose.msra.mxu0 %v813
      %1101 = vmatprep.subr.mxu0 %v620
      %1102 = vmatpush1.xpose.msra.mxu0 %v812
      %1103 = vmatprep.subr.mxu0 %v619
      %1104 = vmatpush1.xpose.msra.mxu0 %v811
      %1105 = vmatprep.subr.mxu0 %v618
      %1106 = vmatpush1.xpose.msra.mxu0 %v810
      %1107 = vmatprep.subr.mxu0 %v617
      %1108 = vmatpush1.xpose.msra.mxu0 %v809
      %1109 = vmatprep.subr.mxu0 %v616
      %1110 = vmatpush1.xpose.msra.mxu0 %v808
      %1111 = vmatprep.subr.mxu0 %v615
      %1112 = vmatpush1.xpose.msra.mxu0 %v807
      %1113 = vmatprep.subr.mxu0 %v614
      %1114 = vmatpush1.xpose.msra.mxu0 %v806
      %1115 = vmatprep.subr.mxu0 %v613
      %1116 = vmatpush1.xpose.msra.mxu0 %v805
      %1117 = vmatprep.subr.mxu0 %v612
      %1118 = vmatpush1.xpose.msra.mxu0 %v804
      %1119 = vmatprep.subr.mxu0 %v611
      %1120 = vmatpush1.xpose.msra.mxu0 %v803
      %1121 = vmatprep.subr.mxu0 %v610
      %1122 = vmatpush1.xpose.msra.mxu0 %v802
      %1123 = vmatprep.subr.mxu0 %v609
      %1124 = vmatpush1.xpose.msra.mxu0 %v801
      %1125 = vmatprep.subr.mxu0 %v608
      %1126 = vmatpush1.xpose.msra.mxu0 %v800
      %1127 = vmatprep.subr.mxu0 %v607
      %1128 = vmatpush1.xpose.msra.mxu0 %v799
      %1129 = vmatprep.subr.mxu0 %v606
      %1130 = vmatpush1.xpose.msra.mxu0 %v798
      %1131 = vmatprep.subr.mxu0 %v637
      %1132 = vmatpush2.xpose.msra.mxu0 %v829
      %1133 = vmatprep.subr.mxu0 %v636
      %1134 = vmatpush2.xpose.msra.mxu0 %v828
      %1135 = vmatprep.subr.mxu0 %v635
      %1136 = vmatpush2.xpose.msra.mxu0 %v827
      %1137 = vmatprep.subr.mxu0 %v634
      %1138 = vmatpush2.xpose.msra.mxu0 %v826
      %1139 = vmatprep.subr.mxu0 %v633
      %1140 = vmatpush2.xpose.msra.mxu0 %v825
      %1141 = vmatprep.subr.mxu0 %v632
      %1142 = vmatpush2.xpose.msra.mxu0 %v824
      %1143 = vmatprep.subr.mxu0 %v631
      %1144 = vmatpush2.xpose.msra.mxu0 %v823
      %1145 = vmatprep.subr.mxu0 %v630
      %1146 = vmatpush2.xpose.msra.mxu0 %v822
      %1147 = vmatprep.subr.mxu0 %v629
      %1148 = vmatpush2.xpose.msra.mxu0 %v821
      %1149 = vmatprep.subr.mxu0 %v628
      %1150 = vmatpush2.xpose.msra.mxu0 %v820
      %1151 = vmatprep.subr.mxu0 %v627
      %1152 = vmatpush2.xpose.msra.mxu0 %v819
      %1153 = vmatprep.subr.mxu0 %v626
      %1154 = vmatpush2.xpose.msra.mxu0 %v818
      %1155 = vmatprep.subr.mxu0 %v625
      %1156 = vmatpush2.xpose.msra.mxu0 %v817
      %1157 = vmatprep.subr.mxu0 %v624
      %1158 = vmatpush2.xpose.msra.mxu0 %v816
      %1159 = vmatprep.subr.mxu0 %v623
      %1160 = vmatpush2.xpose.msra.mxu0 %v815
      %1161 = vmatprep.subr.mxu0 %v622
      %1162 = vmatpush2.xpose.msra.mxu0 %v814
      %1163 = vmatprep.mubr.f32.mxu0 %v953
      %1164 = vmatmul.mubr.f32.gmra.mxu0 %v949
      %v1165 = vpop.f32.mrf.mxu0
      %v1166 = vadd.f32 %v1095, %v1165
      %v1167 = vpop.f32.mrf.mxu0
      %v1168 = vadd.f32 %v1097, %v1167
      %1169 = vdwg.mxu0
      %1170 = vmatprep.subr.mxu0 0.0
      %1171 = vmatpush1.xpose.msra.mxu0 %v994
      %1172 = vmatprep.subr.mxu0 0.0
      %1173 = vmatpush1.xpose.msra.mxu0 %v992
      %1174 = vmatprep.subr.mxu0 0.0
      %1175 = vmatpush1.xpose.msra.mxu0 %v990
      %1176 = vmatprep.subr.mxu0 0.0
      %1177 = vmatpush1.xpose.msra.mxu0 %v988
      %1178 = vmatprep.subr.mxu0 0.0
      %1179 = vmatpush1.xpose.msra.mxu0 %v986
      %1180 = vmatprep.subr.mxu0 0.0
      %1181 = vmatpush1.xpose.msra.mxu0 %v984
      %1182 = vmatprep.subr.mxu0 0.0
      %1183 = vmatpush1.xpose.msra.mxu0 %v982
      %1184 = vmatprep.subr.mxu0 0.0
      %1185 = vmatpush1.xpose.msra.mxu0 %v980
      %1186 = vmatprep.subr.mxu0 0.0
      %1187 = vmatpush1.xpose.msra.mxu0 %v978
      %1188 = vmatprep.subr.mxu0 0.0
      %1189 = vmatpush1.xpose.msra.mxu0 %v976
      %1190 = vmatprep.subr.mxu0 0.0
      %1191 = vmatpush1.xpose.msra.mxu0 %v974
      %1192 = vmatprep.subr.mxu0 0.0
      %1193 = vmatpush1.xpose.msra.mxu0 %v972
      %1194 = vmatprep.subr.mxu0 0.0
      %1195 = vmatpush1.xpose.msra.mxu0 %v970
      %1196 = vmatprep.subr.mxu0 0.0
      %1197 = vmatpush1.xpose.msra.mxu0 %v968
      %1198 = vmatprep.subr.mxu0 0.0
      %1199 = vmatpush1.xpose.msra.mxu0 %v966
      %1200 = vmatprep.subr.mxu0 0.0
      %1201 = vmatpush1.xpose.msra.mxu0 %v964
      %1202 = vmatprep.subr.mxu0 0.0
      %1203 = vmatpush2.xpose.msra.mxu0 %v1026
      %1204 = vmatprep.subr.mxu0 0.0
      %1205 = vmatpush2.xpose.msra.mxu0 %v1024
      %1206 = vmatprep.subr.mxu0 0.0
      %1207 = vmatpush2.xpose.msra.mxu0 %v1022
      %1208 = vmatprep.subr.mxu0 0.0
      %1209 = vmatpush2.xpose.msra.mxu0 %v1020
      %1210 = vmatprep.subr.mxu0 0.0
      %1211 = vmatpush2.xpose.msra.mxu0 %v1018
      %1212 = vmatprep.subr.mxu0 0.0
      %1213 = vmatpush2.xpose.msra.mxu0 %v1016
      %1214 = vmatprep.subr.mxu0 0.0
      %1215 = vmatpush2.xpose.msra.mxu0 %v1014
      %1216 = vmatprep.subr.mxu0 0.0
      %1217 = vmatpush2.xpose.msra.mxu0 %v1012
      %1218 = vmatprep.subr.mxu0 0.0
      %1219 = vmatpush2.xpose.msra.mxu0 %v1010
      %1220 = vmatprep.subr.mxu0 0.0
      %1221 = vmatpush2.xpose.msra.mxu0 %v1008
      %1222 = vmatprep.subr.mxu0 0.0
      %1223 = vmatpush2.xpose.msra.mxu0 %v1006
      %1224 = vmatprep.subr.mxu0 0.0
      %1225 = vmatpush2.xpose.msra.mxu0 %v1004
      %1226 = vmatprep.subr.mxu0 0.0
      %1227 = vmatpush2.xpose.msra.mxu0 %v1002
      %1228 = vmatprep.subr.mxu0 0.0
      %1229 = vmatpush2.xpose.msra.mxu0 %v1000
      %1230 = vmatprep.subr.mxu0 0.0
      %1231 = vmatpush2.xpose.msra.mxu0 %v998
      %1232 = vmatprep.subr.mxu0 0.0
      %1233 = vmatpush2.xpose.msra.mxu0 %v996
      %1234 = vmatprep.mubr.f32.mxu0 0.0
      %1235 = vmatmul.mubr.f32.gmra.mxu0 %v962
      %v1236 = vpop.f32.mrf.mxu0
      %v1237 = vadd.f32 %v1166, %v1236
      %v1238 = vpop.f32.mrf.mxu0
      %v1239 = vadd.f32 %v1168, %v1238
      %1240 = vdwg.mxu0
      %v1241 = vxor.u32 %v1237, 2147483648
      %v1242 = vxor.u32 %v1239, 2147483648
      %v1243 = vmul.f32 %v1241, 1.442695
      %v1244 = vpow.pop %v1243
      %v1245 = vmul.f32 %v1242, 1.442695
      %v1246 = vpow.pop %v1245
      %v1247 = vadd.f32 %v1244, 1.0
      %v1248 = vadd.f32 %v1246, 1.0
      %v1249 = vrcp.pop %v1247
      %v1250 = vmul.f32 1.0, %v1249
      %v1251 = vrcp.pop %v1248
      %v1252 = vmul.f32 1.0, %v1251
      %v1255 = vcombine.low %v1250, %v1252
      %v1257 = vunpack.c.l.s4 1966171168
      %v1258 = vunpack.c.0.s8 %v1257
      %v1259 = vlaneseq
      %v1260 = vshrl.u32 %v1259, 7
      %v1261 = vsub.s32 %v1258, %v1260
      %v1262 = vrot.slane %v1255, %v1261
      %v1264 = vunpack.c.l.s4 1966171168
      %v1265 = vunpack.c.0.s8 %v1264
      %v1266 = vlaneseq
      %v1267 = vshrl.u32 %v1266, 7
      %v1268 = vsub.s32 %v1265, %v1267
      %v1269 = vrot.slane %v1262, %v1268
      %v1271 = vlaneseq
      %vm1272 = vcmp.ge.s32.totalorder %v1271, 0
      %vm1273 = vcmp.lt.s32.totalorder %v1271, 256
      %vm1274 = vmand %vm1272, %vm1273
      %1275 = vst.msk [vmem:[%s170] sm:$0x3] %vm1274, %v1269
      %p1276 = scmp.lt.s32.totalorder %s16, 1
      %s1277 = scalar_select %p1276, %s16, 1
      %s1278 = smul.addr %s1277, 2
      %s1279 = scalar_lea.vmem %s3, %s1278
      // Predicated region
      $region33: #{dfcan_forward.27} parent=31 // pred_check
        %p1280 = pneg %p102
      $region34: #{dfcan_forward.27} parent=31 // pred_check_branch
        %1282 = sbr.rel (%p1280) target = $region36
      $region35: #{dfcan_forward.27} parent=31 // pred_region
        _
      $region36: #{dfcan_forward.27} parent=31 // pred_fallthru
        _
    $region32: #{dfcan_forward.27} parent=5 // pred_fallthru
      _
    %p1283 = scmp.le.s32.totalorder 2, %s11
    // Predicated region
    $region37: #{dfcan_forward.27} parent=5 // pred_check
      %p1284 = pneg %p1283
    $region38: #{dfcan_forward.27} parent=5 // pred_check_branch
      %1286 = sbr.rel (%p1284) target = $region40
    $region39: #{dfcan_forward.27} parent=5 // pred_region
      %s1287 = ssub.s32 %s11, 2
      // Predicated region
      $region41: #{dfcan_forward.27} parent=39 // pred_check
        %p1288 = pneg %p108
      $region42: #{dfcan_forward.27} parent=39 // pred_check_branch
        %1290 = sbr.rel (%p1288) target = $region44
      $region43: #{dfcan_forward.27} parent=39 // pred_region
        %p1291 = scmp.lt.s32.totalorder %s17, 1
        %s1292 = scalar_select %p1291, %s17, 1
        %s1293 = smul.addr %s1292, 2
        %s1294 = scalar_lea.vmem %s3, %s1293
      $region44: #{dfcan_forward.27} parent=39 // pred_fallthru
        _
    $region40: #{dfcan_forward.27} parent=5 // pred_fallthru
      _
  $region6: #{dfcan_forward.27} parent=0 // loop_footer
    %s15 = sadd.s32 1, %s11
  $region7: #{dfcan_forward.27} parent=0 // loop_footer_branch
    %10 = sbr.rel target = $region3
  $region8: #{dfcan_forward.27} parent=0 // loop_exit
    _

</llo_original>
